<compile_context>
chip_gen: v6e
topology: v6e:2x2x1
jax: 0.10.0
libtpu: 0.0.40
codegen_flags: <defaults>
</compile_context>

<pallas_src>
import jax
import jax.numpy as jnp
from jax import lax
from jax.experimental import pallas as pl
from jax.experimental.pallas import tpu as pltpu

NEG_INF = -1e30


def _round_up(x, m):
    return ((x + m - 1) // m) * m


# ----------------------------------------------------------------------------
# Encoder kernel: one BERT-like transformer layer (single head), grid over batch.
# TODO(synk): pretrained 'bert-base-uncased' weights cannot be loaded here; this is a
# deterministic synthetic 1-layer single-head transformer.  Its output is unused by the
# reference forward(), so under jit the whole pallas_call is DCE'd by XLA.
# ----------------------------------------------------------------------------
def _layernorm(x, g, b, eps=1e-12):
    mu = jnp.mean(x, axis=-1, keepdims=True)
    var = jnp.mean((x - mu) ** 2, axis=-1, keepdims=True)
    return (x - mu) * lax.rsqrt(var + eps) * g + b


def encoder_layer_kernel(x_ref, mask_ref,
                         wq_ref, wk_ref, wv_ref, wo_ref,
                         bq_ref, bk_ref, bv_ref, bo_ref,
                         ln1g_ref, ln1b_ref,
                         w1_ref, b1_ref, w2_ref, b2_ref,
                         ln2g_ref, ln2b_ref,
                         out_ref):
    x = x_ref[0]                                   # (S, E)
    m = mask_ref[0]                                # (1, S)  float {0,1}
    E = x.shape[-1]

    q = jnp.dot(x, wq_ref[...], preferred_element_type=jnp.float32) + bq_ref[...]
    k = jnp.dot(x, wk_ref[...], preferred_element_type=jnp.float32) + bk_ref[...]
    v = jnp.dot(x, wv_ref[...], preferred_element_type=jnp.float32) + bv_ref[...]

    scores = jnp.dot(q, k.T, preferred_element_type=jnp.float32) * (1.0 / (E ** 0.5))
    scores = scores + (m - 1.0) * 1e9              # masked keys -> -1e9
    smax = jnp.max(scores, axis=-1, keepdims=True)
    p = jnp.exp(scores - smax)
    p = p / jnp.sum(p, axis=-1, keepdims=True)

    ctx = jnp.dot(p, v, preferred_element_type=jnp.float32)
    attn = jnp.dot(ctx, wo_ref[...], preferred_element_type=jnp.float32) + bo_ref[...]
    h1 = _layernorm(x + attn, ln1g_ref[...], ln1b_ref[...])

    ff = jnp.dot(h1, w1_ref[...], preferred_element_type=jnp.float32) + b1_ref[...]
    ff = jax.nn.gelu(ff, approximate=True)
    ff = jnp.dot(ff, w2_ref[...], preferred_element_type=jnp.float32) + b2_ref[...]

    out_ref[0] = _layernorm(h1 + ff, ln2g_ref[...], ln2b_ref[...])


def run_encoder(x_emb, mask3, p):
    B, S, E = x_emb.shape
    F = p["enc_w1"].shape[1]
    ee = lambda: pl.BlockSpec((E, E), lambda b: (0, 0))
    be = lambda: pl.BlockSpec((1, E), lambda b: (0, 0))
    in_specs = [
        pl.BlockSpec((1, S, E), lambda b: (b, 0, 0)),   # x
        pl.BlockSpec((1, 1, S), lambda b: (b, 0, 0)),   # mask
        ee(), ee(), ee(), ee(),                         # wq wk wv wo
        be(), be(), be(), be(),                         # bq bk bv bo
        be(), be(),                                     # ln1 gamma/beta
        pl.BlockSpec((E, F), lambda b: (0, 0)),         # w1
        pl.BlockSpec((1, F), lambda b: (0, 0)),         # b1
        pl.BlockSpec((F, E), lambda b: (0, 0)),         # w2
        be(),                                           # b2
        be(), be(),                                     # ln2 gamma/beta
    ]
    return pl.pallas_call(
        encoder_layer_kernel,
        out_shape=jax.ShapeDtypeStruct((B, S, E), jnp.float32),
        grid=(B,),
        in_specs=in_specs,
        out_specs=pl.BlockSpec((1, S, E), lambda b: (b, 0, 0)),
        compiler_params=pltpu.CompilerParams(dimension_semantics=("parallel",)),
    )(x_emb, mask3,
      p["enc_wq"], p["enc_wk"], p["enc_wv"], p["enc_wo"],
      p["enc_bq"], p["enc_bk"], p["enc_bv"], p["enc_bo"],
      p["enc_ln1_g"], p["enc_ln1_b"],
      p["enc_w1"], p["enc_b1"], p["enc_w2"], p["enc_b2"],
      p["enc_ln2_g"], p["enc_ln2_b"])


# ----------------------------------------------------------------------------
# Fused decoder kernel: num_layers LSTM layers + FC + LogSoftmax.
#
# Layout inside the kernel (all lane/sublane dense):
#   * time-major flat activations: row n = t*Bp + b   (Bp = 8-row sublane pad)
#   * hidden width padded H -> Hp (multiple of 128) so all gate slices of the
#     (Bp, 4*Hp) gate tensor are full-vreg aligned.  Padded weight rows/cols are
#     zero, so padding lanes stay exactly 0 through the recurrence.
#   * PyTorch gate order (i, f, g, o); bias is the combined b_ih + b_hh.
#   * vocab padded V -> Vp; padded fc bias columns are -1e30 so they vanish in
#     the log-softmax.
# ----------------------------------------------------------------------------
def _make_decoder_kernel(num_layers, Bp, T, Hp, Vp):
    def kernel(*refs):
        x_ref = refs[0]
        pos = 1
        layers = []
        for _ in range(num_layers):
            layers.append((refs[pos], refs[pos + 1], refs[pos + 2]))
            pos += 3
        h0_ref, c0_ref, fcw_ref, fcb_ref = refs[pos:pos + 4]
        pos += 4
        out_ref, hT_ref, cT_ref = refs[pos:pos + 3]
        pos += 3
        pre_ref, y_ref = refs[pos:pos + 2]

        x = x_ref[...]                                          # (T*Bp, Ep)

        for l, (wih_ref, whh_ref, b_ref) in enumerate(layers):
            # Hoisted input-to-hidden matmul for the whole sequence (one MXU op).
            pre_ref[...] = (jnp.dot(x, wih_ref[...],
                                    preferred_element_type=jnp.float32)
                            + b_ref[...])                       # (T*Bp, 4*Hp)
            whh = whh_ref[...]                                  # (Hp, 4*Hp), hoisted

            def step(t, carry):
                h, c = carry                                    # (Bp, Hp) vreg-resident
                r = pl.multiple_of(t * Bp, Bp)
                gates = pre_ref[pl.ds(r, Bp), :] + jnp.dot(
                    h, whh, preferred_element_type=jnp.float32)
                # vreg-aligned gate slices (Hp is a multiple of 128)
                i_g = jax.nn.sigmoid(gates[:, 0 * Hp:1 * Hp])
                f_g = jax.nn.sigmoid(gates[:, 1 * Hp:2 * Hp])
                g_g = jnp.tanh(gates[:, 2 * Hp:3 * Hp])
                o_g = jax.nn.sigmoid(gates[:, 3 * Hp:4 * Hp])
                c_new = f_g * c + i_g * g_g
                h_new = o_g * jnp.tanh(c_new)
                y_ref[pl.ds(r, Bp), :] = h_new                  # only y is stored
                return h_new, c_new

            # TODO(synk): if T grows, keep unroll capped (<=8) to avoid vreg spills.
            h_fin, c_fin = lax.fori_loop(0, T, step,
                                         (h0_ref[l], c0_ref[l]),
                                         unroll=min(T, 8))

            hT_ref[l] = h_fin                                   # lane-dense (Bp, Hp)
            cT_ref[l] = c_fin
            x = y_ref[...]                                      # input to next layer

        # ---- FC + LogSoftmax over the whole sequence (single MXU op, one store) ----
        logits = (jnp.dot(x, fcw_ref[...], preferred_element_type=jnp.float32)
                  + fcb_ref[...])                               # (T*Bp, Vp)
        m = jnp.max(logits, axis=-1, keepdims=True)
        lse = m + jnp.log(jnp.sum(jnp.exp(logits - m), axis=-1, keepdims=True))
        out_ref[...] = logits - lse                             # single lane-dense slab

    return kernel


def run_fused_decoder(prep, x, h0, c0, Bp, T, Hp, Vp, L):
    layer_args = []
    for lp in prep["lstm_p"]:
        layer_args += [lp["wih"], lp["whh"], lp["b"]]

    n_in = 1 + 3 * L + 4
    vm = pltpu.MemorySpace.VMEM
    return pl.pallas_call(
        _make_decoder_kernel(L, Bp, T, Hp, Vp),
        out_shape=(jax.ShapeDtypeStruct((T * Bp, Vp), jnp.float32),
                   jax.ShapeDtypeStruct((L, Bp, Hp), jnp.float32),
                   jax.ShapeDtypeStruct((L, Bp, Hp), jnp.float32)),
        in_specs=[pl.BlockSpec(memory_space=vm) for _ in range(n_in)],
        out_specs=(pl.BlockSpec(memory_space=vm),
                   pl.BlockSpec(memory_space=vm),
                   pl.BlockSpec(memory_space=vm)),
        scratch_shapes=[pltpu.VMEM((T * Bp, 4 * Hp), jnp.float32),  # pre-gates
                        pltpu.VMEM((T * Bp, Hp), jnp.float32)],     # layer outputs
        compiler_params=pltpu.CompilerParams(vmem_limit_bytes=64 * 1024 * 1024),
    )(x, *layer_args, h0, c0, prep["fc_w_p"], prep["fc_b_p"])


# ----------------------------------------------------------------------------
# Parameters (deterministic, synthetic) + one-time padding prep (outside jit)
# ----------------------------------------------------------------------------
def init_params(key, src_vocab, ipa_vocab, src_seq, enc_hidden, ffn_hidden,
                lstm_hidden, num_layers):
    keys = iter(jax.random.split(key, 32))

    def nrm(shape, scale=0.02):
        return (scale * jax.random.normal(next(keys), shape)).astype(jnp.float32)

    E, F, H = enc_hidden, ffn_hidden, lstm_hidden
    p = {
        "tok_emb": nrm((src_vocab, E)),
        "pos_emb": nrm((src_seq, E)),
        "enc_wq": nrm((E, E)), "enc_wk": nrm((E, E)),
        "enc_wv": nrm((E, E)), "enc_wo": nrm((E, E)),
        "enc_bq": jnp.zeros((1, E), jnp.float32),
        "enc_bk": jnp.zeros((1, E), jnp.float32),
        "enc_bv": jnp.zeros((1, E), jnp.float32),
        "enc_bo": jnp.zeros((1, E), jnp.float32),
        "enc_ln1_g": jnp.ones((1, E), jnp.float32),
        "enc_ln1_b": jnp.zeros((1, E), jnp.float32),
        "enc_w1": nrm((E, F)), "enc_b1": jnp.zeros((1, F), jnp.float32),
        "enc_w2": nrm((F, E)), "enc_b2": jnp.zeros((1, E), jnp.float32),
        "enc_ln2_g": jnp.ones((1, E), jnp.float32),
        "enc_ln2_b": jnp.zeros((1, E), jnp.float32),
        "ipa_emb": nrm((ipa_vocab, E), 0.5),
        "fc_w": nrm((H, ipa_vocab), 0.5),
        "fc_b": jnp.zeros((1, ipa_vocab), jnp.float32),
        "lstm": [],
    }
    for l in range(num_layers):
        in_dim = E if l == 0 else H
        p["lstm"].append({
            "wih_t": nrm((in_dim, 4 * H), 0.3),    # (in, 4H)  == W_ih^T
            "whh_t": nrm((H, 4 * H), 0.3),         # (H, 4H)   == W_hh^T
            "b": nrm((1, 4 * H), 0.3),             # b_ih + b_hh combined
        })
    return p


def _pad_gate_cols(w, H, Hp):
    """(..., 4H) -> (..., 4Hp): pad each of the 4 gate blocks from H to Hp cols."""
    lead = w.shape[:-1]
    w4 = w.reshape(lead + (4, H))
    w4 = jnp.pad(w4, [(0, 0)] * len(lead) + [(0, 0), (0, Hp - H)])
    return w4.reshape(lead + (4 * Hp,))


def prepare_params(params):
    """One-time weight padding to lane/sublane-aligned shapes (done OUTSIDE jit)."""
    H = params["lstm"][0]["whh_t"].shape[0]
    E = params["ipa_emb"].shape[1]
    V = params["fc_w"].shape[1]
    Hp, Ep, Vp = _round_up(H, 128), _round_up(E, 128), _round_up(V, 128)

    lstm_p = []
    for l, lp in enumerate(params["lstm"]):
        wih = _pad_gate_cols(lp["wih_t"], H, Hp)                  # (in, 4Hp)
        in_p = Ep if l == 0 else Hp
        wih = jnp.pad(wih, ((0, in_p - wih.shape[0]), (0, 0)))    # (in_p, 4Hp)
        whh = jnp.pad(_pad_gate_cols(lp["whh_t"], H, Hp),
                      ((0, Hp - H), (0, 0)))                      # (Hp, 4Hp)
        b = _pad_gate_cols(lp["b"], H, Hp)                        # (1, 4Hp)
        lstm_p.append({"wih": wih, "whh": whh, "b": b})

    fc_w_p = jnp.pad(params["fc_w"], ((0, Hp - H), (0, Vp - V)))  # (Hp, Vp), zero pad
    fc_b_p = jnp.pad(params["fc_b"], ((0, 0), (0, Vp - V)),
                     constant_values=NEG_INF)                     # padded logits -> -inf
    ipa_emb_p = jnp.pad(params["ipa_emb"], ((0, 0), (0, Ep - E))) # (V, Ep)

    # padded-lane invariant debug-check: all padded weight rows must be exactly zero
    # (guarantees padding lanes of h/c stay 0 through the recurrence).
    assert float(jnp.max(jnp.abs(lstm_p[0]["whh"][H:, :]))) == 0.0
    assert float(jnp.max(jnp.abs(fc_w_p[H:, :]))) == 0.0

    prep = dict(params)
    prep["lstm_p"] = lstm_p
    prep["fc_w_p"] = fc_w_p
    prep["fc_b_p"] = fc_b_p
    prep["ipa_emb_p"] = ipa_emb_p
    return prep


# ----------------------------------------------------------------------------
# Forward pass (matches IPAPredictor.forward return: (log_probs, (h_n, c_n)))
# ----------------------------------------------------------------------------
@jax.jit
def ipa_predictor_forward(prep, input_ids, attention_mask, decoder_input_ids,
                          hidden=None):
    B, S = input_ids.shape
    T = decoder_input_ids.shape[1]
    H = prep["lstm"][0]["whh_t"].shape[0]
    V = prep["fc_w"].shape[1]
    Hp = prep["lstm_p"][0]["whh"].shape[0]
    Vp = prep["fc_w_p"].shape[1]
    L = len(prep["lstm_p"])
    Bp = max(8, _round_up(B, 8))

    # --- encoder: computed but never consumed, exactly as in the reference forward().
    # Under jit XLA dead-code-eliminates this entire pallas_call.
    x_emb = prep["tok_emb"][input_ids] + prep["pos_emb"][None, :S, :]
    mask3 = attention_mask.astype(jnp.float32).reshape(B, 1, S)
    _encoder_hidden_states = run_encoder(x_emb, mask3, prep)

    # --- IPA embedding gather (XLA gather on the column-padded table), then pack
    # into time-major, sublane-padded rows for the fused decoder kernel.
    x = prep["ipa_emb_p"][decoder_input_ids]           # (B, T, Ep)
    x = jnp.transpose(x, (1, 0, 2))                    # (T, B, Ep)
    x = jnp.pad(x, ((0, 0), (0, Bp - B), (0, 0)))      # (T, Bp, Ep)
    x = x.reshape(T * Bp, -1)

    if hidden is None:
        h0 = jnp.zeros((L, Bp, Hp), jnp.float32)
        c0 = jnp.zeros((L, Bp, Hp), jnp.float32)
    else:
        h0 = jnp.pad(hidden[0].astype(jnp.float32),
                     ((0, 0), (0, Bp - B), (0, Hp - H)))
        c0 = jnp.pad(hidden[1].astype(jnp.float32),
                     ((0, 0), (0, Bp - B), (0, Hp - H)))

    out_flat, hT, cT = run_fused_decoder(prep, x, h0, c0, Bp, T, Hp, Vp, L)

    # lane-dense kernel output -> (B, T, V) in the wrapper
    log_probs = out_flat.reshape(T, Bp, Vp)[:, :B, :V]
    log_probs = jnp.transpose(log_probs, (1, 0, 2))
    h_n = hT[:, :B, :H]
    c_n = cT[:, :B, :H]
    return log_probs, (h_n, c_n)


# ----------------------------------------------------------------------------
# Pure-JAX reference of the decoder path (for a correctness cross-check)
# ----------------------------------------------------------------------------
def _decoder_reference(params, decoder_input_ids, hidden=None):
    B, T = decoder_input_ids.shape
    H = params["lstm"][0]["whh_t"].shape[0]
    L = len(params["lstm"])
    x = params["ipa_emb"][decoder_input_ids]                       # (B, T, E)
    if hidden is None:
        hs = [jnp.zeros((B, H), jnp.float32) for _ in range(L)]
        cs = [jnp.zeros((B, H), jnp.float32) for _ in range(L)]
    else:
        hs = [hidden[0][l] for l in range(L)]
        cs = [hidden[1][l] for l in range(L)]
    for l, lp in enumerate(params["lstm"]):
        ht, ct, outs = hs[l], cs[l], []
        for t in range(T):
            gates = x[:, t, :] @ lp["wih_t"] + ht @ lp["whh_t"] + lp["b"]
            i = jax.nn.sigmoid(gates[:, :H])
            f = jax.nn.sigmoid(gates[:, H:2 * H])
            g = jnp.tanh(gates[:, 2 * H:3 * H])
            o = jax.nn.sigmoid(gates[:, 3 * H:])
            ct = f * ct + i * g
            ht = o * jnp.tanh(ct)
            outs.append(ht)
        x = jnp.stack(outs, axis=1)
        hs[l], cs[l] = ht, ct
    logits = x @ params["fc_w"] + params["fc_b"]
    return jax.nn.log_softmax(logits, axis=-1), (jnp.stack(hs), jnp.stack(cs))


# ----------------------------------------------------------------------------
if __name__ == "__main__":
    key = jax.random.PRNGKey(0)
    B, S, T = 2, 8, 8
    SRC_VOCAB, IPA_VOCAB = 24, 16
    ENC_HIDDEN, FFN_HIDDEN, LSTM_HIDDEN, NUM_LAYERS = 32, 64, 32, 2

    pkey, dkey = jax.random.split(key)
    params = init_params(pkey, SRC_VOCAB, IPA_VOCAB, S,
                         ENC_HIDDEN, FFN_HIDDEN, LSTM_HIDDEN, NUM_LAYERS)
    prep = prepare_params(params)          # one-time padding, outside the jitted forward

    k1, k2 = jax.random.split(dkey)
    input_ids = jax.random.randint(k1, (B, S), 0, SRC_VOCAB, dtype=jnp.int32)
    attention_mask = jnp.concatenate(
        [jnp.ones((B, 6), jnp.int32), jnp.zeros((B, 2), jnp.int32)], axis=1)
    decoder_input_ids = jax.random.randint(k2, (B, T), 0, IPA_VOCAB, dtype=jnp.int32)

    log_probs, (h_n, c_n) = ipa_predictor_forward(
        prep, input_ids, attention_mask, decoder_input_ids, None)
    jax.block_until_ready((log_probs, h_n, c_n))

    assert log_probs.shape == (B, T, IPA_VOCAB)
    assert h_n.shape == (NUM_LAYERS, B, LSTM_HIDDEN)
    assert c_n.shape == (NUM_LAYERS, B, LSTM_HIDDEN)
    # log-softmax rows must sum (in prob space) to ~1
    assert jnp.allclose(jnp.sum(jnp.exp(log_probs), axis=-1), 1.0, atol=1e-4)

    # cross-check the fused kernel against a pure-JAX reference of the decoder path
    ref_lp, (ref_h, ref_c) = _decoder_reference(params, decoder_input_ids)
    assert jnp.allclose(log_probs, ref_lp, atol=2e-3), \
        float(jnp.max(jnp.abs(log_probs - ref_lp)))
    assert jnp.allclose(h_n, ref_h, atol=2e-3)
    assert jnp.allclose(c_n, ref_c, atol=2e-3)

    print("KERNEL_OK")
</pallas_src>

<mosaic_0001>
module attributes {stable_mosaic.version = 11 : i64} {
  func.func @kernel(%arg0: memref<64x128xf32, #tpu.memory_space<vmem>>, %arg1: memref<128x512xf32, #tpu.memory_space<vmem>>, %arg2: memref<128x512xf32, #tpu.memory_space<vmem>>, %arg3: memref<1x512xf32, #tpu.memory_space<vmem>>, %arg4: memref<128x512xf32, #tpu.memory_space<vmem>>, %arg5: memref<128x512xf32, #tpu.memory_space<vmem>>, %arg6: memref<1x512xf32, #tpu.memory_space<vmem>>, %arg7: memref<2x8x128xf32, #tpu.memory_space<vmem>>, %arg8: memref<2x8x128xf32, #tpu.memory_space<vmem>>, %arg9: memref<128x128xf32, #tpu.memory_space<vmem>>, %arg10: memref<1x128xf32, #tpu.memory_space<vmem>>, %arg11: memref<64x128xf32, #tpu.memory_space<vmem>>, %arg12: memref<2x8x128xf32, #tpu.memory_space<vmem>>, %arg13: memref<2x8x128xf32, #tpu.memory_space<vmem>>, %arg14: memref<64x512xf32, #tpu.memory_space<vmem>>, %arg15: memref<64x128xf32, #tpu.memory_space<vmem>>) attributes {dimension_semantics = [], scalar_prefetch = 0 : i64, scratch_operands = 2 : i64, tpu.core_type = #tpu.core_type<tc>} {
    %c0 = arith.constant 0 : index
    %c0_0 = arith.constant 0 : index
    %0 = vector.load %arg0[%c0, %c0_0] : memref<64x128xf32, #tpu.memory_space<vmem>>, vector<64x128xf32>
    %c0_1 = arith.constant 0 : index
    %c0_2 = arith.constant 0 : index
    %1 = vector.load %arg1[%c0_1, %c0_2] : memref<128x512xf32, #tpu.memory_space<vmem>>, vector<128x512xf32>
    %cst = arith.constant dense<0.000000e+00> : vector<64x512xf32>
    %2 = tpu.matmul %0, %1, %cst {dimension_numbers = #tpu.dot_dimension_numbers<[1], [0], [0], [1], [0, 0, 1, 1], [], []>} : vector<64x128xf32>, vector<128x512xf32>, vector<64x512xf32> -> vector<64x512xf32>
    %c0_3 = arith.constant 0 : index
    %c0_4 = arith.constant 0 : index
    %3 = vector.load %arg3[%c0_3, %c0_4] : memref<1x512xf32, #tpu.memory_space<vmem>>, vector<1x512xf32>
    %4 = vector.broadcast %3 : vector<1x512xf32> to vector<64x512xf32>
    %5 = arith.addf %2, %4 : vector<64x512xf32>
    %c0_5 = arith.constant 0 : index
    %c0_6 = arith.constant 0 : index
    %6 = vector.load %arg14[%c0_5, %c0_6] : memref<64x512xf32, #tpu.memory_space<vmem>>, vector<64x512xf32>
    tpu.vector_store %arg14[%c0_5, %c0_6], %5 {strides = array<i32>} : memref<64x512xf32, #tpu.memory_space<vmem>>, vector<64x512xf32>,
    %c0_7 = arith.constant 0 : index
    %c0_8 = arith.constant 0 : index
    %7 = vector.load %arg2[%c0_7, %c0_8] : memref<128x512xf32, #tpu.memory_space<vmem>>, vector<128x512xf32>
    %c0_9 = arith.constant 0 : index
    %c0_10 = arith.constant 0 : index
    %c0_11 = arith.constant 0 : index
    %8 = vector.load %arg7[%c0_9, %c0_10, %c0_11] : memref<2x8x128xf32, #tpu.memory_space<vmem>>, vector<1x8x128xf32>
    %9 = vector.shape_cast %8 : vector<1x8x128xf32> to vector<8x128xf32>
    %c0_12 = arith.constant 0 : index
    %c0_13 = arith.constant 0 : index
    %c0_14 = arith.constant 0 : index
    %10 = vector.load %arg8[%c0_12, %c0_13, %c0_14] : memref<2x8x128xf32, #tpu.memory_space<vmem>>, vector<1x8x128xf32>
    %11 = vector.shape_cast %10 : vector<1x8x128xf32> to vector<8x128xf32>
    %c0_i32 = arith.constant 0 : i32
    %c8_i32 = arith.constant 8 : i32
    %12 = arith.muli %c0_i32, %c8_i32 : i32
    %13 = tpu.assume_multiple %12, 8 : i32
    %14 = arith.index_cast %13 : i32 to index
    %c0_15 = arith.constant 0 : index
    %15 = vector.load %arg14[%14, %c0_15] : memref<64x512xf32, #tpu.memory_space<vmem>>, vector<8x512xf32>
    %cst_16 = arith.constant dense<0.000000e+00> : vector<8x512xf32>
    %16 = tpu.matmul %9, %7, %cst_16 {dimension_numbers = #tpu.dot_dimension_numbers<[1], [0], [0], [1], [0, 0, 1, 1], [], []>} : vector<8x128xf32>, vector<128x512xf32>, vector<8x512xf32> -> vector<8x512xf32>
    %17 = arith.addf %15, %16 : vector<8x512xf32>
    %18 = vector.extract_strided_slice %17 {offsets = [0, 0], sizes = [8, 128], strides = [1, 1]} : vector<8x512xf32> to vector<8x128xf32>
    %19 = arith.negf %18 : vector<8x128xf32>
    %20 = math.exp %19 : vector<8x128xf32>
    %cst_17 = arith.constant 1.000000e+00 : f32
    %21 = vector.broadcast %cst_17 : f32 to vector<8x128xf32>
    %22 = arith.addf %21, %20 : vector<8x128xf32>
    %23 = arith.divf %21, %22 : vector<8x128xf32>
    %24 = vector.extract_strided_slice %17 {offsets = [0, 128], sizes = [8, 128], strides = [1, 1]} : vector<8x512xf32> to vector<8x128xf32>
    %25 = arith.negf %24 : vector<8x128xf32>
    %26 = math.exp %25 : vector<8x128xf32>
    %cst_18 = arith.constant 1.000000e+00 : f32
    %27 = vector.broadcast %cst_18 : f32 to vector<8x128xf32>
    %28 = arith.addf %27, %26 : vector<8x128xf32>
    %29 = arith.divf %27, %28 : vector<8x128xf32>
    %30 = vector.extract_strided_slice %17 {offsets = [0, 256], sizes = [8, 128], strides = [1, 1]} : vector<8x512xf32> to vector<8x128xf32>
    %31 = math.tanh %30 : vector<8x128xf32>
    %32 = vector.extract_strided_slice %17 {offsets = [0, 384], sizes = [8, 128], strides = [1, 1]} : vector<8x512xf32> to vector<8x128xf32>
    %33 = arith.negf %32 : vector<8x128xf32>
    %34 = math.exp %33 : vector<8x128xf32>
    %cst_19 = arith.constant 1.000000e+00 : f32
    %35 = vector.broadcast %cst_19 : f32 to vector<8x128xf32>
    %36 = arith.addf %35, %34 : vector<8x128xf32>
    %37 = arith.divf %35, %36 : vector<8x128xf32>
    %38 = arith.mulf %29, %11 : vector<8x128xf32>
    %39 = arith.mulf %23, %31 : vector<8x128xf32>
    %40 = arith.addf %38, %39 : vector<8x128xf32>
    %41 = math.tanh %40 : vector<8x128xf32>
    %42 = arith.mulf %37, %41 : vector<8x128xf32>
    %43 = arith.index_cast %13 : i32 to index
    %c0_20 = arith.constant 0 : index
    %44 = vector.load %arg15[%43, %c0_20] : memref<64x128xf32, #tpu.memory_space<vmem>>, vector<8x128xf32>
    tpu.vector_store %arg15[%43, %c0_20], %42 {strides = array<i32>} : memref<64x128xf32, #tpu.memory_space<vmem>>, vector<8x128xf32>,
    %c1_i32 = arith.constant 1 : i32
    %c8_i32_21 = arith.constant 8 : i32
    %45 = arith.muli %c1_i32, %c8_i32_21 : i32
    %46 = tpu.assume_multiple %45, 8 : i32
    %47 = arith.index_cast %46 : i32 to index
    %c0_22 = arith.constant 0 : index
    %48 = vector.load %arg14[%47, %c0_22] : memref<64x512xf32, #tpu.memory_space<vmem>>, vector<8x512xf32>
    %cst_23 = arith.constant dense<0.000000e+00> : vector<8x512xf32>
    %49 = tpu.matmul %42, %7, %cst_23 {dimension_numbers = #tpu.dot_dimension_numbers<[1], [0], [0], [1], [0, 0, 1, 1], [], []>} : vector<8x128xf32>, vector<128x512xf32>, vector<8x512xf32> -> vector<8x512xf32>
    %50 = arith.addf %48, %49 : vector<8x512xf32>
    %51 = vector.extract_strided_slice %50 {offsets = [0, 0], sizes = [8, 128], strides = [1, 1]} : vector<8x512xf32> to vector<8x128xf32>
    %52 = arith.negf %51 : vector<8x128xf32>
    %53 = math.exp %52 : vector<8x128xf32>
    %cst_24 = arith.constant 1.000000e+00 : f32
    %54 = vector.broadcast %cst_24 : f32 to vector<8x128xf32>
    %55 = arith.addf %54, %53 : vector<8x128xf32>
    %56 = arith.divf %54, %55 : vector<8x128xf32>
    %57 = vector.extract_strided_slice %50 {offsets = [0, 128], sizes = [8, 128], strides = [1, 1]} : vector<8x512xf32> to vector<8x128xf32>
    %58 = arith.negf %57 : vector<8x128xf32>
    %59 = math.exp %58 : vector<8x128xf32>
    %cst_25 = arith.constant 1.000000e+00 : f32
    %60 = vector.broadcast %cst_25 : f32 to vector<8x128xf32>
    %61 = arith.addf %60, %59 : vector<8x128xf32>
    %62 = arith.divf %60, %61 : vector<8x128xf32>
    %63 = vector.extract_strided_slice %50 {offsets = [0, 256], sizes = [8, 128], strides = [1, 1]} : vector<8x512xf32> to vector<8x128xf32>
    %64 = math.tanh %63 : vector<8x128xf32>
    %65 = vector.extract_strided_slice %50 {offsets = [0, 384], sizes = [8, 128], strides = [1, 1]} : vector<8x512xf32> to vector<8x128xf32>
    %66 = arith.negf %65 : vector<8x128xf32>
    %67 = math.exp %66 : vector<8x128xf32>
    %cst_26 = arith.constant 1.000000e+00 : f32
    %68 = vector.broadcast %cst_26 : f32 to vector<8x128xf32>
    %69 = arith.addf %68, %67 : vector<8x128xf32>
    %70 = arith.divf %68, %69 : vector<8x128xf32>
    %71 = arith.mulf %62, %40 : vector<8x128xf32>
    %72 = arith.mulf %56, %64 : vector<8x128xf32>
    %73 = arith.addf %71, %72 : vector<8x128xf32>
    %74 = math.tanh %73 : vector<8x128xf32>
    %75 = arith.mulf %70, %74 : vector<8x128xf32>
    %76 = arith.index_cast %46 : i32 to index
    %c0_27 = arith.constant 0 : index
    %77 = vector.load %arg15[%76, %c0_27] : memref<64x128xf32, #tpu.memory_space<vmem>>, vector<8x128xf32>
    tpu.vector_store %arg15[%76, %c0_27], %75 {strides = array<i32>} : memref<64x128xf32, #tpu.memory_space<vmem>>, vector<8x128xf32>,
    %c2_i32 = arith.constant 2 : i32
    %c8_i32_28 = arith.constant 8 : i32
    %78 = arith.muli %c2_i32, %c8_i32_28 : i32
    %79 = tpu.assume_multiple %78, 8 : i32
    %80 = arith.index_cast %79 : i32 to index
    %c0_29 = arith.constant 0 : index
    %81 = vector.load %arg14[%80, %c0_29] : memref<64x512xf32, #tpu.memory_space<vmem>>, vector<8x512xf32>
    %cst_30 = arith.constant dense<0.000000e+00> : vector<8x512xf32>
    %82 = tpu.matmul %75, %7, %cst_30 {dimension_numbers = #tpu.dot_dimension_numbers<[1], [0], [0], [1], [0, 0, 1, 1], [], []>} : vector<8x128xf32>, vector<128x512xf32>, vector<8x512xf32> -> vector<8x512xf32>
    %83 = arith.addf %81, %82 : vector<8x512xf32>
    %84 = vector.extract_strided_slice %83 {offsets = [0, 0], sizes = [8, 128], strides = [1, 1]} : vector<8x512xf32> to vector<8x128xf32>
    %85 = arith.negf %84 : vector<8x128xf32>
    %86 = math.exp %85 : vector<8x128xf32>
    %cst_31 = arith.constant 1.000000e+00 : f32
    %87 = vector.broadcast %cst_31 : f32 to vector<8x128xf32>
    %88 = arith.addf %87, %86 : vector<8x128xf32>
    %89 = arith.divf %87, %88 : vector<8x128xf32>
    %90 = vector.extract_strided_slice %83 {offsets = [0, 128], sizes = [8, 128], strides = [1, 1]} : vector<8x512xf32> to vector<8x128xf32>
    %91 = arith.negf %90 : vector<8x128xf32>
    %92 = math.exp %91 : vector<8x128xf32>
    %cst_32 = arith.constant 1.000000e+00 : f32
    %93 = vector.broadcast %cst_32 : f32 to vector<8x128xf32>
    %94 = arith.addf %93, %92 : vector<8x128xf32>
    %95 = arith.divf %93, %94 : vector<8x128xf32>
    %96 = vector.extract_strided_slice %83 {offsets = [0, 256], sizes = [8, 128], strides = [1, 1]} : vector<8x512xf32> to vector<8x128xf32>
    %97 = math.tanh %96 : vector<8x128xf32>
    %98 = vector.extract_strided_slice %83 {offsets = [0, 384], sizes = [8, 128], strides = [1, 1]} : vector<8x512xf32> to vector<8x128xf32>
    %99 = arith.negf %98 : vector<8x128xf32>
    %100 = math.exp %99 : vector<8x128xf32>
    %cst_33 = arith.constant 1.000000e+00 : f32
    %101 = vector.broadcast %cst_33 : f32 to vector<8x128xf32>
    %102 = arith.addf %101, %100 : vector<8x128xf32>
    %103 = arith.divf %101, %102 : vector<8x128xf32>
    %104 = arith.mulf %95, %73 : vector<8x128xf32>
    %105 = arith.mulf %89, %97 : vector<8x128xf32>
    %106 = arith.addf %104, %105 : vector<8x128xf32>
    %107 = math.tanh %106 : vector<8x128xf32>
    %108 = arith.mulf %103, %107 : vector<8x128xf32>
    %109 = arith.index_cast %79 : i32 to index
    %c0_34 = arith.constant 0 : index
    %110 = vector.load %arg15[%109, %c0_34] : memref<64x128xf32, #tpu.memory_space<vmem>>, vector<8x128xf32>
    tpu.vector_store %arg15[%109, %c0_34], %108 {strides = array<i32>} : memref<64x128xf32, #tpu.memory_space<vmem>>, vector<8x128xf32>,
    %c3_i32 = arith.constant 3 : i32
    %c8_i32_35 = arith.constant 8 : i32
    %111 = arith.muli %c3_i32, %c8_i32_35 : i32
    %112 = tpu.assume_multiple %111, 8 : i32
    %113 = arith.index_cast %112 : i32 to index
    %c0_36 = arith.constant 0 : index
    %114 = vector.load %arg14[%113, %c0_36] : memref<64x512xf32, #tpu.memory_space<vmem>>, vector<8x512xf32>
    %cst_37 = arith.constant dense<0.000000e+00> : vector<8x512xf32>
    %115 = tpu.matmul %108, %7, %cst_37 {dimension_numbers = #tpu.dot_dimension_numbers<[1], [0], [0], [1], [0, 0, 1, 1], [], []>} : vector<8x128xf32>, vector<128x512xf32>, vector<8x512xf32> -> vector<8x512xf32>
    %116 = arith.addf %114, %115 : vector<8x512xf32>
    %117 = vector.extract_strided_slice %116 {offsets = [0, 0], sizes = [8, 128], strides = [1, 1]} : vector<8x512xf32> to vector<8x128xf32>
    %118 = arith.negf %117 : vector<8x128xf32>
    %119 = math.exp %118 : vector<8x128xf32>
    %cst_38 = arith.constant 1.000000e+00 : f32
    %120 = vector.broadcast %cst_38 : f32 to vector<8x128xf32>
    %121 = arith.addf %120, %119 : vector<8x128xf32>
    %122 = arith.divf %120, %121 : vector<8x128xf32>
    %123 = vector.extract_strided_slice %116 {offsets = [0, 128], sizes = [8, 128], strides = [1, 1]} : vector<8x512xf32> to vector<8x128xf32>
    %124 = arith.negf %123 : vector<8x128xf32>
    %125 = math.exp %124 : vector<8x128xf32>
    %cst_39 = arith.constant 1.000000e+00 : f32
    %126 = vector.broadcast %cst_39 : f32 to vector<8x128xf32>
    %127 = arith.addf %126, %125 : vector<8x128xf32>
    %128 = arith.divf %126, %127 : vector<8x128xf32>
    %129 = vector.extract_strided_slice %116 {offsets = [0, 256], sizes = [8, 128], strides = [1, 1]} : vector<8x512xf32> to vector<8x128xf32>
    %130 = math.tanh %129 : vector<8x128xf32>
    %131 = vector.extract_strided_slice %116 {offsets = [0, 384], sizes = [8, 128], strides = [1, 1]} : vector<8x512xf32> to vector<8x128xf32>
    %132 = arith.negf %131 : vector<8x128xf32>
    %133 = math.exp %132 : vector<8x128xf32>
    %cst_40 = arith.constant 1.000000e+00 : f32
    %134 = vector.broadcast %cst_40 : f32 to vector<8x128xf32>
    %135 = arith.addf %134, %133 : vector<8x128xf32>
    %136 = arith.divf %134, %135 : vector<8x128xf32>
    %137 = arith.mulf %128, %106 : vector<8x128xf32>
    %138 = arith.mulf %122, %130 : vector<8x128xf32>
    %139 = arith.addf %137, %138 : vector<8x128xf32>
    %140 = math.tanh %139 : vector<8x128xf32>
    %141 = arith.mulf %136, %140 : vector<8x128xf32>
    %142 = arith.index_cast %112 : i32 to index
    %c0_41 = arith.constant 0 : index
    %143 = vector.load %arg15[%142, %c0_41] : memref<64x128xf32, #tpu.memory_space<vmem>>, vector<8x128xf32>
    tpu.vector_store %arg15[%142, %c0_41], %141 {strides = array<i32>} : memref<64x128xf32, #tpu.memory_space<vmem>>, vector<8x128xf32>,
    %c4_i32 = arith.constant 4 : i32
    %c8_i32_42 = arith.constant 8 : i32
    %144 = arith.muli %c4_i32, %c8_i32_42 : i32
    %145 = tpu.assume_multiple %144, 8 : i32
    %146 = arith.index_cast %145 : i32 to index
    %c0_43 = arith.constant 0 : index
    %147 = vector.load %arg14[%146, %c0_43] : memref<64x512xf32, #tpu.memory_space<vmem>>, vector<8x512xf32>
    %cst_44 = arith.constant dense<0.000000e+00> : vector<8x512xf32>
    %148 = tpu.matmul %141, %7, %cst_44 {dimension_numbers = #tpu.dot_dimension_numbers<[1], [0], [0], [1], [0, 0, 1, 1], [], []>} : vector<8x128xf32>, vector<128x512xf32>, vector<8x512xf32> -> vector<8x512xf32>
    %149 = arith.addf %147, %148 : vector<8x512xf32>
    %150 = vector.extract_strided_slice %149 {offsets = [0, 0], sizes = [8, 128], strides = [1, 1]} : vector<8x512xf32> to vector<8x128xf32>
    %151 = arith.negf %150 : vector<8x128xf32>
    %152 = math.exp %151 : vector<8x128xf32>
    %cst_45 = arith.constant 1.000000e+00 : f32
    %153 = vector.broadcast %cst_45 : f32 to vector<8x128xf32>
    %154 = arith.addf %153, %152 : vector<8x128xf32>
    %155 = arith.divf %153, %154 : vector<8x128xf32>
    %156 = vector.extract_strided_slice %149 {offsets = [0, 128], sizes = [8, 128], strides = [1, 1]} : vector<8x512xf32> to vector<8x128xf32>
    %157 = arith.negf %156 : vector<8x128xf32>
    %158 = math.exp %157 : vector<8x128xf32>
    %cst_46 = arith.constant 1.000000e+00 : f32
    %159 = vector.broadcast %cst_46 : f32 to vector<8x128xf32>
    %160 = arith.addf %159, %158 : vector<8x128xf32>
    %161 = arith.divf %159, %160 : vector<8x128xf32>
    %162 = vector.extract_strided_slice %149 {offsets = [0, 256], sizes = [8, 128], strides = [1, 1]} : vector<8x512xf32> to vector<8x128xf32>
    %163 = math.tanh %162 : vector<8x128xf32>
    %164 = vector.extract_strided_slice %149 {offsets = [0, 384], sizes = [8, 128], strides = [1, 1]} : vector<8x512xf32> to vector<8x128xf32>
    %165 = arith.negf %164 : vector<8x128xf32>
    %166 = math.exp %165 : vector<8x128xf32>
    %cst_47 = arith.constant 1.000000e+00 : f32
    %167 = vector.broadcast %cst_47 : f32 to vector<8x128xf32>
    %168 = arith.addf %167, %166 : vector<8x128xf32>
    %169 = arith.divf %167, %168 : vector<8x128xf32>
    %170 = arith.mulf %161, %139 : vector<8x128xf32>
    %171 = arith.mulf %155, %163 : vector<8x128xf32>
    %172 = arith.addf %170, %171 : vector<8x128xf32>
    %173 = math.tanh %172 : vector<8x128xf32>
    %174 = arith.mulf %169, %173 : vector<8x128xf32>
    %175 = arith.index_cast %145 : i32 to index
    %c0_48 = arith.constant 0 : index
    %176 = vector.load %arg15[%175, %c0_48] : memref<64x128xf32, #tpu.memory_space<vmem>>, vector<8x128xf32>
    tpu.vector_store %arg15[%175, %c0_48], %174 {strides = array<i32>} : memref<64x128xf32, #tpu.memory_space<vmem>>, vector<8x128xf32>,
    %c5_i32 = arith.constant 5 : i32
    %c8_i32_49 = arith.constant 8 : i32
    %177 = arith.muli %c5_i32, %c8_i32_49 : i32
    %178 = tpu.assume_multiple %177, 8 : i32
    %179 = arith.index_cast %178 : i32 to index
    %c0_50 = arith.constant 0 : index
    %180 = vector.load %arg14[%179, %c0_50] : memref<64x512xf32, #tpu.memory_space<vmem>>, vector<8x512xf32>
    %cst_51 = arith.constant dense<0.000000e+00> : vector<8x512xf32>
    %181 = tpu.matmul %174, %7, %cst_51 {dimension_numbers = #tpu.dot_dimension_numbers<[1], [0], [0], [1], [0, 0, 1, 1], [], []>} : vector<8x128xf32>, vector<128x512xf32>, vector<8x512xf32> -> vector<8x512xf32>
    %182 = arith.addf %180, %181 : vector<8x512xf32>
    %183 = vector.extract_strided_slice %182 {offsets = [0, 0], sizes = [8, 128], strides = [1, 1]} : vector<8x512xf32> to vector<8x128xf32>
    %184 = arith.negf %183 : vector<8x128xf32>
    %185 = math.exp %184 : vector<8x128xf32>
    %cst_52 = arith.constant 1.000000e+00 : f32
    %186 = vector.broadcast %cst_52 : f32 to vector<8x128xf32>
    %187 = arith.addf %186, %185 : vector<8x128xf32>
    %188 = arith.divf %186, %187 : vector<8x128xf32>
    %189 = vector.extract_strided_slice %182 {offsets = [0, 128], sizes = [8, 128], strides = [1, 1]} : vector<8x512xf32> to vector<8x128xf32>
    %190 = arith.negf %189 : vector<8x128xf32>
    %191 = math.exp %190 : vector<8x128xf32>
    %cst_53 = arith.constant 1.000000e+00 : f32
    %192 = vector.broadcast %cst_53 : f32 to vector<8x128xf32>
    %193 = arith.addf %192, %191 : vector<8x128xf32>
    %194 = arith.divf %192, %193 : vector<8x128xf32>
    %195 = vector.extract_strided_slice %182 {offsets = [0, 256], sizes = [8, 128], strides = [1, 1]} : vector<8x512xf32> to vector<8x128xf32>
    %196 = math.tanh %195 : vector<8x128xf32>
    %197 = vector.extract_strided_slice %182 {offsets = [0, 384], sizes = [8, 128], strides = [1, 1]} : vector<8x512xf32> to vector<8x128xf32>
    %198 = arith.negf %197 : vector<8x128xf32>
    %199 = math.exp %198 : vector<8x128xf32>
    %cst_54 = arith.constant 1.000000e+00 : f32
    %200 = vector.broadcast %cst_54 : f32 to vector<8x128xf32>
    %201 = arith.addf %200, %199 : vector<8x128xf32>
    %202 = arith.divf %200, %201 : vector<8x128xf32>
    %203 = arith.mulf %194, %172 : vector<8x128xf32>
    %204 = arith.mulf %188, %196 : vector<8x128xf32>
    %205 = arith.addf %203, %204 : vector<8x128xf32>
    %206 = math.tanh %205 : vector<8x128xf32>
    %207 = arith.mulf %202, %206 : vector<8x128xf32>
    %208 = arith.index_cast %178 : i32 to index
    %c0_55 = arith.constant 0 : index
    %209 = vector.load %arg15[%208, %c0_55] : memref<64x128xf32, #tpu.memory_space<vmem>>, vector<8x128xf32>
    tpu.vector_store %arg15[%208, %c0_55], %207 {strides = array<i32>} : memref<64x128xf32, #tpu.memory_space<vmem>>, vector<8x128xf32>,
    %c6_i32 = arith.constant 6 : i32
    %c8_i32_56 = arith.constant 8 : i32
    %210 = arith.muli %c6_i32, %c8_i32_56 : i32
    %211 = tpu.assume_multiple %210, 8 : i32
    %212 = arith.index_cast %211 : i32 to index
    %c0_57 = arith.constant 0 : index
    %213 = vector.load %arg14[%212, %c0_57] : memref<64x512xf32, #tpu.memory_space<vmem>>, vector<8x512xf32>
    %cst_58 = arith.constant dense<0.000000e+00> : vector<8x512xf32>
    %214 = tpu.matmul %207, %7, %cst_58 {dimension_numbers = #tpu.dot_dimension_numbers<[1], [0], [0], [1], [0, 0, 1, 1], [], []>} : vector<8x128xf32>, vector<128x512xf32>, vector<8x512xf32> -> vector<8x512xf32>
    %215 = arith.addf %213, %214 : vector<8x512xf32>
    %216 = vector.extract_strided_slice %215 {offsets = [0, 0], sizes = [8, 128], strides = [1, 1]} : vector<8x512xf32> to vector<8x128xf32>
    %217 = arith.negf %216 : vector<8x128xf32>
    %218 = math.exp %217 : vector<8x128xf32>
    %cst_59 = arith.constant 1.000000e+00 : f32
    %219 = vector.broadcast %cst_59 : f32 to vector<8x128xf32>
    %220 = arith.addf %219, %218 : vector<8x128xf32>
    %221 = arith.divf %219, %220 : vector<8x128xf32>
    %222 = vector.extract_strided_slice %215 {offsets = [0, 128], sizes = [8, 128], strides = [1, 1]} : vector<8x512xf32> to vector<8x128xf32>
    %223 = arith.negf %222 : vector<8x128xf32>
    %224 = math.exp %223 : vector<8x128xf32>
    %cst_60 = arith.constant 1.000000e+00 : f32
    %225 = vector.broadcast %cst_60 : f32 to vector<8x128xf32>
    %226 = arith.addf %225, %224 : vector<8x128xf32>
    %227 = arith.divf %225, %226 : vector<8x128xf32>
    %228 = vector.extract_strided_slice %215 {offsets = [0, 256], sizes = [8, 128], strides = [1, 1]} : vector<8x512xf32> to vector<8x128xf32>
    %229 = math.tanh %228 : vector<8x128xf32>
    %230 = vector.extract_strided_slice %215 {offsets = [0, 384], sizes = [8, 128], strides = [1, 1]} : vector<8x512xf32> to vector<8x128xf32>
    %231 = arith.negf %230 : vector<8x128xf32>
    %232 = math.exp %231 : vector<8x128xf32>
    %cst_61 = arith.constant 1.000000e+00 : f32
    %233 = vector.broadcast %cst_61 : f32 to vector<8x128xf32>
    %234 = arith.addf %233, %232 : vector<8x128xf32>
    %235 = arith.divf %233, %234 : vector<8x128xf32>
    %236 = arith.mulf %227, %205 : vector<8x128xf32>
    %237 = arith.mulf %221, %229 : vector<8x128xf32>
    %238 = arith.addf %236, %237 : vector<8x128xf32>
    %239 = math.tanh %238 : vector<8x128xf32>
    %240 = arith.mulf %235, %239 : vector<8x128xf32>
    %241 = arith.index_cast %211 : i32 to index
    %c0_62 = arith.constant 0 : index
    %242 = vector.load %arg15[%241, %c0_62] : memref<64x128xf32, #tpu.memory_space<vmem>>, vector<8x128xf32>
    tpu.vector_store %arg15[%241, %c0_62], %240 {strides = array<i32>} : memref<64x128xf32, #tpu.memory_space<vmem>>, vector<8x128xf32>,
    %c7_i32 = arith.constant 7 : i32
    %c8_i32_63 = arith.constant 8 : i32
    %243 = arith.muli %c7_i32, %c8_i32_63 : i32
    %244 = tpu.assume_multiple %243, 8 : i32
    %245 = arith.index_cast %244 : i32 to index
    %c0_64 = arith.constant 0 : index
    %246 = vector.load %arg14[%245, %c0_64] : memref<64x512xf32, #tpu.memory_space<vmem>>, vector<8x512xf32>
    %cst_65 = arith.constant dense<0.000000e+00> : vector<8x512xf32>
    %247 = tpu.matmul %240, %7, %cst_65 {dimension_numbers = #tpu.dot_dimension_numbers<[1], [0], [0], [1], [0, 0, 1, 1], [], []>} : vector<8x128xf32>, vector<128x512xf32>, vector<8x512xf32> -> vector<8x512xf32>
    %248 = arith.addf %246, %247 : vector<8x512xf32>
    %249 = vector.extract_strided_slice %248 {offsets = [0, 0], sizes = [8, 128], strides = [1, 1]} : vector<8x512xf32> to vector<8x128xf32>
    %250 = arith.negf %249 : vector<8x128xf32>
    %251 = math.exp %250 : vector<8x128xf32>
    %cst_66 = arith.constant 1.000000e+00 : f32
    %252 = vector.broadcast %cst_66 : f32 to vector<8x128xf32>
    %253 = arith.addf %252, %251 : vector<8x128xf32>
    %254 = arith.divf %252, %253 : vector<8x128xf32>
    %255 = vector.extract_strided_slice %248 {offsets = [0, 128], sizes = [8, 128], strides = [1, 1]} : vector<8x512xf32> to vector<8x128xf32>
    %256 = arith.negf %255 : vector<8x128xf32>
    %257 = math.exp %256 : vector<8x128xf32>
    %cst_67 = arith.constant 1.000000e+00 : f32
    %258 = vector.broadcast %cst_67 : f32 to vector<8x128xf32>
    %259 = arith.addf %258, %257 : vector<8x128xf32>
    %260 = arith.divf %258, %259 : vector<8x128xf32>
    %261 = vector.extract_strided_slice %248 {offsets = [0, 256], sizes = [8, 128], strides = [1, 1]} : vector<8x512xf32> to vector<8x128xf32>
    %262 = math.tanh %261 : vector<8x128xf32>
    %263 = vector.extract_strided_slice %248 {offsets = [0, 384], sizes = [8, 128], strides = [1, 1]} : vector<8x512xf32> to vector<8x128xf32>
    %264 = arith.negf %263 : vector<8x128xf32>
    %265 = math.exp %264 : vector<8x128xf32>
    %cst_68 = arith.constant 1.000000e+00 : f32
    %266 = vector.broadcast %cst_68 : f32 to vector<8x128xf32>
    %267 = arith.addf %266, %265 : vector<8x128xf32>
    %268 = arith.divf %266, %267 : vector<8x128xf32>
    %269 = arith.mulf %260, %238 : vector<8x128xf32>
    %270 = arith.mulf %254, %262 : vector<8x128xf32>
    %271 = arith.addf %269, %270 : vector<8x128xf32>
    %272 = math.tanh %271 : vector<8x128xf32>
    %273 = arith.mulf %268, %272 : vector<8x128xf32>
    %274 = arith.index_cast %244 : i32 to index
    %c0_69 = arith.constant 0 : index
    %275 = vector.load %arg15[%274, %c0_69] : memref<64x128xf32, #tpu.memory_space<vmem>>, vector<8x128xf32>
    tpu.vector_store %arg15[%274, %c0_69], %273 {strides = array<i32>} : memref<64x128xf32, #tpu.memory_space<vmem>>, vector<8x128xf32>,
    %c8_i32_70 = arith.constant 8 : i32
    %c0_71 = arith.constant 0 : index
    %c0_72 = arith.constant 0 : index
    %c0_73 = arith.constant 0 : index
    %276 = vector.load %arg12[%c0_71, %c0_72, %c0_73] : memref<2x8x128xf32, #tpu.memory_space<vmem>>, vector<1x8x128xf32>
    %277 = vector.shape_cast %276 : vector<1x8x128xf32> to vector<8x128xf32>
    %278 = vector.shape_cast %273 : vector<8x128xf32> to vector<1x8x128xf32>
    tpu.vector_store %arg12[%c0_71, %c0_72, %c0_73], %278 {strides = array<i32>} : memref<2x8x128xf32, #tpu.memory_space<vmem>>, vector<1x8x128xf32>,
    %c0_74 = arith.constant 0 : index
    %c0_75 = arith.constant 0 : index
    %c0_76 = arith.constant 0 : index
    %279 = vector.load %arg13[%c0_74, %c0_75, %c0_76] : memref<2x8x128xf32, #tpu.memory_space<vmem>>, vector<1x8x128xf32>
    %280 = vector.shape_cast %279 : vector<1x8x128xf32> to vector<8x128xf32>
    %281 = vector.shape_cast %271 : vector<8x128xf32> to vector<1x8x128xf32>
    tpu.vector_store %arg13[%c0_74, %c0_75, %c0_76], %281 {strides = array<i32>} : memref<2x8x128xf32, #tpu.memory_space<vmem>>, vector<1x8x128xf32>,
    %c0_77 = arith.constant 0 : index
    %c0_78 = arith.constant 0 : index
    %282 = vector.load %arg15[%c0_77, %c0_78] : memref<64x128xf32, #tpu.memory_space<vmem>>, vector<64x128xf32>
    %c0_79 = arith.constant 0 : index
    %c0_80 = arith.constant 0 : index
    %283 = vector.load %arg4[%c0_79, %c0_80] : memref<128x512xf32, #tpu.memory_space<vmem>>, vector<128x512xf32>
    %cst_81 = arith.constant dense<0.000000e+00> : vector<64x512xf32>
    %284 = tpu.matmul %282, %283, %cst_81 {dimension_numbers = #tpu.dot_dimension_numbers<[1], [0], [0], [1], [0, 0, 1, 1], [], []>} : vector<64x128xf32>, vector<128x512xf32>, vector<64x512xf32> -> vector<64x512xf32>
    %c0_82 = arith.constant 0 : index
    %c0_83 = arith.constant 0 : index
    %285 = vector.load %arg6[%c0_82, %c0_83] : memref<1x512xf32, #tpu.memory_space<vmem>>, vector<1x512xf32>
    %286 = vector.broadcast %285 : vector<1x512xf32> to vector<64x512xf32>
    %287 = arith.addf %284, %286 : vector<64x512xf32>
    %c0_84 = arith.constant 0 : index
    %c0_85 = arith.constant 0 : index
    %288 = vector.load %arg14[%c0_84, %c0_85] : memref<64x512xf32, #tpu.memory_space<vmem>>, vector<64x512xf32>
    tpu.vector_store %arg14[%c0_84, %c0_85], %287 {strides = array<i32>} : memref<64x512xf32, #tpu.memory_space<vmem>>, vector<64x512xf32>,
    %c0_86 = arith.constant 0 : index
    %c0_87 = arith.constant 0 : index
    %289 = vector.load %arg5[%c0_86, %c0_87] : memref<128x512xf32, #tpu.memory_space<vmem>>, vector<128x512xf32>
    %c1 = arith.constant 1 : index
    %c0_88 = arith.constant 0 : index
    %c0_89 = arith.constant 0 : index
    %290 = vector.load %arg7[%c1, %c0_88, %c0_89] : memref<2x8x128xf32, #tpu.memory_space<vmem>>, vector<1x8x128xf32>
    %291 = vector.shape_cast %290 : vector<1x8x128xf32> to vector<8x128xf32>
    %c1_90 = arith.constant 1 : index
    %c0_91 = arith.constant 0 : index
    %c0_92 = arith.constant 0 : index
    %292 = vector.load %arg8[%c1_90, %c0_91, %c0_92] : memref<2x8x128xf32, #tpu.memory_space<vmem>>, vector<1x8x128xf32>
    %293 = vector.shape_cast %292 : vector<1x8x128xf32> to vector<8x128xf32>
    %c0_i32_93 = arith.constant 0 : i32
    %c8_i32_94 = arith.constant 8 : i32
    %294 = arith.muli %c0_i32_93, %c8_i32_94 : i32
    %295 = tpu.assume_multiple %294, 8 : i32
    %296 = arith.index_cast %295 : i32 to index
    %c0_95 = arith.constant 0 : index
    %297 = vector.load %arg14[%296, %c0_95] : memref<64x512xf32, #tpu.memory_space<vmem>>, vector<8x512xf32>
    %cst_96 = arith.constant dense<0.000000e+00> : vector<8x512xf32>
    %298 = tpu.matmul %291, %289, %cst_96 {dimension_numbers = #tpu.dot_dimension_numbers<[1], [0], [0], [1], [0, 0, 1, 1], [], []>} : vector<8x128xf32>, vector<128x512xf32>, vector<8x512xf32> -> vector<8x512xf32>
    %299 = arith.addf %297, %298 : vector<8x512xf32>
    %300 = vector.extract_strided_slice %299 {offsets = [0, 0], sizes = [8, 128], strides = [1, 1]} : vector<8x512xf32> to vector<8x128xf32>
    %301 = arith.negf %300 : vector<8x128xf32>
    %302 = math.exp %301 : vector<8x128xf32>
    %cst_97 = arith.constant 1.000000e+00 : f32
    %303 = vector.broadcast %cst_97 : f32 to vector<8x128xf32>
    %304 = arith.addf %303, %302 : vector<8x128xf32>
    %305 = arith.divf %303, %304 : vector<8x128xf32>
    %306 = vector.extract_strided_slice %299 {offsets = [0, 128], sizes = [8, 128], strides = [1, 1]} : vector<8x512xf32> to vector<8x128xf32>
    %307 = arith.negf %306 : vector<8x128xf32>
    %308 = math.exp %307 : vector<8x128xf32>
    %cst_98 = arith.constant 1.000000e+00 : f32
    %309 = vector.broadcast %cst_98 : f32 to vector<8x128xf32>
    %310 = arith.addf %309, %308 : vector<8x128xf32>
    %311 = arith.divf %309, %310 : vector<8x128xf32>
    %312 = vector.extract_strided_slice %299 {offsets = [0, 256], sizes = [8, 128], strides = [1, 1]} : vector<8x512xf32> to vector<8x128xf32>
    %313 = math.tanh %312 : vector<8x128xf32>
    %314 = vector.extract_strided_slice %299 {offsets = [0, 384], sizes = [8, 128], strides = [1, 1]} : vector<8x512xf32> to vector<8x128xf32>
    %315 = arith.negf %314 : vector<8x128xf32>
    %316 = math.exp %315 : vector<8x128xf32>
    %cst_99 = arith.constant 1.000000e+00 : f32
    %317 = vector.broadcast %cst_99 : f32 to vector<8x128xf32>
    %318 = arith.addf %317, %316 : vector<8x128xf32>
    %319 = arith.divf %317, %318 : vector<8x128xf32>
    %320 = arith.mulf %311, %293 : vector<8x128xf32>
    %321 = arith.mulf %305, %313 : vector<8x128xf32>
    %322 = arith.addf %320, %321 : vector<8x128xf32>
    %323 = math.tanh %322 : vector<8x128xf32>
    %324 = arith.mulf %319, %323 : vector<8x128xf32>
    %325 = arith.index_cast %295 : i32 to index
    %c0_100 = arith.constant 0 : index
    %326 = vector.load %arg15[%325, %c0_100] : memref<64x128xf32, #tpu.memory_space<vmem>>, vector<8x128xf32>
    tpu.vector_store %arg15[%325, %c0_100], %324 {strides = array<i32>} : memref<64x128xf32, #tpu.memory_space<vmem>>, vector<8x128xf32>,
    %c1_i32_101 = arith.constant 1 : i32
    %c8_i32_102 = arith.constant 8 : i32
    %327 = arith.muli %c1_i32_101, %c8_i32_102 : i32
    %328 = tpu.assume_multiple %327, 8 : i32
    %329 = arith.index_cast %328 : i32 to index
    %c0_103 = arith.constant 0 : index
    %330 = vector.load %arg14[%329, %c0_103] : memref<64x512xf32, #tpu.memory_space<vmem>>, vector<8x512xf32>
    %cst_104 = arith.constant dense<0.000000e+00> : vector<8x512xf32>
    %331 = tpu.matmul %324, %289, %cst_104 {dimension_numbers = #tpu.dot_dimension_numbers<[1], [0], [0], [1], [0, 0, 1, 1], [], []>} : vector<8x128xf32>, vector<128x512xf32>, vector<8x512xf32> -> vector<8x512xf32>
    %332 = arith.addf %330, %331 : vector<8x512xf32>
    %333 = vector.extract_strided_slice %332 {offsets = [0, 0], sizes = [8, 128], strides = [1, 1]} : vector<8x512xf32> to vector<8x128xf32>
    %334 = arith.negf %333 : vector<8x128xf32>
    %335 = math.exp %334 : vector<8x128xf32>
    %cst_105 = arith.constant 1.000000e+00 : f32
    %336 = vector.broadcast %cst_105 : f32 to vector<8x128xf32>
    %337 = arith.addf %336, %335 : vector<8x128xf32>
    %338 = arith.divf %336, %337 : vector<8x128xf32>
    %339 = vector.extract_strided_slice %332 {offsets = [0, 128], sizes = [8, 128], strides = [1, 1]} : vector<8x512xf32> to vector<8x128xf32>
    %340 = arith.negf %339 : vector<8x128xf32>
    %341 = math.exp %340 : vector<8x128xf32>
    %cst_106 = arith.constant 1.000000e+00 : f32
    %342 = vector.broadcast %cst_106 : f32 to vector<8x128xf32>
    %343 = arith.addf %342, %341 : vector<8x128xf32>
    %344 = arith.divf %342, %343 : vector<8x128xf32>
    %345 = vector.extract_strided_slice %332 {offsets = [0, 256], sizes = [8, 128], strides = [1, 1]} : vector<8x512xf32> to vector<8x128xf32>
    %346 = math.tanh %345 : vector<8x128xf32>
    %347 = vector.extract_strided_slice %332 {offsets = [0, 384], sizes = [8, 128], strides = [1, 1]} : vector<8x512xf32> to vector<8x128xf32>
    %348 = arith.negf %347 : vector<8x128xf32>
    %349 = math.exp %348 : vector<8x128xf32>
    %cst_107 = arith.constant 1.000000e+00 : f32
    %350 = vector.broadcast %cst_107 : f32 to vector<8x128xf32>
    %351 = arith.addf %350, %349 : vector<8x128xf32>
    %352 = arith.divf %350, %351 : vector<8x128xf32>
    %353 = arith.mulf %344, %322 : vector<8x128xf32>
    %354 = arith.mulf %338, %346 : vector<8x128xf32>
    %355 = arith.addf %353, %354 : vector<8x128xf32>
    %356 = math.tanh %355 : vector<8x128xf32>
    %357 = arith.mulf %352, %356 : vector<8x128xf32>
    %358 = arith.index_cast %328 : i32 to index
    %c0_108 = arith.constant 0 : index
    %359 = vector.load %arg15[%358, %c0_108] : memref<64x128xf32, #tpu.memory_space<vmem>>, vector<8x128xf32>
    tpu.vector_store %arg15[%358, %c0_108], %357 {strides = array<i32>} : memref<64x128xf32, #tpu.memory_space<vmem>>, vector<8x128xf32>,
    %c2_i32_109 = arith.constant 2 : i32
    %c8_i32_110 = arith.constant 8 : i32
    %360 = arith.muli %c2_i32_109, %c8_i32_110 : i32
    %361 = tpu.assume_multiple %360, 8 : i32
    %362 = arith.index_cast %361 : i32 to index
    %c0_111 = arith.constant 0 : index
    %363 = vector.load %arg14[%362, %c0_111] : memref<64x512xf32, #tpu.memory_space<vmem>>, vector<8x512xf32>
    %cst_112 = arith.constant dense<0.000000e+00> : vector<8x512xf32>
    %364 = tpu.matmul %357, %289, %cst_112 {dimension_numbers = #tpu.dot_dimension_numbers<[1], [0], [0], [1], [0, 0, 1, 1], [], []>} : vector<8x128xf32>, vector<128x512xf32>, vector<8x512xf32> -> vector<8x512xf32>
    %365 = arith.addf %363, %364 : vector<8x512xf32>
    %366 = vector.extract_strided_slice %365 {offsets = [0, 0], sizes = [8, 128], strides = [1, 1]} : vector<8x512xf32> to vector<8x128xf32>
    %367 = arith.negf %366 : vector<8x128xf32>
    %368 = math.exp %367 : vector<8x128xf32>
    %cst_113 = arith.constant 1.000000e+00 : f32
    %369 = vector.broadcast %cst_113 : f32 to vector<8x128xf32>
    %370 = arith.addf %369, %368 : vector<8x128xf32>
    %371 = arith.divf %369, %370 : vector<8x128xf32>
    %372 = vector.extract_strided_slice %365 {offsets = [0, 128], sizes = [8, 128], strides = [1, 1]} : vector<8x512xf32> to vector<8x128xf32>
    %373 = arith.negf %372 : vector<8x128xf32>
    %374 = math.exp %373 : vector<8x128xf32>
    %cst_114 = arith.constant 1.000000e+00 : f32
    %375 = vector.broadcast %cst_114 : f32 to vector<8x128xf32>
    %376 = arith.addf %375, %374 : vector<8x128xf32>
    %377 = arith.divf %375, %376 : vector<8x128xf32>
    %378 = vector.extract_strided_slice %365 {offsets = [0, 256], sizes = [8, 128], strides = [1, 1]} : vector<8x512xf32> to vector<8x128xf32>
    %379 = math.tanh %378 : vector<8x128xf32>
    %380 = vector.extract_strided_slice %365 {offsets = [0, 384], sizes = [8, 128], strides = [1, 1]} : vector<8x512xf32> to vector<8x128xf32>
    %381 = arith.negf %380 : vector<8x128xf32>
    %382 = math.exp %381 : vector<8x128xf32>
    %cst_115 = arith.constant 1.000000e+00 : f32
    %383 = vector.broadcast %cst_115 : f32 to vector<8x128xf32>
    %384 = arith.addf %383, %382 : vector<8x128xf32>
    %385 = arith.divf %383, %384 : vector<8x128xf32>
    %386 = arith.mulf %377, %355 : vector<8x128xf32>
    %387 = arith.mulf %371, %379 : vector<8x128xf32>
    %388 = arith.addf %386, %387 : vector<8x128xf32>
    %389 = math.tanh %388 : vector<8x128xf32>
    %390 = arith.mulf %385, %389 : vector<8x128xf32>
    %391 = arith.index_cast %361 : i32 to index
    %c0_116 = arith.constant 0 : index
    %392 = vector.load %arg15[%391, %c0_116] : memref<64x128xf32, #tpu.memory_space<vmem>>, vector<8x128xf32>
    tpu.vector_store %arg15[%391, %c0_116], %390 {strides = array<i32>} : memref<64x128xf32, #tpu.memory_space<vmem>>, vector<8x128xf32>,
    %c3_i32_117 = arith.constant 3 : i32
    %c8_i32_118 = arith.constant 8 : i32
    %393 = arith.muli %c3_i32_117, %c8_i32_118 : i32
    %394 = tpu.assume_multiple %393, 8 : i32
    %395 = arith.index_cast %394 : i32 to index
    %c0_119 = arith.constant 0 : index
    %396 = vector.load %arg14[%395, %c0_119] : memref<64x512xf32, #tpu.memory_space<vmem>>, vector<8x512xf32>
    %cst_120 = arith.constant dense<0.000000e+00> : vector<8x512xf32>
    %397 = tpu.matmul %390, %289, %cst_120 {dimension_numbers = #tpu.dot_dimension_numbers<[1], [0], [0], [1], [0, 0, 1, 1], [], []>} : vector<8x128xf32>, vector<128x512xf32>, vector<8x512xf32> -> vector<8x512xf32>
    %398 = arith.addf %396, %397 : vector<8x512xf32>
    %399 = vector.extract_strided_slice %398 {offsets = [0, 0], sizes = [8, 128], strides = [1, 1]} : vector<8x512xf32> to vector<8x128xf32>
    %400 = arith.negf %399 : vector<8x128xf32>
    %401 = math.exp %400 : vector<8x128xf32>
    %cst_121 = arith.constant 1.000000e+00 : f32
    %402 = vector.broadcast %cst_121 : f32 to vector<8x128xf32>
    %403 = arith.addf %402, %401 : vector<8x128xf32>
    %404 = arith.divf %402, %403 : vector<8x128xf32>
    %405 = vector.extract_strided_slice %398 {offsets = [0, 128], sizes = [8, 128], strides = [1, 1]} : vector<8x512xf32> to vector<8x128xf32>
    %406 = arith.negf %405 : vector<8x128xf32>
    %407 = math.exp %406 : vector<8x128xf32>
    %cst_122 = arith.constant 1.000000e+00 : f32
    %408 = vector.broadcast %cst_122 : f32 to vector<8x128xf32>
    %409 = arith.addf %408, %407 : vector<8x128xf32>
    %410 = arith.divf %408, %409 : vector<8x128xf32>
    %411 = vector.extract_strided_slice %398 {offsets = [0, 256], sizes = [8, 128], strides = [1, 1]} : vector<8x512xf32> to vector<8x128xf32>
    %412 = math.tanh %411 : vector<8x128xf32>
    %413 = vector.extract_strided_slice %398 {offsets = [0, 384], sizes = [8, 128], strides = [1, 1]} : vector<8x512xf32> to vector<8x128xf32>
    %414 = arith.negf %413 : vector<8x128xf32>
    %415 = math.exp %414 : vector<8x128xf32>
    %cst_123 = arith.constant 1.000000e+00 : f32
    %416 = vector.broadcast %cst_123 : f32 to vector<8x128xf32>
    %417 = arith.addf %416, %415 : vector<8x128xf32>
    %418 = arith.divf %416, %417 : vector<8x128xf32>
    %419 = arith.mulf %410, %388 : vector<8x128xf32>
    %420 = arith.mulf %404, %412 : vector<8x128xf32>
    %421 = arith.addf %419, %420 : vector<8x128xf32>
    %422 = math.tanh %421 : vector<8x128xf32>
    %423 = arith.mulf %418, %422 : vector<8x128xf32>
    %424 = arith.index_cast %394 : i32 to index
    %c0_124 = arith.constant 0 : index
    %425 = vector.load %arg15[%424, %c0_124] : memref<64x128xf32, #tpu.memory_space<vmem>>, vector<8x128xf32>
    tpu.vector_store %arg15[%424, %c0_124], %423 {strides = array<i32>} : memref<64x128xf32, #tpu.memory_space<vmem>>, vector<8x128xf32>,
    %c4_i32_125 = arith.constant 4 : i32
    %c8_i32_126 = arith.constant 8 : i32
    %426 = arith.muli %c4_i32_125, %c8_i32_126 : i32
    %427 = tpu.assume_multiple %426, 8 : i32
    %428 = arith.index_cast %427 : i32 to index
    %c0_127 = arith.constant 0 : index
    %429 = vector.load %arg14[%428, %c0_127] : memref<64x512xf32, #tpu.memory_space<vmem>>, vector<8x512xf32>
    %cst_128 = arith.constant dense<0.000000e+00> : vector<8x512xf32>
    %430 = tpu.matmul %423, %289, %cst_128 {dimension_numbers = #tpu.dot_dimension_numbers<[1], [0], [0], [1], [0, 0, 1, 1], [], []>} : vector<8x128xf32>, vector<128x512xf32>, vector<8x512xf32> -> vector<8x512xf32>
    %431 = arith.addf %429, %430 : vector<8x512xf32>
    %432 = vector.extract_strided_slice %431 {offsets = [0, 0], sizes = [8, 128], strides = [1, 1]} : vector<8x512xf32> to vector<8x128xf32>
    %433 = arith.negf %432 : vector<8x128xf32>
    %434 = math.exp %433 : vector<8x128xf32>
    %cst_129 = arith.constant 1.000000e+00 : f32
    %435 = vector.broadcast %cst_129 : f32 to vector<8x128xf32>
    %436 = arith.addf %435, %434 : vector<8x128xf32>
    %437 = arith.divf %435, %436 : vector<8x128xf32>
    %438 = vector.extract_strided_slice %431 {offsets = [0, 128], sizes = [8, 128], strides = [1, 1]} : vector<8x512xf32> to vector<8x128xf32>
    %439 = arith.negf %438 : vector<8x128xf32>
    %440 = math.exp %439 : vector<8x128xf32>
    %cst_130 = arith.constant 1.000000e+00 : f32
    %441 = vector.broadcast %cst_130 : f32 to vector<8x128xf32>
    %442 = arith.addf %441, %440 : vector<8x128xf32>
    %443 = arith.divf %441, %442 : vector<8x128xf32>
    %444 = vector.extract_strided_slice %431 {offsets = [0, 256], sizes = [8, 128], strides = [1, 1]} : vector<8x512xf32> to vector<8x128xf32>
    %445 = math.tanh %444 : vector<8x128xf32>
    %446 = vector.extract_strided_slice %431 {offsets = [0, 384], sizes = [8, 128], strides = [1, 1]} : vector<8x512xf32> to vector<8x128xf32>
    %447 = arith.negf %446 : vector<8x128xf32>
    %448 = math.exp %447 : vector<8x128xf32>
    %cst_131 = arith.constant 1.000000e+00 : f32
    %449 = vector.broadcast %cst_131 : f32 to vector<8x128xf32>
    %450 = arith.addf %449, %448 : vector<8x128xf32>
    %451 = arith.divf %449, %450 : vector<8x128xf32>
    %452 = arith.mulf %443, %421 : vector<8x128xf32>
    %453 = arith.mulf %437, %445 : vector<8x128xf32>
    %454 = arith.addf %452, %453 : vector<8x128xf32>
    %455 = math.tanh %454 : vector<8x128xf32>
    %456 = arith.mulf %451, %455 : vector<8x128xf32>
    %457 = arith.index_cast %427 : i32 to index
    %c0_132 = arith.constant 0 : index
    %458 = vector.load %arg15[%457, %c0_132] : memref<64x128xf32, #tpu.memory_space<vmem>>, vector<8x128xf32>
    tpu.vector_store %arg15[%457, %c0_132], %456 {strides = array<i32>} : memref<64x128xf32, #tpu.memory_space<vmem>>, vector<8x128xf32>,
    %c5_i32_133 = arith.constant 5 : i32
    %c8_i32_134 = arith.constant 8 : i32
    %459 = arith.muli %c5_i32_133, %c8_i32_134 : i32
    %460 = tpu.assume_multiple %459, 8 : i32
    %461 = arith.index_cast %460 : i32 to index
    %c0_135 = arith.constant 0 : index
    %462 = vector.load %arg14[%461, %c0_135] : memref<64x512xf32, #tpu.memory_space<vmem>>, vector<8x512xf32>
    %cst_136 = arith.constant dense<0.000000e+00> : vector<8x512xf32>
    %463 = tpu.matmul %456, %289, %cst_136 {dimension_numbers = #tpu.dot_dimension_numbers<[1], [0], [0], [1], [0, 0, 1, 1], [], []>} : vector<8x128xf32>, vector<128x512xf32>, vector<8x512xf32> -> vector<8x512xf32>
    %464 = arith.addf %462, %463 : vector<8x512xf32>
    %465 = vector.extract_strided_slice %464 {offsets = [0, 0], sizes = [8, 128], strides = [1, 1]} : vector<8x512xf32> to vector<8x128xf32>
    %466 = arith.negf %465 : vector<8x128xf32>
    %467 = math.exp %466 : vector<8x128xf32>
    %cst_137 = arith.constant 1.000000e+00 : f32
    %468 = vector.broadcast %cst_137 : f32 to vector<8x128xf32>
    %469 = arith.addf %468, %467 : vector<8x128xf32>
    %470 = arith.divf %468, %469 : vector<8x128xf32>
    %471 = vector.extract_strided_slice %464 {offsets = [0, 128], sizes = [8, 128], strides = [1, 1]} : vector<8x512xf32> to vector<8x128xf32>
    %472 = arith.negf %471 : vector<8x128xf32>
    %473 = math.exp %472 : vector<8x128xf32>
    %cst_138 = arith.constant 1.000000e+00 : f32
    %474 = vector.broadcast %cst_138 : f32 to vector<8x128xf32>
    %475 = arith.addf %474, %473 : vector<8x128xf32>
    %476 = arith.divf %474, %475 : vector<8x128xf32>
    %477 = vector.extract_strided_slice %464 {offsets = [0, 256], sizes = [8, 128], strides = [1, 1]} : vector<8x512xf32> to vector<8x128xf32>
    %478 = math.tanh %477 : vector<8x128xf32>
    %479 = vector.extract_strided_slice %464 {offsets = [0, 384], sizes = [8, 128], strides = [1, 1]} : vector<8x512xf32> to vector<8x128xf32>
    %480 = arith.negf %479 : vector<8x128xf32>
    %481 = math.exp %480 : vector<8x128xf32>
    %cst_139 = arith.constant 1.000000e+00 : f32
    %482 = vector.broadcast %cst_139 : f32 to vector<8x128xf32>
    %483 = arith.addf %482, %481 : vector<8x128xf32>
    %484 = arith.divf %482, %483 : vector<8x128xf32>
    %485 = arith.mulf %476, %454 : vector<8x128xf32>
    %486 = arith.mulf %470, %478 : vector<8x128xf32>
    %487 = arith.addf %485, %486 : vector<8x128xf32>
    %488 = math.tanh %487 : vector<8x128xf32>
    %489 = arith.mulf %484, %488 : vector<8x128xf32>
    %490 = arith.index_cast %460 : i32 to index
    %c0_140 = arith.constant 0 : index
    %491 = vector.load %arg15[%490, %c0_140] : memref<64x128xf32, #tpu.memory_space<vmem>>, vector<8x128xf32>
    tpu.vector_store %arg15[%490, %c0_140], %489 {strides = array<i32>} : memref<64x128xf32, #tpu.memory_space<vmem>>, vector<8x128xf32>,
    %c6_i32_141 = arith.constant 6 : i32
    %c8_i32_142 = arith.constant 8 : i32
    %492 = arith.muli %c6_i32_141, %c8_i32_142 : i32
    %493 = tpu.assume_multiple %492, 8 : i32
    %494 = arith.index_cast %493 : i32 to index
    %c0_143 = arith.constant 0 : index
    %495 = vector.load %arg14[%494, %c0_143] : memref<64x512xf32, #tpu.memory_space<vmem>>, vector<8x512xf32>
    %cst_144 = arith.constant dense<0.000000e+00> : vector<8x512xf32>
    %496 = tpu.matmul %489, %289, %cst_144 {dimension_numbers = #tpu.dot_dimension_numbers<[1], [0], [0], [1], [0, 0, 1, 1], [], []>} : vector<8x128xf32>, vector<128x512xf32>, vector<8x512xf32> -> vector<8x512xf32>
    %497 = arith.addf %495, %496 : vector<8x512xf32>
    %498 = vector.extract_strided_slice %497 {offsets = [0, 0], sizes = [8, 128], strides = [1, 1]} : vector<8x512xf32> to vector<8x128xf32>
    %499 = arith.negf %498 : vector<8x128xf32>
    %500 = math.exp %499 : vector<8x128xf32>
    %cst_145 = arith.constant 1.000000e+00 : f32
    %501 = vector.broadcast %cst_145 : f32 to vector<8x128xf32>
    %502 = arith.addf %501, %500 : vector<8x128xf32>
    %503 = arith.divf %501, %502 : vector<8x128xf32>
    %504 = vector.extract_strided_slice %497 {offsets = [0, 128], sizes = [8, 128], strides = [1, 1]} : vector<8x512xf32> to vector<8x128xf32>
    %505 = arith.negf %504 : vector<8x128xf32>
    %506 = math.exp %505 : vector<8x128xf32>
    %cst_146 = arith.constant 1.000000e+00 : f32
    %507 = vector.broadcast %cst_146 : f32 to vector<8x128xf32>
    %508 = arith.addf %507, %506 : vector<8x128xf32>
    %509 = arith.divf %507, %508 : vector<8x128xf32>
    %510 = vector.extract_strided_slice %497 {offsets = [0, 256], sizes = [8, 128], strides = [1, 1]} : vector<8x512xf32> to vector<8x128xf32>
    %511 = math.tanh %510 : vector<8x128xf32>
    %512 = vector.extract_strided_slice %497 {offsets = [0, 384], sizes = [8, 128], strides = [1, 1]} : vector<8x512xf32> to vector<8x128xf32>
    %513 = arith.negf %512 : vector<8x128xf32>
    %514 = math.exp %513 : vector<8x128xf32>
    %cst_147 = arith.constant 1.000000e+00 : f32
    %515 = vector.broadcast %cst_147 : f32 to vector<8x128xf32>
    %516 = arith.addf %515, %514 : vector<8x128xf32>
    %517 = arith.divf %515, %516 : vector<8x128xf32>
    %518 = arith.mulf %509, %487 : vector<8x128xf32>
    %519 = arith.mulf %503, %511 : vector<8x128xf32>
    %520 = arith.addf %518, %519 : vector<8x128xf32>
    %521 = math.tanh %520 : vector<8x128xf32>
    %522 = arith.mulf %517, %521 : vector<8x128xf32>
    %523 = arith.index_cast %493 : i32 to index
    %c0_148 = arith.constant 0 : index
    %524 = vector.load %arg15[%523, %c0_148] : memref<64x128xf32, #tpu.memory_space<vmem>>, vector<8x128xf32>
    tpu.vector_store %arg15[%523, %c0_148], %522 {strides = array<i32>} : memref<64x128xf32, #tpu.memory_space<vmem>>, vector<8x128xf32>,
    %c7_i32_149 = arith.constant 7 : i32
    %c8_i32_150 = arith.constant 8 : i32
    %525 = arith.muli %c7_i32_149, %c8_i32_150 : i32
    %526 = tpu.assume_multiple %525, 8 : i32
    %527 = arith.index_cast %526 : i32 to index
    %c0_151 = arith.constant 0 : index
    %528 = vector.load %arg14[%527, %c0_151] : memref<64x512xf32, #tpu.memory_space<vmem>>, vector<8x512xf32>
    %cst_152 = arith.constant dense<0.000000e+00> : vector<8x512xf32>
    %529 = tpu.matmul %522, %289, %cst_152 {dimension_numbers = #tpu.dot_dimension_numbers<[1], [0], [0], [1], [0, 0, 1, 1], [], []>} : vector<8x128xf32>, vector<128x512xf32>, vector<8x512xf32> -> vector<8x512xf32>
    %530 = arith.addf %528, %529 : vector<8x512xf32>
    %531 = vector.extract_strided_slice %530 {offsets = [0, 0], sizes = [8, 128], strides = [1, 1]} : vector<8x512xf32> to vector<8x128xf32>
    %532 = arith.negf %531 : vector<8x128xf32>
    %533 = math.exp %532 : vector<8x128xf32>
    %cst_153 = arith.constant 1.000000e+00 : f32
    %534 = vector.broadcast %cst_153 : f32 to vector<8x128xf32>
    %535 = arith.addf %534, %533 : vector<8x128xf32>
    %536 = arith.divf %534, %535 : vector<8x128xf32>
    %537 = vector.extract_strided_slice %530 {offsets = [0, 128], sizes = [8, 128], strides = [1, 1]} : vector<8x512xf32> to vector<8x128xf32>
    %538 = arith.negf %537 : vector<8x128xf32>
    %539 = math.exp %538 : vector<8x128xf32>
    %cst_154 = arith.constant 1.000000e+00 : f32
    %540 = vector.broadcast %cst_154 : f32 to vector<8x128xf32>
    %541 = arith.addf %540, %539 : vector<8x128xf32>
    %542 = arith.divf %540, %541 : vector<8x128xf32>
    %543 = vector.extract_strided_slice %530 {offsets = [0, 256], sizes = [8, 128], strides = [1, 1]} : vector<8x512xf32> to vector<8x128xf32>
    %544 = math.tanh %543 : vector<8x128xf32>
    %545 = vector.extract_strided_slice %530 {offsets = [0, 384], sizes = [8, 128], strides = [1, 1]} : vector<8x512xf32> to vector<8x128xf32>
    %546 = arith.negf %545 : vector<8x128xf32>
    %547 = math.exp %546 : vector<8x128xf32>
    %cst_155 = arith.constant 1.000000e+00 : f32
    %548 = vector.broadcast %cst_155 : f32 to vector<8x128xf32>
    %549 = arith.addf %548, %547 : vector<8x128xf32>
    %550 = arith.divf %548, %549 : vector<8x128xf32>
    %551 = arith.mulf %542, %520 : vector<8x128xf32>
    %552 = arith.mulf %536, %544 : vector<8x128xf32>
    %553 = arith.addf %551, %552 : vector<8x128xf32>
    %554 = math.tanh %553 : vector<8x128xf32>
    %555 = arith.mulf %550, %554 : vector<8x128xf32>
    %556 = arith.index_cast %526 : i32 to index
    %c0_156 = arith.constant 0 : index
    %557 = vector.load %arg15[%556, %c0_156] : memref<64x128xf32, #tpu.memory_space<vmem>>, vector<8x128xf32>
    tpu.vector_store %arg15[%556, %c0_156], %555 {strides = array<i32>} : memref<64x128xf32, #tpu.memory_space<vmem>>, vector<8x128xf32>,
    %c8_i32_157 = arith.constant 8 : i32
    %c1_158 = arith.constant 1 : index
    %c0_159 = arith.constant 0 : index
    %c0_160 = arith.constant 0 : index
    %558 = vector.load %arg12[%c1_158, %c0_159, %c0_160] : memref<2x8x128xf32, #tpu.memory_space<vmem>>, vector<1x8x128xf32>
    %559 = vector.shape_cast %558 : vector<1x8x128xf32> to vector<8x128xf32>
    %560 = vector.shape_cast %555 : vector<8x128xf32> to vector<1x8x128xf32>
    tpu.vector_store %arg12[%c1_158, %c0_159, %c0_160], %560 {strides = array<i32>} : memref<2x8x128xf32, #tpu.memory_space<vmem>>, vector<1x8x128xf32>,
    %c1_161 = arith.constant 1 : index
    %c0_162 = arith.constant 0 : index
    %c0_163 = arith.constant 0 : index
    %561 = vector.load %arg13[%c1_161, %c0_162, %c0_163] : memref<2x8x128xf32, #tpu.memory_space<vmem>>, vector<1x8x128xf32>
    %562 = vector.shape_cast %561 : vector<1x8x128xf32> to vector<8x128xf32>
    %563 = vector.shape_cast %553 : vector<8x128xf32> to vector<1x8x128xf32>
    tpu.vector_store %arg13[%c1_161, %c0_162, %c0_163], %563 {strides = array<i32>} : memref<2x8x128xf32, #tpu.memory_space<vmem>>, vector<1x8x128xf32>,
    %c0_164 = arith.constant 0 : index
    %c0_165 = arith.constant 0 : index
    %564 = vector.load %arg15[%c0_164, %c0_165] : memref<64x128xf32, #tpu.memory_space<vmem>>, vector<64x128xf32>
    %c0_166 = arith.constant 0 : index
    %c0_167 = arith.constant 0 : index
    %565 = vector.load %arg9[%c0_166, %c0_167] : memref<128x128xf32, #tpu.memory_space<vmem>>, vector<128x128xf32>
    %cst_168 = arith.constant dense<0.000000e+00> : vector<64x128xf32>
    %566 = tpu.matmul %564, %565, %cst_168 {dimension_numbers = #tpu.dot_dimension_numbers<[1], [0], [0], [1], [0, 0, 1, 1], [], []>} : vector<64x128xf32>, vector<128x128xf32>, vector<64x128xf32> -> vector<64x128xf32>
    %c0_169 = arith.constant 0 : index
    %c0_170 = arith.constant 0 : index
    %567 = vector.load %arg10[%c0_169, %c0_170] : memref<1x128xf32, #tpu.memory_space<vmem>>, vector<1x128xf32>
    %568 = vector.broadcast %567 : vector<1x128xf32> to vector<64x128xf32>
    %569 = arith.addf %566, %568 : vector<64x128xf32>
    %cst_171 = arith.constant dense<0xFF800000> : vector<64xf32>
    %570 = vector.multi_reduction <maximumf>, %569, %cst_171 [1] : vector<64x128xf32> to vector<64xf32>
    %571 = vector.shape_cast %570 : vector<64xf32> to vector<64x1xf32>
    %572 = vector.broadcast %571 : vector<64x1xf32> to vector<64x128xf32>
    %573 = arith.subf %569, %572 : vector<64x128xf32>
    %574 = math.exp %573 : vector<64x128xf32>
    %cst_172 = arith.constant dense<0.000000e+00> : vector<64xf32>
    %575 = vector.multi_reduction <add>, %574, %cst_172 [1] : vector<64x128xf32> to vector<64xf32>
    %576 = vector.shape_cast %575 : vector<64xf32> to vector<64x1xf32>
    %577 = math.log %576 : vector<64x1xf32>
    %578 = arith.addf %571, %577 : vector<64x1xf32>
    %579 = vector.broadcast %578 : vector<64x1xf32> to vector<64x128xf32>
    %580 = arith.subf %569, %579 : vector<64x128xf32>
    %c0_173 = arith.constant 0 : index
    %c0_174 = arith.constant 0 : index
    %581 = vector.load %arg11[%c0_173, %c0_174] : memref<64x128xf32, #tpu.memory_space<vmem>>, vector<64x128xf32>
    tpu.vector_store %arg11[%c0_173, %c0_174], %580 {strides = array<i32>} : memref<64x128xf32, #tpu.memory_space<vmem>>, vector<64x128xf32>,
    return
  }
}

</mosaic_0001>

<llo_original>
// kernel: ipa_predictor_forward.1
$region0: #{ipa_predictor_forward.1}
  #allocation0 [shape = 'u32[]', space=smem, size = 0x4, offset = 0x4, fixed_abs, tag = 'smem constant byte address 0x4 - core index']
  #allocation1 [shape = 'u32[144,128]{1,0:T(1,128)}', space=vmem, size = 0x12000, scoped, tag = 'internal scratch']
  #allocation2 [shape = 'f32[64,512]{1,0:T(8,128)}', space=vmem, size = 0x20000, scoped, tag = 'scratch operand']
  #allocation3 [shape = 'f32[64,128]{1,0:T(8,128)}', space=vmem, size = 0x8000, scoped, tag = 'scratch operand']
  %s0 = inlined_call_operand.vmem [shape: f32[64,128], index: 0, kind: input, shape index: {}]
  %s1 = inlined_call_operand.hbm [shape: f32[128,512], index: 1, kind: input, shape index: {}]
  %s2 = inlined_call_operand.hbm [shape: f32[128,512], index: 2, kind: input, shape index: {}]
  %s3 = inlined_call_operand.vmem [shape: f32[1,512], index: 3, kind: input, shape index: {}]
  %s4 = inlined_call_operand.hbm [shape: f32[128,512], index: 4, kind: input, shape index: {}]
  %s5 = inlined_call_operand.hbm [shape: f32[128,512], index: 5, kind: input, shape index: {}]
  %s6 = inlined_call_operand.vmem [shape: f32[1,512], index: 6, kind: input, shape index: {}]
  %s7 = inlined_call_operand.vmem [shape: f32[2,8,128], index: 7, kind: input, shape index: {}, may-alias: {7,8}]
  %s8 = inlined_call_operand.vmem [shape: f32[2,8,128], index: 8, kind: input, shape index: {}, may-alias: {7,8}]
  %s9 = inlined_call_operand.vmem [shape: f32[128,128], index: 9, kind: input, shape index: {}]
  %s10 = inlined_call_operand.vmem [shape: f32[1,128], index: 10, kind: input, shape index: {}]
  %s11 = inlined_call_operand.vmem [shape: f32[64,128], index: 11, kind: output, shape index: {0}]
  %s12 = inlined_call_operand.vmem [shape: f32[2,8,128], index: 12, kind: output, shape index: {1}]
  %s13 = inlined_call_operand.vmem [shape: f32[2,8,128], index: 13, kind: output, shape index: {2}]
  %14 = xla_tuple %s11, %s12, %s13
  %s15 = sld [smem:[#allocation0]]
  $region86: #{ipa_predictor_forward.1} parent=0
    _
  %s17 = ssub.s32 1, %s15
  %s18 = scalar_select 0, %s17, %s15
  $region1: #{ipa_predictor_forward.1} parent=0
    #allocation4 [shape = 'u8[262144]{0}', space=vmem, size = 0x40000, scoped, tag = 'input window, operand 1, single buffered']
    #allocation5 [shape = 's32[1]{0}', space=sflag, size = 0x4, scoped, tag = 'scoped memory for ipa_predictor_forward.1']
    #allocation6 [shape = 'u8[262144]{0}', space=vmem, size = 0x40000, scoped, tag = 'input window, operand 2, single buffered']
    #allocation7 [shape = 's32[1]{0}', space=sflag, size = 0x4, scoped, tag = 'scoped memory for ipa_predictor_forward.1']
    #allocation8 [shape = 'u8[262144]{0}', space=vmem, size = 0x40000, scoped, tag = 'input window, operand 4, single buffered']
    #allocation9 [shape = 'u8[262144]{0}', space=vmem, size = 0x40000, scoped, tag = 'input window, operand 5, single buffered']
    #allocation10 [shape = 's32[1]{0}', space=sflag, size = 0x4, scoped, tag = 'scoped memory for ipa_predictor_forward.1']
    %19 = vsyncpa [#allocation5], 0
    %20 = vsyncpa [#allocation7], 0
    %21 = vsyncpa [#allocation10], 0
    // Predicated region
    $region2: #{ipa_predictor_forward.1} parent=1 // pred_check
      _
    $region3: #{ipa_predictor_forward.1} parent=1 // pred_check_branch
      %23 = sbr.rel (0) target = $region5
    $region4: #{ipa_predictor_forward.1} parent=1 // pred_region
      _
    $region5: #{ipa_predictor_forward.1} parent=1 // pred_fallthru
      _
    // Predicated region
    $region6: #{ipa_predictor_forward.1} parent=1 // pred_check
      _
    $region7: #{ipa_predictor_forward.1} parent=1 // pred_check_branch
      %25 = sbr.rel (0) target = $region9
    $region8: #{ipa_predictor_forward.1} parent=1 // pred_region
      %s27 = ssub.s32 8192, 8192
      %28 = vsyncadd [#allocation5], %s27
      %s29 = sshll.u32 [#allocation4], 4
      %s30 = int_to_ptr.vmem [resolvable:$true] %s29
      %35 = dma.hbm_to_vmem [thread:$0]  %s1, 8192, %s30, [#allocation5], 512, 512, 32
    $region9: #{ipa_predictor_forward.1} parent=1 // pred_fallthru
      _
    // Predicated region
    $region10: #{ipa_predictor_forward.1} parent=1 // pred_check
      _
    $region11: #{ipa_predictor_forward.1} parent=1 // pred_check_branch
      %37 = sbr.rel (0) target = $region13
    $region12: #{ipa_predictor_forward.1} parent=1 // pred_region
      %s39 = ssub.s32 8192, 8192
      %40 = vsyncadd [#allocation7], %s39
      %s41 = sshll.u32 [#allocation6], 4
      %s42 = int_to_ptr.vmem [resolvable:$true] %s41
      %47 = dma.hbm_to_vmem [thread:$0]  %s2, 8192, %s42, [#allocation7], 512, 512, 32
    $region13: #{ipa_predictor_forward.1} parent=1 // pred_fallthru
      _
    // Predicated region
    $region14: #{ipa_predictor_forward.1} parent=1 // pred_check
      _
    $region15: #{ipa_predictor_forward.1} parent=1 // pred_check_branch
      %49 = sbr.rel (0) target = $region17
    $region16: #{ipa_predictor_forward.1} parent=1 // pred_region
      _
    $region17: #{ipa_predictor_forward.1} parent=1 // pred_fallthru
      _
    // Predicated region
    $region18: #{ipa_predictor_forward.1} parent=1 // pred_check
      _
    $region19: #{ipa_predictor_forward.1} parent=1 // pred_check_branch
      %51 = sbr.rel (0) target = $region21
    $region20: #{ipa_predictor_forward.1} parent=1 // pred_region
      %s53 = ssub.s32 8192, 8192
      %54 = vsyncadd [#allocation7], %s53
      %s55 = sshll.u32 [#allocation8], 4
      %s56 = int_to_ptr.vmem [resolvable:$true] %s55
      %61 = dma.hbm_to_vmem [thread:$0]  %s4, 8192, %s56, [#allocation7], 512, 512, 32
    $region21: #{ipa_predictor_forward.1} parent=1 // pred_fallthru
      _
    // Predicated region
    $region22: #{ipa_predictor_forward.1} parent=1 // pred_check
      _
    $region23: #{ipa_predictor_forward.1} parent=1 // pred_check_branch
      %63 = sbr.rel (0) target = $region25
    $region24: #{ipa_predictor_forward.1} parent=1 // pred_region
      %s65 = ssub.s32 8192, 8192
      %66 = vsyncadd [#allocation10], %s65
      %s67 = sshll.u32 [#allocation9], 4
      %s68 = int_to_ptr.vmem [resolvable:$true] %s67
      %73 = dma.hbm_to_vmem [thread:$0]  %s5, 8192, %s68, [#allocation10], 512, 512, 32
    $region25: #{ipa_predictor_forward.1} parent=1 // pred_fallthru
      _
    // Predicated region
    $region26: #{ipa_predictor_forward.1} parent=1 // pred_check
      _
    $region27: #{ipa_predictor_forward.1} parent=1 // pred_check_branch
      %75 = sbr.rel (0) target = $region29
    $region28: #{ipa_predictor_forward.1} parent=1 // pred_region
      _
    $region29: #{ipa_predictor_forward.1} parent=1 // pred_fallthru
      _
    // Predicated region
    $region30: #{ipa_predictor_forward.1} parent=1 // pred_check
      _
    $region31: #{ipa_predictor_forward.1} parent=1 // pred_check_branch
      %77 = sbr.rel (0) target = $region33
    $region32: #{ipa_predictor_forward.1} parent=1 // pred_region
      _
    $region33: #{ipa_predictor_forward.1} parent=1 // pred_fallthru
      _
    // Predicated region
    $region34: #{ipa_predictor_forward.1} parent=1 // pred_check
      _
    $region35: #{ipa_predictor_forward.1} parent=1 // pred_check_branch
      %79 = sbr.rel (0) target = $region37
    $region36: #{ipa_predictor_forward.1} parent=1 // pred_region
      _
    $region37: #{ipa_predictor_forward.1} parent=1 // pred_fallthru
      _
    // Predicated region
    $region38: #{ipa_predictor_forward.1} parent=1 // pred_check
      _
    $region39: #{ipa_predictor_forward.1} parent=1 // pred_check_branch
      %81 = sbr.rel (0) target = $region41
    $region40: #{ipa_predictor_forward.1} parent=1 // pred_region
      _
    $region41: #{ipa_predictor_forward.1} parent=1 // pred_fallthru
      _
    // Predicated region
    $region42: #{ipa_predictor_forward.1} parent=1 // pred_check
      _
    $region43: #{ipa_predictor_forward.1} parent=1 // pred_check_branch
      %83 = sbr.rel (0) target = $region45
    $region44: #{ipa_predictor_forward.1} parent=1 // pred_region
      _
    $region45: #{ipa_predictor_forward.1} parent=1 // pred_fallthru
      _
    // Predicated region
    $region46: #{ipa_predictor_forward.1} parent=1 // pred_check
      _
    $region47: #{ipa_predictor_forward.1} parent=1 // pred_check_branch
      %85 = sbr.rel (0) target = $region49
    $region48: #{ipa_predictor_forward.1} parent=1 // pred_region
      %86 = dma.done [#allocation5], 8192
    $region49: #{ipa_predictor_forward.1} parent=1 // pred_fallthru
      _
    // Predicated region
    $region50: #{ipa_predictor_forward.1} parent=1 // pred_check
      _
    $region51: #{ipa_predictor_forward.1} parent=1 // pred_check_branch
      %88 = sbr.rel (0) target = $region53
    $region52: #{ipa_predictor_forward.1} parent=1 // pred_region
      %89 = dma.done [#allocation7], 8192
    $region53: #{ipa_predictor_forward.1} parent=1 // pred_fallthru
      _
    // Predicated region
    $region54: #{ipa_predictor_forward.1} parent=1 // pred_check
      _
    $region55: #{ipa_predictor_forward.1} parent=1 // pred_check_branch
      %91 = sbr.rel (0) target = $region57
    $region56: #{ipa_predictor_forward.1} parent=1 // pred_region
      %92 = dma.done [#allocation7], 8192
    $region57: #{ipa_predictor_forward.1} parent=1 // pred_fallthru
      _
    // Predicated region
    $region58: #{ipa_predictor_forward.1} parent=1 // pred_check
      _
    $region59: #{ipa_predictor_forward.1} parent=1 // pred_check_branch
      %94 = sbr.rel (0) target = $region61
    $region60: #{ipa_predictor_forward.1} parent=1 // pred_region
      %95 = dma.done [#allocation10], 8192
    $region61: #{ipa_predictor_forward.1} parent=1 // pred_fallthru
      _
    %v96 = vld [vmem:[%s0] sm:$0xff]
    %v97 = vld [vmem:[%s0 + $0x8] sm:$0xff]
    %v98 = vld [vmem:[%s0 + $0x10] sm:$0xff]
    %v99 = vld [vmem:[%s0 + $0x18] sm:$0xff]
    %v100 = vld [vmem:[%s0 + $0x20] sm:$0xff]
    %v101 = vld [vmem:[%s0 + $0x28] sm:$0xff]
    %v102 = vld [vmem:[%s0 + $0x30] sm:$0xff]
    %v103 = vld [vmem:[%s0 + $0x38] sm:$0xff]
    %v104 = vld [vmem:[#allocation4] sm:$0xff]
    %v105 = vld [vmem:[#allocation4 + $0x8] sm:$0xff]
    %v106 = vld [vmem:[#allocation4 + $0x10] sm:$0xff]
    %v107 = vld [vmem:[#allocation4 + $0x18] sm:$0xff]
    %v108 = vld [vmem:[#allocation4 + $0x20] sm:$0xff]
    %v109 = vld [vmem:[#allocation4 + $0x28] sm:$0xff]
    %v110 = vld [vmem:[#allocation4 + $0x30] sm:$0xff]
    %v111 = vld [vmem:[#allocation4 + $0x38] sm:$0xff]
    %v112 = vld [vmem:[#allocation4 + $0x40] sm:$0xff]
    %v113 = vld [vmem:[#allocation4 + $0x48] sm:$0xff]
    %v114 = vld [vmem:[#allocation4 + $0x50] sm:$0xff]
    %v115 = vld [vmem:[#allocation4 + $0x58] sm:$0xff]
    %v116 = vld [vmem:[#allocation4 + $0x60] sm:$0xff]
    %v117 = vld [vmem:[#allocation4 + $0x68] sm:$0xff]
    %v118 = vld [vmem:[#allocation4 + $0x70] sm:$0xff]
    %v119 = vld [vmem:[#allocation4 + $0x78] sm:$0xff]
    %v120 = vld [vmem:[#allocation4 + $0x80] sm:$0xff]
    %v121 = vld [vmem:[#allocation4 + $0x88] sm:$0xff]
    %v122 = vld [vmem:[#allocation4 + $0x90] sm:$0xff]
    %v123 = vld [vmem:[#allocation4 + $0x98] sm:$0xff]
    %v124 = vld [vmem:[#allocation4 + $0xa0] sm:$0xff]
    %v125 = vld [vmem:[#allocation4 + $0xa8] sm:$0xff]
    %v126 = vld [vmem:[#allocation4 + $0xb0] sm:$0xff]
    %v127 = vld [vmem:[#allocation4 + $0xb8] sm:$0xff]
    %v128 = vld [vmem:[#allocation4 + $0xc0] sm:$0xff]
    %v129 = vld [vmem:[#allocation4 + $0xc8] sm:$0xff]
    %v130 = vld [vmem:[#allocation4 + $0xd0] sm:$0xff]
    %v131 = vld [vmem:[#allocation4 + $0xd8] sm:$0xff]
    %v132 = vld [vmem:[#allocation4 + $0xe0] sm:$0xff]
    %v133 = vld [vmem:[#allocation4 + $0xe8] sm:$0xff]
    %v134 = vld [vmem:[#allocation4 + $0xf0] sm:$0xff]
    %v135 = vld [vmem:[#allocation4 + $0xf8] sm:$0xff]
    %v136 = vld [vmem:[#allocation4 + $0x100] sm:$0xff]
    %v137 = vld [vmem:[#allocation4 + $0x108] sm:$0xff]
    %v138 = vld [vmem:[#allocation4 + $0x110] sm:$0xff]
    %v139 = vld [vmem:[#allocation4 + $0x118] sm:$0xff]
    %v140 = vld [vmem:[#allocation4 + $0x120] sm:$0xff]
    %v141 = vld [vmem:[#allocation4 + $0x128] sm:$0xff]
    %v142 = vld [vmem:[#allocation4 + $0x130] sm:$0xff]
    %v143 = vld [vmem:[#allocation4 + $0x138] sm:$0xff]
    %v144 = vld [vmem:[#allocation4 + $0x140] sm:$0xff]
    %v145 = vld [vmem:[#allocation4 + $0x148] sm:$0xff]
    %v146 = vld [vmem:[#allocation4 + $0x150] sm:$0xff]
    %v147 = vld [vmem:[#allocation4 + $0x158] sm:$0xff]
    %v148 = vld [vmem:[#allocation4 + $0x160] sm:$0xff]
    %v149 = vld [vmem:[#allocation4 + $0x168] sm:$0xff]
    %v150 = vld [vmem:[#allocation4 + $0x170] sm:$0xff]
    %v151 = vld [vmem:[#allocation4 + $0x178] sm:$0xff]
    %v152 = vld [vmem:[#allocation4 + $0x180] sm:$0xff]
    %v153 = vld [vmem:[#allocation4 + $0x188] sm:$0xff]
    %v154 = vld [vmem:[#allocation4 + $0x190] sm:$0xff]
    %v155 = vld [vmem:[#allocation4 + $0x198] sm:$0xff]
    %v156 = vld [vmem:[#allocation4 + $0x1a0] sm:$0xff]
    %v157 = vld [vmem:[#allocation4 + $0x1a8] sm:$0xff]
    %v158 = vld [vmem:[#allocation4 + $0x1b0] sm:$0xff]
    %v159 = vld [vmem:[#allocation4 + $0x1b8] sm:$0xff]
    %v160 = vld [vmem:[#allocation4 + $0x1c0] sm:$0xff]
    %v161 = vld [vmem:[#allocation4 + $0x1c8] sm:$0xff]
    %v162 = vld [vmem:[#allocation4 + $0x1d0] sm:$0xff]
    %v163 = vld [vmem:[#allocation4 + $0x1d8] sm:$0xff]
    %v164 = vld [vmem:[#allocation4 + $0x1e0] sm:$0xff]
    %v165 = vld [vmem:[#allocation4 + $0x1e8] sm:$0xff]
    %v166 = vld [vmem:[#allocation4 + $0x1f0] sm:$0xff]
    %v167 = vld [vmem:[#allocation4 + $0x1f8] sm:$0xff]
    %v168 = vld [vmem:[%s3] sm:$0xf]
    %v170 = vlaneseq
    %v171 = vshrl.u32 %v170, 7
    %v172 = vsub.s32 0, %v171
    %v173 = vrot.slane %v168, %v172
    %v174 = vlaneseq
    %v175 = vshrl.u32 %v174, 7
    %v176 = vsub.s32 1, %v175
    %v177 = vrot.slane %v168, %v176
    %v178 = vlaneseq
    %v179 = vshrl.u32 %v178, 7
    %v180 = vsub.s32 2, %v179
    %v181 = vrot.slane %v168, %v180
    %v182 = vlaneseq
    %v183 = vshrl.u32 %v182, 7
    %v184 = vsub.s32 3, %v183
    %v185 = vrot.slane %v168, %v184
    %190 = vmatprep.subr.mxu0 %v165
    %191 = vmatpush1.msra.mxu0 %v164
    %192 = vmatprep.subr.mxu0 %v161
    %193 = vmatpush1.msra.mxu0 %v160
    %194 = vmatprep.subr.mxu0 %v157
    %195 = vmatpush1.msra.mxu0 %v156
    %196 = vmatprep.subr.mxu0 %v153
    %197 = vmatpush1.msra.mxu0 %v152
    %198 = vmatprep.subr.mxu0 %v149
    %199 = vmatpush1.msra.mxu0 %v148
    %200 = vmatprep.subr.mxu0 %v145
    %201 = vmatpush1.msra.mxu0 %v144
    %202 = vmatprep.subr.mxu0 %v141
    %203 = vmatpush1.msra.mxu0 %v140
    %204 = vmatprep.subr.mxu0 %v137
    %205 = vmatpush1.msra.mxu0 %v136
    %206 = vmatprep.subr.mxu0 %v133
    %207 = vmatpush1.msra.mxu0 %v132
    %208 = vmatprep.subr.mxu0 %v129
    %209 = vmatpush1.msra.mxu0 %v128
    %210 = vmatprep.subr.mxu0 %v125
    %211 = vmatpush1.msra.mxu0 %v124
    %212 = vmatprep.subr.mxu0 %v121
    %213 = vmatpush1.msra.mxu0 %v120
    %214 = vmatprep.subr.mxu0 %v117
    %215 = vmatpush1.msra.mxu0 %v116
    %216 = vmatprep.subr.mxu0 %v113
    %217 = vmatpush1.msra.mxu0 %v112
    %218 = vmatprep.subr.mxu0 %v109
    %219 = vmatpush1.msra.mxu0 %v108
    %220 = vmatprep.subr.mxu0 %v105
    %221 = vmatpush1.msra.mxu0 %v104
    %222 = vmatprep.subr.mxu0 0.0
    %223 = vmatpush2.msra.mxu0 0.0
    %224 = vmatprep.subr.mxu0 0.0
    %225 = vmatpush2.msra.mxu0 0.0
    %226 = vmatprep.subr.mxu0 0.0
    %227 = vmatpush2.msra.mxu0 0.0
    %228 = vmatprep.subr.mxu0 0.0
    %229 = vmatpush2.msra.mxu0 0.0
    %230 = vmatprep.subr.mxu0 0.0
    %231 = vmatpush2.msra.mxu0 0.0
    %232 = vmatprep.subr.mxu0 0.0
    %233 = vmatpush2.msra.mxu0 0.0
    %234 = vmatprep.subr.mxu0 0.0
    %235 = vmatpush2.msra.mxu0 0.0
    %236 = vmatprep.subr.mxu0 0.0
    %237 = vmatpush2.msra.mxu0 0.0
    %238 = vmatprep.subr.mxu0 0.0
    %239 = vmatpush2.msra.mxu0 0.0
    %240 = vmatprep.subr.mxu0 0.0
    %241 = vmatpush2.msra.mxu0 0.0
    %242 = vmatprep.subr.mxu0 0.0
    %243 = vmatpush2.msra.mxu0 0.0
    %244 = vmatprep.subr.mxu0 0.0
    %245 = vmatpush2.msra.mxu0 0.0
    %246 = vmatprep.subr.mxu0 0.0
    %247 = vmatpush2.msra.mxu0 0.0
    %248 = vmatprep.subr.mxu0 0.0
    %249 = vmatpush2.msra.mxu0 0.0
    %250 = vmatprep.subr.mxu0 0.0
    %251 = vmatpush2.msra.mxu0 0.0
    %252 = vmatprep.subr.mxu0 0.0
    %253 = vmatpush2.msra.mxu0 0.0
    %254 = vmatprep.mubr.f32.mxu0 0.0
    %255 = vmatmul.mubr.f32.gmra.mxu0 %v96
    %v256 = vpop.f32.mrf.mxu0
    %v257 = vadd.f32 %v173, %v256
    %v258 = vpop.f32.mrf.mxu0
    %v259 = vadd.f32 %v177, %v258
    %260 = vmatprep.mubr.f32.mxu0 0.0
    %261 = vmatmul.mubr.f32.gmra.mxu0 %v97
    %v262 = vpop.f32.mrf.mxu0
    %v263 = vadd.f32 %v173, %v262
    %v264 = vpop.f32.mrf.mxu0
    %v265 = vadd.f32 %v177, %v264
    %266 = vmatprep.mubr.f32.mxu0 0.0
    %267 = vmatmul.mubr.f32.gmra.mxu0 %v98
    %v268 = vpop.f32.mrf.mxu0
    %v269 = vadd.f32 %v173, %v268
    %v270 = vpop.f32.mrf.mxu0
    %v271 = vadd.f32 %v177, %v270
    %272 = vmatprep.mubr.f32.mxu0 0.0
    %273 = vmatmul.mubr.f32.gmra.mxu0 %v99
    %v274 = vpop.f32.mrf.mxu0
    %v275 = vadd.f32 %v173, %v274
    %v276 = vpop.f32.mrf.mxu0
    %v277 = vadd.f32 %v177, %v276
    %278 = vmatprep.mubr.f32.mxu0 0.0
    %279 = vmatmul.mubr.f32.gmra.mxu0 %v100
    %v280 = vpop.f32.mrf.mxu0
    %v281 = vadd.f32 %v173, %v280
    %v282 = vpop.f32.mrf.mxu0
    %v283 = vadd.f32 %v177, %v282
    %284 = vmatprep.mubr.f32.mxu0 0.0
    %285 = vmatmul.mubr.f32.gmra.mxu0 %v101
    %v286 = vpop.f32.mrf.mxu0
    %v287 = vadd.f32 %v173, %v286
    %v288 = vpop.f32.mrf.mxu0
    %v289 = vadd.f32 %v177, %v288
    %290 = vmatprep.mubr.f32.mxu0 0.0
    %291 = vmatmul.mubr.f32.gmra.mxu0 %v102
    %v292 = vpop.f32.mrf.mxu0
    %v293 = vadd.f32 %v173, %v292
    %v294 = vpop.f32.mrf.mxu0
    %v295 = vadd.f32 %v177, %v294
    %296 = vmatprep.mubr.f32.mxu0 0.0
    %297 = vmatmul.mubr.f32.gmra.mxu0 %v103
    %v298 = vpop.f32.mrf.mxu0
    %v299 = vadd.f32 %v173, %v298
    %v300 = vpop.f32.mrf.mxu0
    %v301 = vadd.f32 %v177, %v300
    %302 = vdwg.mxu0
    %303 = vmatprep.subr.mxu0 %v167
    %304 = vmatpush1.msra.mxu0 %v166
    %305 = vmatprep.subr.mxu0 %v163
    %306 = vmatpush1.msra.mxu0 %v162
    %307 = vmatprep.subr.mxu0 %v159
    %308 = vmatpush1.msra.mxu0 %v158
    %309 = vmatprep.subr.mxu0 %v155
    %310 = vmatpush1.msra.mxu0 %v154
    %311 = vmatprep.subr.mxu0 %v151
    %312 = vmatpush1.msra.mxu0 %v150
    %313 = vmatprep.subr.mxu0 %v147
    %314 = vmatpush1.msra.mxu0 %v146
    %315 = vmatprep.subr.mxu0 %v143
    %316 = vmatpush1.msra.mxu0 %v142
    %317 = vmatprep.subr.mxu0 %v139
    %318 = vmatpush1.msra.mxu0 %v138
    %319 = vmatprep.subr.mxu0 %v135
    %320 = vmatpush1.msra.mxu0 %v134
    %321 = vmatprep.subr.mxu0 %v131
    %322 = vmatpush1.msra.mxu0 %v130
    %323 = vmatprep.subr.mxu0 %v127
    %324 = vmatpush1.msra.mxu0 %v126
    %325 = vmatprep.subr.mxu0 %v123
    %326 = vmatpush1.msra.mxu0 %v122
    %327 = vmatprep.subr.mxu0 %v119
    %328 = vmatpush1.msra.mxu0 %v118
    %329 = vmatprep.subr.mxu0 %v115
    %330 = vmatpush1.msra.mxu0 %v114
    %331 = vmatprep.subr.mxu0 %v111
    %332 = vmatpush1.msra.mxu0 %v110
    %333 = vmatprep.subr.mxu0 %v107
    %334 = vmatpush1.msra.mxu0 %v106
    %335 = vmatprep.subr.mxu0 0.0
    %336 = vmatpush2.msra.mxu0 0.0
    %337 = vmatprep.subr.mxu0 0.0
    %338 = vmatpush2.msra.mxu0 0.0
    %339 = vmatprep.subr.mxu0 0.0
    %340 = vmatpush2.msra.mxu0 0.0
    %341 = vmatprep.subr.mxu0 0.0
    %342 = vmatpush2.msra.mxu0 0.0
    %343 = vmatprep.subr.mxu0 0.0
    %344 = vmatpush2.msra.mxu0 0.0
    %345 = vmatprep.subr.mxu0 0.0
    %346 = vmatpush2.msra.mxu0 0.0
    %347 = vmatprep.subr.mxu0 0.0
    %348 = vmatpush2.msra.mxu0 0.0
    %349 = vmatprep.subr.mxu0 0.0
    %350 = vmatpush2.msra.mxu0 0.0
    %351 = vmatprep.subr.mxu0 0.0
    %352 = vmatpush2.msra.mxu0 0.0
    %353 = vmatprep.subr.mxu0 0.0
    %354 = vmatpush2.msra.mxu0 0.0
    %355 = vmatprep.subr.mxu0 0.0
    %356 = vmatpush2.msra.mxu0 0.0
    %357 = vmatprep.subr.mxu0 0.0
    %358 = vmatpush2.msra.mxu0 0.0
    %359 = vmatprep.subr.mxu0 0.0
    %360 = vmatpush2.msra.mxu0 0.0
    %361 = vmatprep.subr.mxu0 0.0
    %362 = vmatpush2.msra.mxu0 0.0
    %363 = vmatprep.subr.mxu0 0.0
    %364 = vmatpush2.msra.mxu0 0.0
    %365 = vmatprep.subr.mxu0 0.0
    %366 = vmatpush2.msra.mxu0 0.0
    %367 = vmatprep.mubr.f32.mxu0 0.0
    %368 = vmatmul.mubr.f32.gmra.mxu0 %v96
    %v369 = vpop.f32.mrf.mxu0
    %v370 = vadd.f32 %v181, %v369
    %v371 = vpop.f32.mrf.mxu0
    %v372 = vadd.f32 %v185, %v371
    %373 = vmatprep.mubr.f32.mxu0 0.0
    %374 = vmatmul.mubr.f32.gmra.mxu0 %v97
    %v375 = vpop.f32.mrf.mxu0
    %v376 = vadd.f32 %v181, %v375
    %v377 = vpop.f32.mrf.mxu0
    %v378 = vadd.f32 %v185, %v377
    %379 = vmatprep.mubr.f32.mxu0 0.0
    %380 = vmatmul.mubr.f32.gmra.mxu0 %v98
    %v381 = vpop.f32.mrf.mxu0
    %v382 = vadd.f32 %v181, %v381
    %v383 = vpop.f32.mrf.mxu0
    %v384 = vadd.f32 %v185, %v383
    %385 = vmatprep.mubr.f32.mxu0 0.0
    %386 = vmatmul.mubr.f32.gmra.mxu0 %v99
    %v387 = vpop.f32.mrf.mxu0
    %v388 = vadd.f32 %v181, %v387
    %v389 = vpop.f32.mrf.mxu0
    %v390 = vadd.f32 %v185, %v389
    %391 = vmatprep.mubr.f32.mxu0 0.0
    %392 = vmatmul.mubr.f32.gmra.mxu0 %v100
    %v393 = vpop.f32.mrf.mxu0
    %v394 = vadd.f32 %v181, %v393
    %v395 = vpop.f32.mrf.mxu0
    %v396 = vadd.f32 %v185, %v395
    %397 = vmatprep.mubr.f32.mxu0 0.0
    %398 = vmatmul.mubr.f32.gmra.mxu0 %v101
    %v399 = vpop.f32.mrf.mxu0
    %v400 = vadd.f32 %v181, %v399
    %v401 = vpop.f32.mrf.mxu0
    %v402 = vadd.f32 %v185, %v401
    %403 = vmatprep.mubr.f32.mxu0 0.0
    %404 = vmatmul.mubr.f32.gmra.mxu0 %v102
    %v405 = vpop.f32.mrf.mxu0
    %v406 = vadd.f32 %v181, %v405
    %v407 = vpop.f32.mrf.mxu0
    %v408 = vadd.f32 %v185, %v407
    %409 = vmatprep.mubr.f32.mxu0 0.0
    %410 = vmatmul.mubr.f32.gmra.mxu0 %v103
    %v411 = vpop.f32.mrf.mxu0
    %v412 = vadd.f32 %v181, %v411
    %v413 = vpop.f32.mrf.mxu0
    %v414 = vadd.f32 %v185, %v413
    %415 = vdwg.mxu0
    %416 = vst [vmem:[#allocation2] sm:$0xff] %v257
    %417 = vst [vmem:[#allocation2 + $0x8] sm:$0xff] %v259
    %418 = vst [vmem:[#allocation2 + $0x10] sm:$0xff] %v370
    %419 = vst [vmem:[#allocation2 + $0x18] sm:$0xff] %v372
    %420 = vst [vmem:[#allocation2 + $0x20] sm:$0xff] %v263
    %421 = vst [vmem:[#allocation2 + $0x28] sm:$0xff] %v265
    %422 = vst [vmem:[#allocation2 + $0x30] sm:$0xff] %v376
    %423 = vst [vmem:[#allocation2 + $0x38] sm:$0xff] %v378
    %424 = vst [vmem:[#allocation2 + $0x40] sm:$0xff] %v269
    %425 = vst [vmem:[#allocation2 + $0x48] sm:$0xff] %v271
    %426 = vst [vmem:[#allocation2 + $0x50] sm:$0xff] %v382
    %427 = vst [vmem:[#allocation2 + $0x58] sm:$0xff] %v384
    %428 = vst [vmem:[#allocation2 + $0x60] sm:$0xff] %v275
    %429 = vst [vmem:[#allocation2 + $0x68] sm:$0xff] %v277
    %430 = vst [vmem:[#allocation2 + $0x70] sm:$0xff] %v388
    %431 = vst [vmem:[#allocation2 + $0x78] sm:$0xff] %v390
    %432 = vst [vmem:[#allocation2 + $0x80] sm:$0xff] %v281
    %433 = vst [vmem:[#allocation2 + $0x88] sm:$0xff] %v283
    %434 = vst [vmem:[#allocation2 + $0x90] sm:$0xff] %v394
    %435 = vst [vmem:[#allocation2 + $0x98] sm:$0xff] %v396
    %436 = vst [vmem:[#allocation2 + $0xa0] sm:$0xff] %v287
    %437 = vst [vmem:[#allocation2 + $0xa8] sm:$0xff] %v289
    %438 = vst [vmem:[#allocation2 + $0xb0] sm:$0xff] %v400
    %439 = vst [vmem:[#allocation2 + $0xb8] sm:$0xff] %v402
    %440 = vst [vmem:[#allocation2 + $0xc0] sm:$0xff] %v293
    %441 = vst [vmem:[#allocation2 + $0xc8] sm:$0xff] %v295
    %442 = vst [vmem:[#allocation2 + $0xd0] sm:$0xff] %v406
    %443 = vst [vmem:[#allocation2 + $0xd8] sm:$0xff] %v408
    %444 = vst [vmem:[#allocation2 + $0xe0] sm:$0xff] %v299
    %445 = vst [vmem:[#allocation2 + $0xe8] sm:$0xff] %v301
    %446 = vst [vmem:[#allocation2 + $0xf0] sm:$0xff] %v412
    %447 = vst [vmem:[#allocation2 + $0xf8] sm:$0xff] %v414
    %v448 = vld [vmem:[#allocation6] sm:$0xff]
    %v449 = vld [vmem:[#allocation6 + $0x8] sm:$0xff]
    %v450 = vld [vmem:[#allocation6 + $0x10] sm:$0xff]
    %v451 = vld [vmem:[#allocation6 + $0x18] sm:$0xff]
    %v452 = vld [vmem:[#allocation6 + $0x20] sm:$0xff]
    %v453 = vld [vmem:[#allocation6 + $0x28] sm:$0xff]
    %v454 = vld [vmem:[#allocation6 + $0x30] sm:$0xff]
    %v455 = vld [vmem:[#allocation6 + $0x38] sm:$0xff]
    %v456 = vld [vmem:[#allocation6 + $0x40] sm:$0xff]
    %v457 = vld [vmem:[#allocation6 + $0x48] sm:$0xff]
    %v458 = vld [vmem:[#allocation6 + $0x50] sm:$0xff]
    %v459 = vld [vmem:[#allocation6 + $0x58] sm:$0xff]
    %v460 = vld [vmem:[#allocation6 + $0x60] sm:$0xff]
    %v461 = vld [vmem:[#allocation6 + $0x68] sm:$0xff]
    %v462 = vld [vmem:[#allocation6 + $0x70] sm:$0xff]
    %v463 = vld [vmem:[#allocation6 + $0x78] sm:$0xff]
    %v464 = vld [vmem:[#allocation6 + $0x80] sm:$0xff]
    %v465 = vld [vmem:[#allocation6 + $0x88] sm:$0xff]
    %v466 = vld [vmem:[#allocation6 + $0x90] sm:$0xff]
    %v467 = vld [vmem:[#allocation6 + $0x98] sm:$0xff]
    %v468 = vld [vmem:[#allocation6 + $0xa0] sm:$0xff]
    %v469 = vld [vmem:[#allocation6 + $0xa8] sm:$0xff]
    %v470 = vld [vmem:[#allocation6 + $0xb0] sm:$0xff]
    %v471 = vld [vmem:[#allocation6 + $0xb8] sm:$0xff]
    %v472 = vld [vmem:[#allocation6 + $0xc0] sm:$0xff]
    %v473 = vld [vmem:[#allocation6 + $0xc8] sm:$0xff]
    %v474 = vld [vmem:[#allocation6 + $0xd0] sm:$0xff]
    %v475 = vld [vmem:[#allocation6 + $0xd8] sm:$0xff]
    %v476 = vld [vmem:[#allocation6 + $0xe0] sm:$0xff]
    %v477 = vld [vmem:[#allocation6 + $0xe8] sm:$0xff]
    %v478 = vld [vmem:[#allocation6 + $0xf0] sm:$0xff]
    %v479 = vld [vmem:[#allocation6 + $0xf8] sm:$0xff]
    %v480 = vld [vmem:[#allocation6 + $0x100] sm:$0xff]
    %v481 = vld [vmem:[#allocation6 + $0x108] sm:$0xff]
    %v482 = vld [vmem:[#allocation6 + $0x110] sm:$0xff]
    %v483 = vld [vmem:[#allocation6 + $0x118] sm:$0xff]
    %v484 = vld [vmem:[#allocation6 + $0x120] sm:$0xff]
    %v485 = vld [vmem:[#allocation6 + $0x128] sm:$0xff]
    %v486 = vld [vmem:[#allocation6 + $0x130] sm:$0xff]
    %v487 = vld [vmem:[#allocation6 + $0x138] sm:$0xff]
    %v488 = vld [vmem:[#allocation6 + $0x140] sm:$0xff]
    %v489 = vld [vmem:[#allocation6 + $0x148] sm:$0xff]
    %v490 = vld [vmem:[#allocation6 + $0x150] sm:$0xff]
    %v491 = vld [vmem:[#allocation6 + $0x158] sm:$0xff]
    %v492 = vld [vmem:[#allocation6 + $0x160] sm:$0xff]
    %v493 = vld [vmem:[#allocation6 + $0x168] sm:$0xff]
    %v494 = vld [vmem:[#allocation6 + $0x170] sm:$0xff]
    %v495 = vld [vmem:[#allocation6 + $0x178] sm:$0xff]
    %v496 = vld [vmem:[#allocation6 + $0x180] sm:$0xff]
    %v497 = vld [vmem:[#allocation6 + $0x188] sm:$0xff]
    %v498 = vld [vmem:[#allocation6 + $0x190] sm:$0xff]
    %v499 = vld [vmem:[#allocation6 + $0x198] sm:$0xff]
    %v500 = vld [vmem:[#allocation6 + $0x1a0] sm:$0xff]
    %v501 = vld [vmem:[#allocation6 + $0x1a8] sm:$0xff]
    %v502 = vld [vmem:[#allocation6 + $0x1b0] sm:$0xff]
    %v503 = vld [vmem:[#allocation6 + $0x1b8] sm:$0xff]
    %v504 = vld [vmem:[#allocation6 + $0x1c0] sm:$0xff]
    %v505 = vld [vmem:[#allocation6 + $0x1c8] sm:$0xff]
    %v506 = vld [vmem:[#allocation6 + $0x1d0] sm:$0xff]
    %v507 = vld [vmem:[#allocation6 + $0x1d8] sm:$0xff]
    %v508 = vld [vmem:[#allocation6 + $0x1e0] sm:$0xff]
    %v509 = vld [vmem:[#allocation6 + $0x1e8] sm:$0xff]
    %v510 = vld [vmem:[#allocation6 + $0x1f0] sm:$0xff]
    %v511 = vld [vmem:[#allocation6 + $0x1f8] sm:$0xff]
    %v512 = vld [vmem:[%s7] sm:$0xff]
    %v513 = vld [vmem:[%s8] sm:$0xff]
    %s514 = smul.u32 0, 4
    %s515 = smul.addr %s514, 8
    %s516 = scalar_lea.vmem [#allocation2], %s515
    %v517 = vld [vmem:[%s516] sm:$0xff]
    %v518 = vld [vmem:[%s516 + $0x8] sm:$0xff]
    %v519 = vld [vmem:[%s516 + $0x10] sm:$0xff]
    %v520 = vld [vmem:[%s516 + $0x18] sm:$0xff]
    %521 = vmatprep.subr.mxu0 %v509
    %522 = vmatpush1.msra.mxu0 %v508
    %523 = vmatprep.subr.mxu0 %v505
    %524 = vmatpush1.msra.mxu0 %v504
    %525 = vmatprep.subr.mxu0 %v501
    %526 = vmatpush1.msra.mxu0 %v500
    %527 = vmatprep.subr.mxu0 %v497
    %528 = vmatpush1.msra.mxu0 %v496
    %529 = vmatprep.subr.mxu0 %v493
    %530 = vmatpush1.msra.mxu0 %v492
    %531 = vmatprep.subr.mxu0 %v489
    %532 = vmatpush1.msra.mxu0 %v488
    %533 = vmatprep.subr.mxu0 %v485
    %534 = vmatpush1.msra.mxu0 %v484
    %535 = vmatprep.subr.mxu0 %v481
    %536 = vmatpush1.msra.mxu0 %v480
    %537 = vmatprep.subr.mxu0 %v477
    %538 = vmatpush1.msra.mxu0 %v476
    %539 = vmatprep.subr.mxu0 %v473
    %540 = vmatpush1.msra.mxu0 %v472
    %541 = vmatprep.subr.mxu0 %v469
    %542 = vmatpush1.msra.mxu0 %v468
    %543 = vmatprep.subr.mxu0 %v465
    %544 = vmatpush1.msra.mxu0 %v464
    %545 = vmatprep.subr.mxu0 %v461
    %546 = vmatpush1.msra.mxu0 %v460
    %547 = vmatprep.subr.mxu0 %v457
    %548 = vmatpush1.msra.mxu0 %v456
    %549 = vmatprep.subr.mxu0 %v453
    %550 = vmatpush1.msra.mxu0 %v452
    %551 = vmatprep.subr.mxu0 %v449
    %552 = vmatpush1.msra.mxu0 %v448
    %553 = vmatprep.subr.mxu0 0.0
    %554 = vmatpush2.msra.mxu0 0.0
    %555 = vmatprep.subr.mxu0 0.0
    %556 = vmatpush2.msra.mxu0 0.0
    %557 = vmatprep.subr.mxu0 0.0
    %558 = vmatpush2.msra.mxu0 0.0
    %559 = vmatprep.subr.mxu0 0.0
    %560 = vmatpush2.msra.mxu0 0.0
    %561 = vmatprep.subr.mxu0 0.0
    %562 = vmatpush2.msra.mxu0 0.0
    %563 = vmatprep.subr.mxu0 0.0
    %564 = vmatpush2.msra.mxu0 0.0
    %565 = vmatprep.subr.mxu0 0.0
    %566 = vmatpush2.msra.mxu0 0.0
    %567 = vmatprep.subr.mxu0 0.0
    %568 = vmatpush2.msra.mxu0 0.0
    %569 = vmatprep.subr.mxu0 0.0
    %570 = vmatpush2.msra.mxu0 0.0
    %571 = vmatprep.subr.mxu0 0.0
    %572 = vmatpush2.msra.mxu0 0.0
    %573 = vmatprep.subr.mxu0 0.0
    %574 = vmatpush2.msra.mxu0 0.0
    %575 = vmatprep.subr.mxu0 0.0
    %576 = vmatpush2.msra.mxu0 0.0
    %577 = vmatprep.subr.mxu0 0.0
    %578 = vmatpush2.msra.mxu0 0.0
    %579 = vmatprep.subr.mxu0 0.0
    %580 = vmatpush2.msra.mxu0 0.0
    %581 = vmatprep.subr.mxu0 0.0
    %582 = vmatpush2.msra.mxu0 0.0
    %583 = vmatprep.subr.mxu0 0.0
    %584 = vmatpush2.msra.mxu0 0.0
    %585 = vmatprep.mubr.f32.mxu0 0.0
    %586 = vmatmul.mubr.f32.gmra.mxu0 %v512
    %v587 = vpop.f32.mrf.mxu0
    %v588 = vadd.f32 0.0, %v587
    %v589 = vpop.f32.mrf.mxu0
    %v590 = vadd.f32 0.0, %v589
    %591 = vdwg.mxu0
    %592 = vmatprep.subr.mxu0 %v511
    %593 = vmatpush1.msra.mxu0 %v510
    %594 = vmatprep.subr.mxu0 %v507
    %595 = vmatpush1.msra.mxu0 %v506
    %596 = vmatprep.subr.mxu0 %v503
    %597 = vmatpush1.msra.mxu0 %v502
    %598 = vmatprep.subr.mxu0 %v499
    %599 = vmatpush1.msra.mxu0 %v498
    %600 = vmatprep.subr.mxu0 %v495
    %601 = vmatpush1.msra.mxu0 %v494
    %602 = vmatprep.subr.mxu0 %v491
    %603 = vmatpush1.msra.mxu0 %v490
    %604 = vmatprep.subr.mxu0 %v487
    %605 = vmatpush1.msra.mxu0 %v486
    %606 = vmatprep.subr.mxu0 %v483
    %607 = vmatpush1.msra.mxu0 %v482
    %608 = vmatprep.subr.mxu0 %v479
    %609 = vmatpush1.msra.mxu0 %v478
    %610 = vmatprep.subr.mxu0 %v475
    %611 = vmatpush1.msra.mxu0 %v474
    %612 = vmatprep.subr.mxu0 %v471
    %613 = vmatpush1.msra.mxu0 %v470
    %614 = vmatprep.subr.mxu0 %v467
    %615 = vmatpush1.msra.mxu0 %v466
    %616 = vmatprep.subr.mxu0 %v463
    %617 = vmatpush1.msra.mxu0 %v462
    %618 = vmatprep.subr.mxu0 %v459
    %619 = vmatpush1.msra.mxu0 %v458
    %620 = vmatprep.subr.mxu0 %v455
    %621 = vmatpush1.msra.mxu0 %v454
    %622 = vmatprep.subr.mxu0 %v451
    %623 = vmatpush1.msra.mxu0 %v450
    %624 = vmatprep.subr.mxu0 0.0
    %625 = vmatpush2.msra.mxu0 0.0
    %626 = vmatprep.subr.mxu0 0.0
    %627 = vmatpush2.msra.mxu0 0.0
    %628 = vmatprep.subr.mxu0 0.0
    %629 = vmatpush2.msra.mxu0 0.0
    %630 = vmatprep.subr.mxu0 0.0
    %631 = vmatpush2.msra.mxu0 0.0
    %632 = vmatprep.subr.mxu0 0.0
    %633 = vmatpush2.msra.mxu0 0.0
    %634 = vmatprep.subr.mxu0 0.0
    %635 = vmatpush2.msra.mxu0 0.0
    %636 = vmatprep.subr.mxu0 0.0
    %637 = vmatpush2.msra.mxu0 0.0
    %638 = vmatprep.subr.mxu0 0.0
    %639 = vmatpush2.msra.mxu0 0.0
    %640 = vmatprep.subr.mxu0 0.0
    %641 = vmatpush2.msra.mxu0 0.0
    %642 = vmatprep.subr.mxu0 0.0
    %643 = vmatpush2.msra.mxu0 0.0
    %644 = vmatprep.subr.mxu0 0.0
    %645 = vmatpush2.msra.mxu0 0.0
    %646 = vmatprep.subr.mxu0 0.0
    %647 = vmatpush2.msra.mxu0 0.0
    %648 = vmatprep.subr.mxu0 0.0
    %649 = vmatpush2.msra.mxu0 0.0
    %650 = vmatprep.subr.mxu0 0.0
    %651 = vmatpush2.msra.mxu0 0.0
    %652 = vmatprep.subr.mxu0 0.0
    %653 = vmatpush2.msra.mxu0 0.0
    %654 = vmatprep.subr.mxu0 0.0
    %655 = vmatpush2.msra.mxu0 0.0
    %656 = vmatprep.mubr.f32.mxu0 0.0
    %657 = vmatmul.mubr.f32.gmra.mxu0 %v512
    %v658 = vpop.f32.mrf.mxu0
    %v659 = vadd.f32 0.0, %v658
    %v660 = vpop.f32.mrf.mxu0
    %v661 = vadd.f32 0.0, %v660
    %662 = vdwg.mxu0
    %v663 = vadd.f32 %v517, %v588
    %v664 = vadd.f32 %v518, %v590
    %v665 = vadd.f32 %v519, %v659
    %v666 = vadd.f32 %v520, %v661
    %v667 = vxor.u32 %v663, 2147483648
    %v668 = vmul.f32 %v667, 1.442695
    %v669 = vpow.pop %v668
    %v670 = vadd.f32 %v669, 1.0
    %v671 = vrcp.pop %v670
    %v672 = vmul.f32 1.0, %v671
    %v673 = vxor.u32 %v664, 2147483648
    %v674 = vmul.f32 %v673, 1.442695
    %v675 = vpow.pop %v674
    %v676 = vadd.f32 %v675, 1.0
    %v677 = vrcp.pop %v676
    %v678 = vmul.f32 1.0, %v677
    %v679 = vtanh.pop %v665
    %v680 = vxor.u32 %v666, 2147483648
    %v681 = vmul.f32 %v680, 1.442695
    %v682 = vpow.pop %v681
    %v683 = vadd.f32 %v682, 1.0
    %v684 = vrcp.pop %v683
    %v685 = vmul.f32 1.0, %v684
    %v686 = vmul.f32 %v678, %v513
    %v687 = vmul.f32 %v672, %v679
    %v688 = vadd.f32 %v686, %v687
    %v689 = vtanh.pop %v688
    %v690 = vmul.f32 %v685, %v689
    %691 = vst [vmem:[#allocation3] sm:$0xff] %v690
    %s692 = smul.u32 1, 4
    %s693 = smul.addr %s692, 8
    %s694 = scalar_lea.vmem [#allocation2], %s693
    %v695 = vld [vmem:[%s694] sm:$0xff]
    %v696 = vld [vmem:[%s694 + $0x8] sm:$0xff]
    %v697 = vld [vmem:[%s694 + $0x10] sm:$0xff]
    %v698 = vld [vmem:[%s694 + $0x18] sm:$0xff]
    %699 = vmatprep.subr.mxu0 %v509
    %700 = vmatpush1.msra.mxu0 %v508
    %701 = vmatprep.subr.mxu0 %v505
    %702 = vmatpush1.msra.mxu0 %v504
    %703 = vmatprep.subr.mxu0 %v501
    %704 = vmatpush1.msra.mxu0 %v500
    %705 = vmatprep.subr.mxu0 %v497
    %706 = vmatpush1.msra.mxu0 %v496
    %707 = vmatprep.subr.mxu0 %v493
    %708 = vmatpush1.msra.mxu0 %v492
    %709 = vmatprep.subr.mxu0 %v489
    %710 = vmatpush1.msra.mxu0 %v488
    %711 = vmatprep.subr.mxu0 %v485
    %712 = vmatpush1.msra.mxu0 %v484
    %713 = vmatprep.subr.mxu0 %v481
    %714 = vmatpush1.msra.mxu0 %v480
    %715 = vmatprep.subr.mxu0 %v477
    %716 = vmatpush1.msra.mxu0 %v476
    %717 = vmatprep.subr.mxu0 %v473
    %718 = vmatpush1.msra.mxu0 %v472
    %719 = vmatprep.subr.mxu0 %v469
    %720 = vmatpush1.msra.mxu0 %v468
    %721 = vmatprep.subr.mxu0 %v465
    %722 = vmatpush1.msra.mxu0 %v464
    %723 = vmatprep.subr.mxu0 %v461
    %724 = vmatpush1.msra.mxu0 %v460
    %725 = vmatprep.subr.mxu0 %v457
    %726 = vmatpush1.msra.mxu0 %v456
    %727 = vmatprep.subr.mxu0 %v453
    %728 = vmatpush1.msra.mxu0 %v452
    %729 = vmatprep.subr.mxu0 %v449
    %730 = vmatpush1.msra.mxu0 %v448
    %731 = vmatprep.subr.mxu0 0.0
    %732 = vmatpush2.msra.mxu0 0.0
    %733 = vmatprep.subr.mxu0 0.0
    %734 = vmatpush2.msra.mxu0 0.0
    %735 = vmatprep.subr.mxu0 0.0
    %736 = vmatpush2.msra.mxu0 0.0
    %737 = vmatprep.subr.mxu0 0.0
    %738 = vmatpush2.msra.mxu0 0.0
    %739 = vmatprep.subr.mxu0 0.0
    %740 = vmatpush2.msra.mxu0 0.0
    %741 = vmatprep.subr.mxu0 0.0
    %742 = vmatpush2.msra.mxu0 0.0
    %743 = vmatprep.subr.mxu0 0.0
    %744 = vmatpush2.msra.mxu0 0.0
    %745 = vmatprep.subr.mxu0 0.0
    %746 = vmatpush2.msra.mxu0 0.0
    %747 = vmatprep.subr.mxu0 0.0
    %748 = vmatpush2.msra.mxu0 0.0
    %749 = vmatprep.subr.mxu0 0.0
    %750 = vmatpush2.msra.mxu0 0.0
    %751 = vmatprep.subr.mxu0 0.0
    %752 = vmatpush2.msra.mxu0 0.0
    %753 = vmatprep.subr.mxu0 0.0
    %754 = vmatpush2.msra.mxu0 0.0
    %755 = vmatprep.subr.mxu0 0.0
    %756 = vmatpush2.msra.mxu0 0.0
    %757 = vmatprep.subr.mxu0 0.0
    %758 = vmatpush2.msra.mxu0 0.0
    %759 = vmatprep.subr.mxu0 0.0
    %760 = vmatpush2.msra.mxu0 0.0
    %761 = vmatprep.subr.mxu0 0.0
    %762 = vmatpush2.msra.mxu0 0.0
    %763 = vmatprep.mubr.f32.mxu0 0.0
    %764 = vmatmul.mubr.f32.gmra.mxu0 %v690
    %v765 = vpop.f32.mrf.mxu0
    %v766 = vadd.f32 0.0, %v765
    %v767 = vpop.f32.mrf.mxu0
    %v768 = vadd.f32 0.0, %v767
    %769 = vdwg.mxu0
    %770 = vmatprep.subr.mxu0 %v511
    %771 = vmatpush1.msra.mxu0 %v510
    %772 = vmatprep.subr.mxu0 %v507
    %773 = vmatpush1.msra.mxu0 %v506
    %774 = vmatprep.subr.mxu0 %v503
    %775 = vmatpush1.msra.mxu0 %v502
    %776 = vmatprep.subr.mxu0 %v499
    %777 = vmatpush1.msra.mxu0 %v498
    %778 = vmatprep.subr.mxu0 %v495
    %779 = vmatpush1.msra.mxu0 %v494
    %780 = vmatprep.subr.mxu0 %v491
    %781 = vmatpush1.msra.mxu0 %v490
    %782 = vmatprep.subr.mxu0 %v487
    %783 = vmatpush1.msra.mxu0 %v486
    %784 = vmatprep.subr.mxu0 %v483
    %785 = vmatpush1.msra.mxu0 %v482
    %786 = vmatprep.subr.mxu0 %v479
    %787 = vmatpush1.msra.mxu0 %v478
    %788 = vmatprep.subr.mxu0 %v475
    %789 = vmatpush1.msra.mxu0 %v474
    %790 = vmatprep.subr.mxu0 %v471
    %791 = vmatpush1.msra.mxu0 %v470
    %792 = vmatprep.subr.mxu0 %v467
    %793 = vmatpush1.msra.mxu0 %v466
    %794 = vmatprep.subr.mxu0 %v463
    %795 = vmatpush1.msra.mxu0 %v462
    %796 = vmatprep.subr.mxu0 %v459
    %797 = vmatpush1.msra.mxu0 %v458
    %798 = vmatprep.subr.mxu0 %v455
    %799 = vmatpush1.msra.mxu0 %v454
    %800 = vmatprep.subr.mxu0 %v451
    %801 = vmatpush1.msra.mxu0 %v450
    %802 = vmatprep.subr.mxu0 0.0
    %803 = vmatpush2.msra.mxu0 0.0
    %804 = vmatprep.subr.mxu0 0.0
    %805 = vmatpush2.msra.mxu0 0.0
    %806 = vmatprep.subr.mxu0 0.0
    %807 = vmatpush2.msra.mxu0 0.0
    %808 = vmatprep.subr.mxu0 0.0
    %809 = vmatpush2.msra.mxu0 0.0
    %810 = vmatprep.subr.mxu0 0.0
    %811 = vmatpush2.msra.mxu0 0.0
    %812 = vmatprep.subr.mxu0 0.0
    %813 = vmatpush2.msra.mxu0 0.0
    %814 = vmatprep.subr.mxu0 0.0
    %815 = vmatpush2.msra.mxu0 0.0
    %816 = vmatprep.subr.mxu0 0.0
    %817 = vmatpush2.msra.mxu0 0.0
    %818 = vmatprep.subr.mxu0 0.0
    %819 = vmatpush2.msra.mxu0 0.0
    %820 = vmatprep.subr.mxu0 0.0
    %821 = vmatpush2.msra.mxu0 0.0
    %822 = vmatprep.subr.mxu0 0.0
    %823 = vmatpush2.msra.mxu0 0.0
    %824 = vmatprep.subr.mxu0 0.0
    %825 = vmatpush2.msra.mxu0 0.0
    %826 = vmatprep.subr.mxu0 0.0
    %827 = vmatpush2.msra.mxu0 0.0
    %828 = vmatprep.subr.mxu0 0.0
    %829 = vmatpush2.msra.mxu0 0.0
    %830 = vmatprep.subr.mxu0 0.0
    %831 = vmatpush2.msra.mxu0 0.0
    %832 = vmatprep.subr.mxu0 0.0
    %833 = vmatpush2.msra.mxu0 0.0
    %834 = vmatprep.mubr.f32.mxu0 0.0
    %835 = vmatmul.mubr.f32.gmra.mxu0 %v690
    %v836 = vpop.f32.mrf.mxu0
    %v837 = vadd.f32 0.0, %v836
    %v838 = vpop.f32.mrf.mxu0
    %v839 = vadd.f32 0.0, %v838
    %840 = vdwg.mxu0
    %v841 = vadd.f32 %v695, %v766
    %v842 = vadd.f32 %v696, %v768
    %v843 = vadd.f32 %v697, %v837
    %v844 = vadd.f32 %v698, %v839
    %v845 = vxor.u32 %v841, 2147483648
    %v846 = vmul.f32 %v845, 1.442695
    %v847 = vpow.pop %v846
    %v848 = vadd.f32 %v847, 1.0
    %v849 = vrcp.pop %v848
    %v850 = vmul.f32 1.0, %v849
    %v851 = vxor.u32 %v842, 2147483648
    %v852 = vmul.f32 %v851, 1.442695
    %v853 = vpow.pop %v852
    %v854 = vadd.f32 %v853, 1.0
    %v855 = vrcp.pop %v854
    %v856 = vmul.f32 1.0, %v855
    %v857 = vtanh.pop %v843
    %v858 = vxor.u32 %v844, 2147483648
    %v859 = vmul.f32 %v858, 1.442695
    %v860 = vpow.pop %v859
    %v861 = vadd.f32 %v860, 1.0
    %v862 = vrcp.pop %v861
    %v863 = vmul.f32 1.0, %v862
    %v864 = vmul.f32 %v856, %v688
    %v865 = vmul.f32 %v850, %v857
    %v866 = vadd.f32 %v864, %v865
    %v867 = vtanh.pop %v866
    %v868 = vmul.f32 %v863, %v867
    %s869 = scalar_lea.vmem [#allocation3], 8
    %870 = vst [vmem:[%s869] sm:$0xff] %v868
    %s871 = smul.u32 2, 4
    %s872 = smul.addr %s871, 8
    %s873 = scalar_lea.vmem [#allocation2], %s872
    %v874 = vld [vmem:[%s873] sm:$0xff]
    %v875 = vld [vmem:[%s873 + $0x8] sm:$0xff]
    %v876 = vld [vmem:[%s873 + $0x10] sm:$0xff]
    %v877 = vld [vmem:[%s873 + $0x18] sm:$0xff]
    %878 = vmatprep.subr.mxu0 %v509
    %879 = vmatpush1.msra.mxu0 %v508
    %880 = vmatprep.subr.mxu0 %v505
    %881 = vmatpush1.msra.mxu0 %v504
    %882 = vmatprep.subr.mxu0 %v501
    %883 = vmatpush1.msra.mxu0 %v500
    %884 = vmatprep.subr.mxu0 %v497
    %885 = vmatpush1.msra.mxu0 %v496
    %886 = vmatprep.subr.mxu0 %v493
    %887 = vmatpush1.msra.mxu0 %v492
    %888 = vmatprep.subr.mxu0 %v489
    %889 = vmatpush1.msra.mxu0 %v488
    %890 = vmatprep.subr.mxu0 %v485
    %891 = vmatpush1.msra.mxu0 %v484
    %892 = vmatprep.subr.mxu0 %v481
    %893 = vmatpush1.msra.mxu0 %v480
    %894 = vmatprep.subr.mxu0 %v477
    %895 = vmatpush1.msra.mxu0 %v476
    %896 = vmatprep.subr.mxu0 %v473
    %897 = vmatpush1.msra.mxu0 %v472
    %898 = vmatprep.subr.mxu0 %v469
    %899 = vmatpush1.msra.mxu0 %v468
    %900 = vmatprep.subr.mxu0 %v465
    %901 = vmatpush1.msra.mxu0 %v464
    %902 = vmatprep.subr.mxu0 %v461
    %903 = vmatpush1.msra.mxu0 %v460
    %904 = vmatprep.subr.mxu0 %v457
    %905 = vmatpush1.msra.mxu0 %v456
    %906 = vmatprep.subr.mxu0 %v453
    %907 = vmatpush1.msra.mxu0 %v452
    %908 = vmatprep.subr.mxu0 %v449
    %909 = vmatpush1.msra.mxu0 %v448
    %910 = vmatprep.subr.mxu0 0.0
    %911 = vmatpush2.msra.mxu0 0.0
    %912 = vmatprep.subr.mxu0 0.0
    %913 = vmatpush2.msra.mxu0 0.0
    %914 = vmatprep.subr.mxu0 0.0
    %915 = vmatpush2.msra.mxu0 0.0
    %916 = vmatprep.subr.mxu0 0.0
    %917 = vmatpush2.msra.mxu0 0.0
    %918 = vmatprep.subr.mxu0 0.0
    %919 = vmatpush2.msra.mxu0 0.0
    %920 = vmatprep.subr.mxu0 0.0
    %921 = vmatpush2.msra.mxu0 0.0
    %922 = vmatprep.subr.mxu0 0.0
    %923 = vmatpush2.msra.mxu0 0.0
    %924 = vmatprep.subr.mxu0 0.0
    %925 = vmatpush2.msra.mxu0 0.0
    %926 = vmatprep.subr.mxu0 0.0
    %927 = vmatpush2.msra.mxu0 0.0
    %928 = vmatprep.subr.mxu0 0.0
    %929 = vmatpush2.msra.mxu0 0.0
    %930 = vmatprep.subr.mxu0 0.0
    %931 = vmatpush2.msra.mxu0 0.0
    %932 = vmatprep.subr.mxu0 0.0
    %933 = vmatpush2.msra.mxu0 0.0
    %934 = vmatprep.subr.mxu0 0.0
    %935 = vmatpush2.msra.mxu0 0.0
    %936 = vmatprep.subr.mxu0 0.0
    %937 = vmatpush2.msra.mxu0 0.0
    %938 = vmatprep.subr.mxu0 0.0
    %939 = vmatpush2.msra.mxu0 0.0
    %940 = vmatprep.subr.mxu0 0.0
    %941 = vmatpush2.msra.mxu0 0.0
    %942 = vmatprep.mubr.f32.mxu0 0.0
    %943 = vmatmul.mubr.f32.gmra.mxu0 %v868
    %v944 = vpop.f32.mrf.mxu0
    %v945 = vadd.f32 0.0, %v944
    %v946 = vpop.f32.mrf.mxu0
    %v947 = vadd.f32 0.0, %v946
    %948 = vdwg.mxu0
    %949 = vmatprep.subr.mxu0 %v511
    %950 = vmatpush1.msra.mxu0 %v510
    %951 = vmatprep.subr.mxu0 %v507
    %952 = vmatpush1.msra.mxu0 %v506
    %953 = vmatprep.subr.mxu0 %v503
    %954 = vmatpush1.msra.mxu0 %v502
    %955 = vmatprep.subr.mxu0 %v499
    %956 = vmatpush1.msra.mxu0 %v498
    %957 = vmatprep.subr.mxu0 %v495
    %958 = vmatpush1.msra.mxu0 %v494
    %959 = vmatprep.subr.mxu0 %v491
    %960 = vmatpush1.msra.mxu0 %v490
    %961 = vmatprep.subr.mxu0 %v487
    %962 = vmatpush1.msra.mxu0 %v486
    %963 = vmatprep.subr.mxu0 %v483
    %964 = vmatpush1.msra.mxu0 %v482
    %965 = vmatprep.subr.mxu0 %v479
    %966 = vmatpush1.msra.mxu0 %v478
    %967 = vmatprep.subr.mxu0 %v475
    %968 = vmatpush1.msra.mxu0 %v474
    %969 = vmatprep.subr.mxu0 %v471
    %970 = vmatpush1.msra.mxu0 %v470
    %971 = vmatprep.subr.mxu0 %v467
    %972 = vmatpush1.msra.mxu0 %v466
    %973 = vmatprep.subr.mxu0 %v463
    %974 = vmatpush1.msra.mxu0 %v462
    %975 = vmatprep.subr.mxu0 %v459
    %976 = vmatpush1.msra.mxu0 %v458
    %977 = vmatprep.subr.mxu0 %v455
    %978 = vmatpush1.msra.mxu0 %v454
    %979 = vmatprep.subr.mxu0 %v451
    %980 = vmatpush1.msra.mxu0 %v450
    %981 = vmatprep.subr.mxu0 0.0
    %982 = vmatpush2.msra.mxu0 0.0
    %983 = vmatprep.subr.mxu0 0.0
    %984 = vmatpush2.msra.mxu0 0.0
    %985 = vmatprep.subr.mxu0 0.0
    %986 = vmatpush2.msra.mxu0 0.0
    %987 = vmatprep.subr.mxu0 0.0
    %988 = vmatpush2.msra.mxu0 0.0
    %989 = vmatprep.subr.mxu0 0.0
    %990 = vmatpush2.msra.mxu0 0.0
    %991 = vmatprep.subr.mxu0 0.0
    %992 = vmatpush2.msra.mxu0 0.0
    %993 = vmatprep.subr.mxu0 0.0
    %994 = vmatpush2.msra.mxu0 0.0
    %995 = vmatprep.subr.mxu0 0.0
    %996 = vmatpush2.msra.mxu0 0.0
    %997 = vmatprep.subr.mxu0 0.0
    %998 = vmatpush2.msra.mxu0 0.0
    %999 = vmatprep.subr.mxu0 0.0
    %1000 = vmatpush2.msra.mxu0 0.0
    %1001 = vmatprep.subr.mxu0 0.0
    %1002 = vmatpush2.msra.mxu0 0.0
    %1003 = vmatprep.subr.mxu0 0.0
    %1004 = vmatpush2.msra.mxu0 0.0
    %1005 = vmatprep.subr.mxu0 0.0
    %1006 = vmatpush2.msra.mxu0 0.0
    %1007 = vmatprep.subr.mxu0 0.0
    %1008 = vmatpush2.msra.mxu0 0.0
    %1009 = vmatprep.subr.mxu0 0.0
    %1010 = vmatpush2.msra.mxu0 0.0
    %1011 = vmatprep.subr.mxu0 0.0
    %1012 = vmatpush2.msra.mxu0 0.0
    %1013 = vmatprep.mubr.f32.mxu0 0.0
    %1014 = vmatmul.mubr.f32.gmra.mxu0 %v868
    %v1015 = vpop.f32.mrf.mxu0
    %v1016 = vadd.f32 0.0, %v1015
    %v1017 = vpop.f32.mrf.mxu0
    %v1018 = vadd.f32 0.0, %v1017
    %1019 = vdwg.mxu0
    %v1020 = vadd.f32 %v874, %v945
    %v1021 = vadd.f32 %v875, %v947
    %v1022 = vadd.f32 %v876, %v1016
    %v1023 = vadd.f32 %v877, %v1018
    %v1024 = vxor.u32 %v1020, 2147483648
    %v1025 = vmul.f32 %v1024, 1.442695
    %v1026 = vpow.pop %v1025
    %v1027 = vadd.f32 %v1026, 1.0
    %v1028 = vrcp.pop %v1027
    %v1029 = vmul.f32 1.0, %v1028
    %v1030 = vxor.u32 %v1021, 2147483648
    %v1031 = vmul.f32 %v1030, 1.442695
    %v1032 = vpow.pop %v1031
    %v1033 = vadd.f32 %v1032, 1.0
    %v1034 = vrcp.pop %v1033
    %v1035 = vmul.f32 1.0, %v1034
    %v1036 = vtanh.pop %v1022
    %v1037 = vxor.u32 %v1023, 2147483648
    %v1038 = vmul.f32 %v1037, 1.442695
    %v1039 = vpow.pop %v1038
    %v1040 = vadd.f32 %v1039, 1.0
    %v1041 = vrcp.pop %v1040
    %v1042 = vmul.f32 1.0, %v1041
    %v1043 = vmul.f32 %v1035, %v866
    %v1044 = vmul.f32 %v1029, %v1036
    %v1045 = vadd.f32 %v1043, %v1044
    %v1046 = vtanh.pop %v1045
    %v1047 = vmul.f32 %v1042, %v1046
    %s1048 = scalar_lea.vmem [#allocation3], 16
    %1049 = vst [vmem:[%s1048] sm:$0xff] %v1047
    %s1050 = smul.u32 3, 4
    %s1051 = smul.addr %s1050, 8
    %s1052 = scalar_lea.vmem [#allocation2], %s1051
    %v1053 = vld [vmem:[%s1052] sm:$0xff]
    %v1054 = vld [vmem:[%s1052 + $0x8] sm:$0xff]
    %v1055 = vld [vmem:[%s1052 + $0x10] sm:$0xff]
    %v1056 = vld [vmem:[%s1052 + $0x18] sm:$0xff]
    %1057 = vmatprep.subr.mxu0 %v509
    %1058 = vmatpush1.msra.mxu0 %v508
    %1059 = vmatprep.subr.mxu0 %v505
    %1060 = vmatpush1.msra.mxu0 %v504
    %1061 = vmatprep.subr.mxu0 %v501
    %1062 = vmatpush1.msra.mxu0 %v500
    %1063 = vmatprep.subr.mxu0 %v497
    %1064 = vmatpush1.msra.mxu0 %v496
    %1065 = vmatprep.subr.mxu0 %v493
    %1066 = vmatpush1.msra.mxu0 %v492
    %1067 = vmatprep.subr.mxu0 %v489
    %1068 = vmatpush1.msra.mxu0 %v488
    %1069 = vmatprep.subr.mxu0 %v485
    %1070 = vmatpush1.msra.mxu0 %v484
    %1071 = vmatprep.subr.mxu0 %v481
    %1072 = vmatpush1.msra.mxu0 %v480
    %1073 = vmatprep.subr.mxu0 %v477
    %1074 = vmatpush1.msra.mxu0 %v476
    %1075 = vmatprep.subr.mxu0 %v473
    %1076 = vmatpush1.msra.mxu0 %v472
    %1077 = vmatprep.subr.mxu0 %v469
    %1078 = vmatpush1.msra.mxu0 %v468
    %1079 = vmatprep.subr.mxu0 %v465
    %1080 = vmatpush1.msra.mxu0 %v464
    %1081 = vmatprep.subr.mxu0 %v461
    %1082 = vmatpush1.msra.mxu0 %v460
    %1083 = vmatprep.subr.mxu0 %v457
    %1084 = vmatpush1.msra.mxu0 %v456
    %1085 = vmatprep.subr.mxu0 %v453
    %1086 = vmatpush1.msra.mxu0 %v452
    %1087 = vmatprep.subr.mxu0 %v449
    %1088 = vmatpush1.msra.mxu0 %v448
    %1089 = vmatprep.subr.mxu0 0.0
    %1090 = vmatpush2.msra.mxu0 0.0
    %1091 = vmatprep.subr.mxu0 0.0
    %1092 = vmatpush2.msra.mxu0 0.0
    %1093 = vmatprep.subr.mxu0 0.0
    %1094 = vmatpush2.msra.mxu0 0.0
    %1095 = vmatprep.subr.mxu0 0.0
    %1096 = vmatpush2.msra.mxu0 0.0
    %1097 = vmatprep.subr.mxu0 0.0
    %1098 = vmatpush2.msra.mxu0 0.0
    %1099 = vmatprep.subr.mxu0 0.0
    %1100 = vmatpush2.msra.mxu0 0.0
    %1101 = vmatprep.subr.mxu0 0.0
    %1102 = vmatpush2.msra.mxu0 0.0
    %1103 = vmatprep.subr.mxu0 0.0
    %1104 = vmatpush2.msra.mxu0 0.0
    %1105 = vmatprep.subr.mxu0 0.0
    %1106 = vmatpush2.msra.mxu0 0.0
    %1107 = vmatprep.subr.mxu0 0.0
    %1108 = vmatpush2.msra.mxu0 0.0
    %1109 = vmatprep.subr.mxu0 0.0
    %1110 = vmatpush2.msra.mxu0 0.0
    %1111 = vmatprep.subr.mxu0 0.0
    %1112 = vmatpush2.msra.mxu0 0.0
    %1113 = vmatprep.subr.mxu0 0.0
    %1114 = vmatpush2.msra.mxu0 0.0
    %1115 = vmatprep.subr.mxu0 0.0
    %1116 = vmatpush2.msra.mxu0 0.0
    %1117 = vmatprep.subr.mxu0 0.0
    %1118 = vmatpush2.msra.mxu0 0.0
    %1119 = vmatprep.subr.mxu0 0.0
    %1120 = vmatpush2.msra.mxu0 0.0
    %1121 = vmatprep.mubr.f32.mxu0 0.0
    %1122 = vmatmul.mubr.f32.gmra.mxu0 %v1047
    %v1123 = vpop.f32.mrf.mxu0
    %v1124 = vadd.f32 0.0, %v1123
    %v1125 = vpop.f32.mrf.mxu0
    %v1126 = vadd.f32 0.0, %v1125
    %1127 = vdwg.mxu0
    %1128 = vmatprep.subr.mxu0 %v511
    %1129 = vmatpush1.msra.mxu0 %v510
    %1130 = vmatprep.subr.mxu0 %v507
    %1131 = vmatpush1.msra.mxu0 %v506
    %1132 = vmatprep.subr.mxu0 %v503
    %1133 = vmatpush1.msra.mxu0 %v502
    %1134 = vmatprep.subr.mxu0 %v499
    %1135 = vmatpush1.msra.mxu0 %v498
    %1136 = vmatprep.subr.mxu0 %v495
    %1137 = vmatpush1.msra.mxu0 %v494
    %1138 = vmatprep.subr.mxu0 %v491
    %1139 = vmatpush1.msra.mxu0 %v490
    %1140 = vmatprep.subr.mxu0 %v487
    %1141 = vmatpush1.msra.mxu0 %v486
    %1142 = vmatprep.subr.mxu0 %v483
    %1143 = vmatpush1.msra.mxu0 %v482
    %1144 = vmatprep.subr.mxu0 %v479
    %1145 = vmatpush1.msra.mxu0 %v478
    %1146 = vmatprep.subr.mxu0 %v475
    %1147 = vmatpush1.msra.mxu0 %v474
    %1148 = vmatprep.subr.mxu0 %v471
    %1149 = vmatpush1.msra.mxu0 %v470
    %1150 = vmatprep.subr.mxu0 %v467
    %1151 = vmatpush1.msra.mxu0 %v466
    %1152 = vmatprep.subr.mxu0 %v463
    %1153 = vmatpush1.msra.mxu0 %v462
    %1154 = vmatprep.subr.mxu0 %v459
    %1155 = vmatpush1.msra.mxu0 %v458
    %1156 = vmatprep.subr.mxu0 %v455
    %1157 = vmatpush1.msra.mxu0 %v454
    %1158 = vmatprep.subr.mxu0 %v451
    %1159 = vmatpush1.msra.mxu0 %v450
    %1160 = vmatprep.subr.mxu0 0.0
    %1161 = vmatpush2.msra.mxu0 0.0
    %1162 = vmatprep.subr.mxu0 0.0
    %1163 = vmatpush2.msra.mxu0 0.0
    %1164 = vmatprep.subr.mxu0 0.0
    %1165 = vmatpush2.msra.mxu0 0.0
    %1166 = vmatprep.subr.mxu0 0.0
    %1167 = vmatpush2.msra.mxu0 0.0
    %1168 = vmatprep.subr.mxu0 0.0
    %1169 = vmatpush2.msra.mxu0 0.0
    %1170 = vmatprep.subr.mxu0 0.0
    %1171 = vmatpush2.msra.mxu0 0.0
    %1172 = vmatprep.subr.mxu0 0.0
    %1173 = vmatpush2.msra.mxu0 0.0
    %1174 = vmatprep.subr.mxu0 0.0
    %1175 = vmatpush2.msra.mxu0 0.0
    %1176 = vmatprep.subr.mxu0 0.0
    %1177 = vmatpush2.msra.mxu0 0.0
    %1178 = vmatprep.subr.mxu0 0.0
    %1179 = vmatpush2.msra.mxu0 0.0
    %1180 = vmatprep.subr.mxu0 0.0
    %1181 = vmatpush2.msra.mxu0 0.0
    %1182 = vmatprep.subr.mxu0 0.0
    %1183 = vmatpush2.msra.mxu0 0.0
    %1184 = vmatprep.subr.mxu0 0.0
    %1185 = vmatpush2.msra.mxu0 0.0
    %1186 = vmatprep.subr.mxu0 0.0
    %1187 = vmatpush2.msra.mxu0 0.0
    %1188 = vmatprep.subr.mxu0 0.0
    %1189 = vmatpush2.msra.mxu0 0.0
    %1190 = vmatprep.subr.mxu0 0.0
    %1191 = vmatpush2.msra.mxu0 0.0
    %1192 = vmatprep.mubr.f32.mxu0 0.0
    %1193 = vmatmul.mubr.f32.gmra.mxu0 %v1047
    %v1194 = vpop.f32.mrf.mxu0
    %v1195 = vadd.f32 0.0, %v1194
    %v1196 = vpop.f32.mrf.mxu0
    %v1197 = vadd.f32 0.0, %v1196
    %1198 = vdwg.mxu0
    %v1199 = vadd.f32 %v1053, %v1124
    %v1200 = vadd.f32 %v1054, %v1126
    %v1201 = vadd.f32 %v1055, %v1195
    %v1202 = vadd.f32 %v1056, %v1197
    %v1203 = vxor.u32 %v1199, 2147483648
    %v1204 = vmul.f32 %v1203, 1.442695
    %v1205 = vpow.pop %v1204
    %v1206 = vadd.f32 %v1205, 1.0
    %v1207 = vrcp.pop %v1206
    %v1208 = vmul.f32 1.0, %v1207
    %v1209 = vxor.u32 %v1200, 2147483648
    %v1210 = vmul.f32 %v1209, 1.442695
    %v1211 = vpow.pop %v1210
    %v1212 = vadd.f32 %v1211, 1.0
    %v1213 = vrcp.pop %v1212
    %v1214 = vmul.f32 1.0, %v1213
    %v1215 = vtanh.pop %v1201
    %v1216 = vxor.u32 %v1202, 2147483648
    %v1217 = vmul.f32 %v1216, 1.442695
    %v1218 = vpow.pop %v1217
    %v1219 = vadd.f32 %v1218, 1.0
    %v1220 = vrcp.pop %v1219
    %v1221 = vmul.f32 1.0, %v1220
    %v1222 = vmul.f32 %v1214, %v1045
    %v1223 = vmul.f32 %v1208, %v1215
    %v1224 = vadd.f32 %v1222, %v1223
    %v1225 = vtanh.pop %v1224
    %v1226 = vmul.f32 %v1221, %v1225
    %s1227 = scalar_lea.vmem [#allocation3], 24
    %1228 = vst [vmem:[%s1227] sm:$0xff] %v1226
    %s1229 = smul.u32 4, 4
    %s1230 = smul.addr %s1229, 8
    %s1231 = scalar_lea.vmem [#allocation2], %s1230
    %v1232 = vld [vmem:[%s1231] sm:$0xff]
    %v1233 = vld [vmem:[%s1231 + $0x8] sm:$0xff]
    %v1234 = vld [vmem:[%s1231 + $0x10] sm:$0xff]
    %v1235 = vld [vmem:[%s1231 + $0x18] sm:$0xff]
    %1236 = vmatprep.subr.mxu0 %v509
    %1237 = vmatpush1.msra.mxu0 %v508
    %1238 = vmatprep.subr.mxu0 %v505
    %1239 = vmatpush1.msra.mxu0 %v504
    %1240 = vmatprep.subr.mxu0 %v501
    %1241 = vmatpush1.msra.mxu0 %v500
    %1242 = vmatprep.subr.mxu0 %v497
    %1243 = vmatpush1.msra.mxu0 %v496
    %1244 = vmatprep.subr.mxu0 %v493
    %1245 = vmatpush1.msra.mxu0 %v492
    %1246 = vmatprep.subr.mxu0 %v489
    %1247 = vmatpush1.msra.mxu0 %v488
    %1248 = vmatprep.subr.mxu0 %v485
    %1249 = vmatpush1.msra.mxu0 %v484
    %1250 = vmatprep.subr.mxu0 %v481
    %1251 = vmatpush1.msra.mxu0 %v480
    %1252 = vmatprep.subr.mxu0 %v477
    %1253 = vmatpush1.msra.mxu0 %v476
    %1254 = vmatprep.subr.mxu0 %v473
    %1255 = vmatpush1.msra.mxu0 %v472
    %1256 = vmatprep.subr.mxu0 %v469
    %1257 = vmatpush1.msra.mxu0 %v468
    %1258 = vmatprep.subr.mxu0 %v465
    %1259 = vmatpush1.msra.mxu0 %v464
    %1260 = vmatprep.subr.mxu0 %v461
    %1261 = vmatpush1.msra.mxu0 %v460
    %1262 = vmatprep.subr.mxu0 %v457
    %1263 = vmatpush1.msra.mxu0 %v456
    %1264 = vmatprep.subr.mxu0 %v453
    %1265 = vmatpush1.msra.mxu0 %v452
    %1266 = vmatprep.subr.mxu0 %v449
    %1267 = vmatpush1.msra.mxu0 %v448
    %1268 = vmatprep.subr.mxu0 0.0
    %1269 = vmatpush2.msra.mxu0 0.0
    %1270 = vmatprep.subr.mxu0 0.0
    %1271 = vmatpush2.msra.mxu0 0.0
    %1272 = vmatprep.subr.mxu0 0.0
    %1273 = vmatpush2.msra.mxu0 0.0
    %1274 = vmatprep.subr.mxu0 0.0
    %1275 = vmatpush2.msra.mxu0 0.0
    %1276 = vmatprep.subr.mxu0 0.0
    %1277 = vmatpush2.msra.mxu0 0.0
    %1278 = vmatprep.subr.mxu0 0.0
    %1279 = vmatpush2.msra.mxu0 0.0
    %1280 = vmatprep.subr.mxu0 0.0
    %1281 = vmatpush2.msra.mxu0 0.0
    %1282 = vmatprep.subr.mxu0 0.0
    %1283 = vmatpush2.msra.mxu0 0.0
    %1284 = vmatprep.subr.mxu0 0.0
    %1285 = vmatpush2.msra.mxu0 0.0
    %1286 = vmatprep.subr.mxu0 0.0
    %1287 = vmatpush2.msra.mxu0 0.0
    %1288 = vmatprep.subr.mxu0 0.0
    %1289 = vmatpush2.msra.mxu0 0.0
    %1290 = vmatprep.subr.mxu0 0.0
    %1291 = vmatpush2.msra.mxu0 0.0
    %1292 = vmatprep.subr.mxu0 0.0
    %1293 = vmatpush2.msra.mxu0 0.0
    %1294 = vmatprep.subr.mxu0 0.0
    %1295 = vmatpush2.msra.mxu0 0.0
    %1296 = vmatprep.subr.mxu0 0.0
    %1297 = vmatpush2.msra.mxu0 0.0
    %1298 = vmatprep.subr.mxu0 0.0
    %1299 = vmatpush2.msra.mxu0 0.0
    %1300 = vmatprep.mubr.f32.mxu0 0.0
    %1301 = vmatmul.mubr.f32.gmra.mxu0 %v1226
    %v1302 = vpop.f32.mrf.mxu0
    %v1303 = vadd.f32 0.0, %v1302
    %v1304 = vpop.f32.mrf.mxu0
    %v1305 = vadd.f32 0.0, %v1304
    %1306 = vdwg.mxu0
    %1307 = vmatprep.subr.mxu0 %v511
    %1308 = vmatpush1.msra.mxu0 %v510
    %1309 = vmatprep.subr.mxu0 %v507
    %1310 = vmatpush1.msra.mxu0 %v506
    %1311 = vmatprep.subr.mxu0 %v503
    %1312 = vmatpush1.msra.mxu0 %v502
    %1313 = vmatprep.subr.mxu0 %v499
    %1314 = vmatpush1.msra.mxu0 %v498
    %1315 = vmatprep.subr.mxu0 %v495
    %1316 = vmatpush1.msra.mxu0 %v494
    %1317 = vmatprep.subr.mxu0 %v491
    %1318 = vmatpush1.msra.mxu0 %v490
    %1319 = vmatprep.subr.mxu0 %v487
    %1320 = vmatpush1.msra.mxu0 %v486
    %1321 = vmatprep.subr.mxu0 %v483
    %1322 = vmatpush1.msra.mxu0 %v482
    %1323 = vmatprep.subr.mxu0 %v479
    %1324 = vmatpush1.msra.mxu0 %v478
    %1325 = vmatprep.subr.mxu0 %v475
    %1326 = vmatpush1.msra.mxu0 %v474
    %1327 = vmatprep.subr.mxu0 %v471
    %1328 = vmatpush1.msra.mxu0 %v470
    %1329 = vmatprep.subr.mxu0 %v467
    %1330 = vmatpush1.msra.mxu0 %v466
    %1331 = vmatprep.subr.mxu0 %v463
    %1332 = vmatpush1.msra.mxu0 %v462
    %1333 = vmatprep.subr.mxu0 %v459
    %1334 = vmatpush1.msra.mxu0 %v458
    %1335 = vmatprep.subr.mxu0 %v455
    %1336 = vmatpush1.msra.mxu0 %v454
    %1337 = vmatprep.subr.mxu0 %v451
    %1338 = vmatpush1.msra.mxu0 %v450
    %1339 = vmatprep.subr.mxu0 0.0
    %1340 = vmatpush2.msra.mxu0 0.0
    %1341 = vmatprep.subr.mxu0 0.0
    %1342 = vmatpush2.msra.mxu0 0.0
    %1343 = vmatprep.subr.mxu0 0.0
    %1344 = vmatpush2.msra.mxu0 0.0
    %1345 = vmatprep.subr.mxu0 0.0
    %1346 = vmatpush2.msra.mxu0 0.0
    %1347 = vmatprep.subr.mxu0 0.0
    %1348 = vmatpush2.msra.mxu0 0.0
    %1349 = vmatprep.subr.mxu0 0.0
    %1350 = vmatpush2.msra.mxu0 0.0
    %1351 = vmatprep.subr.mxu0 0.0
    %1352 = vmatpush2.msra.mxu0 0.0
    %1353 = vmatprep.subr.mxu0 0.0
    %1354 = vmatpush2.msra.mxu0 0.0
    %1355 = vmatprep.subr.mxu0 0.0
    %1356 = vmatpush2.msra.mxu0 0.0
    %1357 = vmatprep.subr.mxu0 0.0
    %1358 = vmatpush2.msra.mxu0 0.0
    %1359 = vmatprep.subr.mxu0 0.0
    %1360 = vmatpush2.msra.mxu0 0.0
    %1361 = vmatprep.subr.mxu0 0.0
    %1362 = vmatpush2.msra.mxu0 0.0
    %1363 = vmatprep.subr.mxu0 0.0
    %1364 = vmatpush2.msra.mxu0 0.0
    %1365 = vmatprep.subr.mxu0 0.0
    %1366 = vmatpush2.msra.mxu0 0.0
    %1367 = vmatprep.subr.mxu0 0.0
    %1368 = vmatpush2.msra.mxu0 0.0
    %1369 = vmatprep.subr.mxu0 0.0
    %1370 = vmatpush2.msra.mxu0 0.0
    %1371 = vmatprep.mubr.f32.mxu0 0.0
    %1372 = vmatmul.mubr.f32.gmra.mxu0 %v1226
    %v1373 = vpop.f32.mrf.mxu0
    %v1374 = vadd.f32 0.0, %v1373
    %v1375 = vpop.f32.mrf.mxu0
    %v1376 = vadd.f32 0.0, %v1375
    %1377 = vdwg.mxu0
    %v1378 = vadd.f32 %v1232, %v1303
    %v1379 = vadd.f32 %v1233, %v1305
    %v1380 = vadd.f32 %v1234, %v1374
    %v1381 = vadd.f32 %v1235, %v1376
    %v1382 = vxor.u32 %v1378, 2147483648
    %v1383 = vmul.f32 %v1382, 1.442695
    %v1384 = vpow.pop %v1383
    %v1385 = vadd.f32 %v1384, 1.0
    %v1386 = vrcp.pop %v1385
    %v1387 = vmul.f32 1.0, %v1386
    %v1388 = vxor.u32 %v1379, 2147483648
    %v1389 = vmul.f32 %v1388, 1.442695
    %v1390 = vpow.pop %v1389
    %v1391 = vadd.f32 %v1390, 1.0
    %v1392 = vrcp.pop %v1391
    %v1393 = vmul.f32 1.0, %v1392
    %v1394 = vtanh.pop %v1380
    %v1395 = vxor.u32 %v1381, 2147483648
    %v1396 = vmul.f32 %v1395, 1.442695
    %v1397 = vpow.pop %v1396
    %v1398 = vadd.f32 %v1397, 1.0
    %v1399 = vrcp.pop %v1398
    %v1400 = vmul.f32 1.0, %v1399
    %v1401 = vmul.f32 %v1393, %v1224
    %v1402 = vmul.f32 %v1387, %v1394
    %v1403 = vadd.f32 %v1401, %v1402
    %v1404 = vtanh.pop %v1403
    %v1405 = vmul.f32 %v1400, %v1404
    %s1406 = scalar_lea.vmem [#allocation3], 32
    %1407 = vst [vmem:[%s1406] sm:$0xff] %v1405
    %s1408 = smul.u32 5, 4
    %s1409 = smul.addr %s1408, 8
    %s1410 = scalar_lea.vmem [#allocation2], %s1409
    %v1411 = vld [vmem:[%s1410] sm:$0xff]
    %v1412 = vld [vmem:[%s1410 + $0x8] sm:$0xff]
    %v1413 = vld [vmem:[%s1410 + $0x10] sm:$0xff]
    %v1414 = vld [vmem:[%s1410 + $0x18] sm:$0xff]
    %1415 = vmatprep.subr.mxu0 %v509
    %1416 = vmatpush1.msra.mxu0 %v508
    %1417 = vmatprep.subr.mxu0 %v505
    %1418 = vmatpush1.msra.mxu0 %v504
    %1419 = vmatprep.subr.mxu0 %v501
    %1420 = vmatpush1.msra.mxu0 %v500
    %1421 = vmatprep.subr.mxu0 %v497
    %1422 = vmatpush1.msra.mxu0 %v496
    %1423 = vmatprep.subr.mxu0 %v493
    %1424 = vmatpush1.msra.mxu0 %v492
    %1425 = vmatprep.subr.mxu0 %v489
    %1426 = vmatpush1.msra.mxu0 %v488
    %1427 = vmatprep.subr.mxu0 %v485
    %1428 = vmatpush1.msra.mxu0 %v484
    %1429 = vmatprep.subr.mxu0 %v481
    %1430 = vmatpush1.msra.mxu0 %v480
    %1431 = vmatprep.subr.mxu0 %v477
    %1432 = vmatpush1.msra.mxu0 %v476
    %1433 = vmatprep.subr.mxu0 %v473
    %1434 = vmatpush1.msra.mxu0 %v472
    %1435 = vmatprep.subr.mxu0 %v469
    %1436 = vmatpush1.msra.mxu0 %v468
    %1437 = vmatprep.subr.mxu0 %v465
    %1438 = vmatpush1.msra.mxu0 %v464
    %1439 = vmatprep.subr.mxu0 %v461
    %1440 = vmatpush1.msra.mxu0 %v460
    %1441 = vmatprep.subr.mxu0 %v457
    %1442 = vmatpush1.msra.mxu0 %v456
    %1443 = vmatprep.subr.mxu0 %v453
    %1444 = vmatpush1.msra.mxu0 %v452
    %1445 = vmatprep.subr.mxu0 %v449
    %1446 = vmatpush1.msra.mxu0 %v448
    %1447 = vmatprep.subr.mxu0 0.0
    %1448 = vmatpush2.msra.mxu0 0.0
    %1449 = vmatprep.subr.mxu0 0.0
    %1450 = vmatpush2.msra.mxu0 0.0
    %1451 = vmatprep.subr.mxu0 0.0
    %1452 = vmatpush2.msra.mxu0 0.0
    %1453 = vmatprep.subr.mxu0 0.0
    %1454 = vmatpush2.msra.mxu0 0.0
    %1455 = vmatprep.subr.mxu0 0.0
    %1456 = vmatpush2.msra.mxu0 0.0
    %1457 = vmatprep.subr.mxu0 0.0
    %1458 = vmatpush2.msra.mxu0 0.0
    %1459 = vmatprep.subr.mxu0 0.0
    %1460 = vmatpush2.msra.mxu0 0.0
    %1461 = vmatprep.subr.mxu0 0.0
    %1462 = vmatpush2.msra.mxu0 0.0
    %1463 = vmatprep.subr.mxu0 0.0
    %1464 = vmatpush2.msra.mxu0 0.0
    %1465 = vmatprep.subr.mxu0 0.0
    %1466 = vmatpush2.msra.mxu0 0.0
    %1467 = vmatprep.subr.mxu0 0.0
    %1468 = vmatpush2.msra.mxu0 0.0
    %1469 = vmatprep.subr.mxu0 0.0
    %1470 = vmatpush2.msra.mxu0 0.0
    %1471 = vmatprep.subr.mxu0 0.0
    %1472 = vmatpush2.msra.mxu0 0.0
    %1473 = vmatprep.subr.mxu0 0.0
    %1474 = vmatpush2.msra.mxu0 0.0
    %1475 = vmatprep.subr.mxu0 0.0
    %1476 = vmatpush2.msra.mxu0 0.0
    %1477 = vmatprep.subr.mxu0 0.0
    %1478 = vmatpush2.msra.mxu0 0.0
    %1479 = vmatprep.mubr.f32.mxu0 0.0
    %1480 = vmatmul.mubr.f32.gmra.mxu0 %v1405
    %v1481 = vpop.f32.mrf.mxu0
    %v1482 = vadd.f32 0.0, %v1481
    %v1483 = vpop.f32.mrf.mxu0
    %v1484 = vadd.f32 0.0, %v1483
    %1485 = vdwg.mxu0
    %1486 = vmatprep.subr.mxu0 %v511
    %1487 = vmatpush1.msra.mxu0 %v510
    %1488 = vmatprep.subr.mxu0 %v507
    %1489 = vmatpush1.msra.mxu0 %v506
    %1490 = vmatprep.subr.mxu0 %v503
    %1491 = vmatpush1.msra.mxu0 %v502
    %1492 = vmatprep.subr.mxu0 %v499
    %1493 = vmatpush1.msra.mxu0 %v498
    %1494 = vmatprep.subr.mxu0 %v495
    %1495 = vmatpush1.msra.mxu0 %v494
    %1496 = vmatprep.subr.mxu0 %v491
    %1497 = vmatpush1.msra.mxu0 %v490
    %1498 = vmatprep.subr.mxu0 %v487
    %1499 = vmatpush1.msra.mxu0 %v486
    %1500 = vmatprep.subr.mxu0 %v483
    %1501 = vmatpush1.msra.mxu0 %v482
    %1502 = vmatprep.subr.mxu0 %v479
    %1503 = vmatpush1.msra.mxu0 %v478
    %1504 = vmatprep.subr.mxu0 %v475
    %1505 = vmatpush1.msra.mxu0 %v474
    %1506 = vmatprep.subr.mxu0 %v471
    %1507 = vmatpush1.msra.mxu0 %v470
    %1508 = vmatprep.subr.mxu0 %v467
    %1509 = vmatpush1.msra.mxu0 %v466
    %1510 = vmatprep.subr.mxu0 %v463
    %1511 = vmatpush1.msra.mxu0 %v462
    %1512 = vmatprep.subr.mxu0 %v459
    %1513 = vmatpush1.msra.mxu0 %v458
    %1514 = vmatprep.subr.mxu0 %v455
    %1515 = vmatpush1.msra.mxu0 %v454
    %1516 = vmatprep.subr.mxu0 %v451
    %1517 = vmatpush1.msra.mxu0 %v450
    %1518 = vmatprep.subr.mxu0 0.0
    %1519 = vmatpush2.msra.mxu0 0.0
    %1520 = vmatprep.subr.mxu0 0.0
    %1521 = vmatpush2.msra.mxu0 0.0
    %1522 = vmatprep.subr.mxu0 0.0
    %1523 = vmatpush2.msra.mxu0 0.0
    %1524 = vmatprep.subr.mxu0 0.0
    %1525 = vmatpush2.msra.mxu0 0.0
    %1526 = vmatprep.subr.mxu0 0.0
    %1527 = vmatpush2.msra.mxu0 0.0
    %1528 = vmatprep.subr.mxu0 0.0
    %1529 = vmatpush2.msra.mxu0 0.0
    %1530 = vmatprep.subr.mxu0 0.0
    %1531 = vmatpush2.msra.mxu0 0.0
    %1532 = vmatprep.subr.mxu0 0.0
    %1533 = vmatpush2.msra.mxu0 0.0
    %1534 = vmatprep.subr.mxu0 0.0
    %1535 = vmatpush2.msra.mxu0 0.0
    %1536 = vmatprep.subr.mxu0 0.0
    %1537 = vmatpush2.msra.mxu0 0.0
    %1538 = vmatprep.subr.mxu0 0.0
    %1539 = vmatpush2.msra.mxu0 0.0
    %1540 = vmatprep.subr.mxu0 0.0
    %1541 = vmatpush2.msra.mxu0 0.0
    %1542 = vmatprep.subr.mxu0 0.0
    %1543 = vmatpush2.msra.mxu0 0.0
    %1544 = vmatprep.subr.mxu0 0.0
    %1545 = vmatpush2.msra.mxu0 0.0
    %1546 = vmatprep.subr.mxu0 0.0
    %1547 = vmatpush2.msra.mxu0 0.0
    %1548 = vmatprep.subr.mxu0 0.0
    %1549 = vmatpush2.msra.mxu0 0.0
    %1550 = vmatprep.mubr.f32.mxu0 0.0
    %1551 = vmatmul.mubr.f32.gmra.mxu0 %v1405
    %v1552 = vpop.f32.mrf.mxu0
    %v1553 = vadd.f32 0.0, %v1552
    %v1554 = vpop.f32.mrf.mxu0
    %v1555 = vadd.f32 0.0, %v1554
    %1556 = vdwg.mxu0
    %v1557 = vadd.f32 %v1411, %v1482
    %v1558 = vadd.f32 %v1412, %v1484
    %v1559 = vadd.f32 %v1413, %v1553
    %v1560 = vadd.f32 %v1414, %v1555
    %v1561 = vxor.u32 %v1557, 2147483648
    %v1562 = vmul.f32 %v1561, 1.442695
    %v1563 = vpow.pop %v1562
    %v1564 = vadd.f32 %v1563, 1.0
    %v1565 = vrcp.pop %v1564
    %v1566 = vmul.f32 1.0, %v1565
    %v1567 = vxor.u32 %v1558, 2147483648
    %v1568 = vmul.f32 %v1567, 1.442695
    %v1569 = vpow.pop %v1568
    %v1570 = vadd.f32 %v1569, 1.0
    %v1571 = vrcp.pop %v1570
    %v1572 = vmul.f32 1.0, %v1571
    %v1573 = vtanh.pop %v1559
    %v1574 = vxor.u32 %v1560, 2147483648
    %v1575 = vmul.f32 %v1574, 1.442695
    %v1576 = vpow.pop %v1575
    %v1577 = vadd.f32 %v1576, 1.0
    %v1578 = vrcp.pop %v1577
    %v1579 = vmul.f32 1.0, %v1578
    %v1580 = vmul.f32 %v1572, %v1403
    %v1581 = vmul.f32 %v1566, %v1573
    %v1582 = vadd.f32 %v1580, %v1581
    %v1583 = vtanh.pop %v1582
    %v1584 = vmul.f32 %v1579, %v1583
    %s1585 = scalar_lea.vmem [#allocation3], 40
    %1586 = vst [vmem:[%s1585] sm:$0xff] %v1584
    %s1587 = smul.u32 6, 4
    %s1588 = smul.addr %s1587, 8
    %s1589 = scalar_lea.vmem [#allocation2], %s1588
    %v1590 = vld [vmem:[%s1589] sm:$0xff]
    %v1591 = vld [vmem:[%s1589 + $0x8] sm:$0xff]
    %v1592 = vld [vmem:[%s1589 + $0x10] sm:$0xff]
    %v1593 = vld [vmem:[%s1589 + $0x18] sm:$0xff]
    %1594 = vmatprep.subr.mxu0 %v509
    %1595 = vmatpush1.msra.mxu0 %v508
    %1596 = vmatprep.subr.mxu0 %v505
    %1597 = vmatpush1.msra.mxu0 %v504
    %1598 = vmatprep.subr.mxu0 %v501
    %1599 = vmatpush1.msra.mxu0 %v500
    %1600 = vmatprep.subr.mxu0 %v497
    %1601 = vmatpush1.msra.mxu0 %v496
    %1602 = vmatprep.subr.mxu0 %v493
    %1603 = vmatpush1.msra.mxu0 %v492
    %1604 = vmatprep.subr.mxu0 %v489
    %1605 = vmatpush1.msra.mxu0 %v488
    %1606 = vmatprep.subr.mxu0 %v485
    %1607 = vmatpush1.msra.mxu0 %v484
    %1608 = vmatprep.subr.mxu0 %v481
    %1609 = vmatpush1.msra.mxu0 %v480
    %1610 = vmatprep.subr.mxu0 %v477
    %1611 = vmatpush1.msra.mxu0 %v476
    %1612 = vmatprep.subr.mxu0 %v473
    %1613 = vmatpush1.msra.mxu0 %v472
    %1614 = vmatprep.subr.mxu0 %v469
    %1615 = vmatpush1.msra.mxu0 %v468
    %1616 = vmatprep.subr.mxu0 %v465
    %1617 = vmatpush1.msra.mxu0 %v464
    %1618 = vmatprep.subr.mxu0 %v461
    %1619 = vmatpush1.msra.mxu0 %v460
    %1620 = vmatprep.subr.mxu0 %v457
    %1621 = vmatpush1.msra.mxu0 %v456
    %1622 = vmatprep.subr.mxu0 %v453
    %1623 = vmatpush1.msra.mxu0 %v452
    %1624 = vmatprep.subr.mxu0 %v449
    %1625 = vmatpush1.msra.mxu0 %v448
    %1626 = vmatprep.subr.mxu0 0.0
    %1627 = vmatpush2.msra.mxu0 0.0
    %1628 = vmatprep.subr.mxu0 0.0
    %1629 = vmatpush2.msra.mxu0 0.0
    %1630 = vmatprep.subr.mxu0 0.0
    %1631 = vmatpush2.msra.mxu0 0.0
    %1632 = vmatprep.subr.mxu0 0.0
    %1633 = vmatpush2.msra.mxu0 0.0
    %1634 = vmatprep.subr.mxu0 0.0
    %1635 = vmatpush2.msra.mxu0 0.0
    %1636 = vmatprep.subr.mxu0 0.0
    %1637 = vmatpush2.msra.mxu0 0.0
    %1638 = vmatprep.subr.mxu0 0.0
    %1639 = vmatpush2.msra.mxu0 0.0
    %1640 = vmatprep.subr.mxu0 0.0
    %1641 = vmatpush2.msra.mxu0 0.0
    %1642 = vmatprep.subr.mxu0 0.0
    %1643 = vmatpush2.msra.mxu0 0.0
    %1644 = vmatprep.subr.mxu0 0.0
    %1645 = vmatpush2.msra.mxu0 0.0
    %1646 = vmatprep.subr.mxu0 0.0
    %1647 = vmatpush2.msra.mxu0 0.0
    %1648 = vmatprep.subr.mxu0 0.0
    %1649 = vmatpush2.msra.mxu0 0.0
    %1650 = vmatprep.subr.mxu0 0.0
    %1651 = vmatpush2.msra.mxu0 0.0
    %1652 = vmatprep.subr.mxu0 0.0
    %1653 = vmatpush2.msra.mxu0 0.0
    %1654 = vmatprep.subr.mxu0 0.0
    %1655 = vmatpush2.msra.mxu0 0.0
    %1656 = vmatprep.subr.mxu0 0.0
    %1657 = vmatpush2.msra.mxu0 0.0
    %1658 = vmatprep.mubr.f32.mxu0 0.0
    %1659 = vmatmul.mubr.f32.gmra.mxu0 %v1584
    %v1660 = vpop.f32.mrf.mxu0
    %v1661 = vadd.f32 0.0, %v1660
    %v1662 = vpop.f32.mrf.mxu0
    %v1663 = vadd.f32 0.0, %v1662
    %1664 = vdwg.mxu0
    %1665 = vmatprep.subr.mxu0 %v511
    %1666 = vmatpush1.msra.mxu0 %v510
    %1667 = vmatprep.subr.mxu0 %v507
    %1668 = vmatpush1.msra.mxu0 %v506
    %1669 = vmatprep.subr.mxu0 %v503
    %1670 = vmatpush1.msra.mxu0 %v502
    %1671 = vmatprep.subr.mxu0 %v499
    %1672 = vmatpush1.msra.mxu0 %v498
    %1673 = vmatprep.subr.mxu0 %v495
    %1674 = vmatpush1.msra.mxu0 %v494
    %1675 = vmatprep.subr.mxu0 %v491
    %1676 = vmatpush1.msra.mxu0 %v490
    %1677 = vmatprep.subr.mxu0 %v487
    %1678 = vmatpush1.msra.mxu0 %v486
    %1679 = vmatprep.subr.mxu0 %v483
    %1680 = vmatpush1.msra.mxu0 %v482
    %1681 = vmatprep.subr.mxu0 %v479
    %1682 = vmatpush1.msra.mxu0 %v478
    %1683 = vmatprep.subr.mxu0 %v475
    %1684 = vmatpush1.msra.mxu0 %v474
    %1685 = vmatprep.subr.mxu0 %v471
    %1686 = vmatpush1.msra.mxu0 %v470
    %1687 = vmatprep.subr.mxu0 %v467
    %1688 = vmatpush1.msra.mxu0 %v466
    %1689 = vmatprep.subr.mxu0 %v463
    %1690 = vmatpush1.msra.mxu0 %v462
    %1691 = vmatprep.subr.mxu0 %v459
    %1692 = vmatpush1.msra.mxu0 %v458
    %1693 = vmatprep.subr.mxu0 %v455
    %1694 = vmatpush1.msra.mxu0 %v454
    %1695 = vmatprep.subr.mxu0 %v451
    %1696 = vmatpush1.msra.mxu0 %v450
    %1697 = vmatprep.subr.mxu0 0.0
    %1698 = vmatpush2.msra.mxu0 0.0
    %1699 = vmatprep.subr.mxu0 0.0
    %1700 = vmatpush2.msra.mxu0 0.0
    %1701 = vmatprep.subr.mxu0 0.0
    %1702 = vmatpush2.msra.mxu0 0.0
    %1703 = vmatprep.subr.mxu0 0.0
    %1704 = vmatpush2.msra.mxu0 0.0
    %1705 = vmatprep.subr.mxu0 0.0
    %1706 = vmatpush2.msra.mxu0 0.0
    %1707 = vmatprep.subr.mxu0 0.0
    %1708 = vmatpush2.msra.mxu0 0.0
    %1709 = vmatprep.subr.mxu0 0.0
    %1710 = vmatpush2.msra.mxu0 0.0
    %1711 = vmatprep.subr.mxu0 0.0
    %1712 = vmatpush2.msra.mxu0 0.0
    %1713 = vmatprep.subr.mxu0 0.0
    %1714 = vmatpush2.msra.mxu0 0.0
    %1715 = vmatprep.subr.mxu0 0.0
    %1716 = vmatpush2.msra.mxu0 0.0
    %1717 = vmatprep.subr.mxu0 0.0
    %1718 = vmatpush2.msra.mxu0 0.0
    %1719 = vmatprep.subr.mxu0 0.0
    %1720 = vmatpush2.msra.mxu0 0.0
    %1721 = vmatprep.subr.mxu0 0.0
    %1722 = vmatpush2.msra.mxu0 0.0
    %1723 = vmatprep.subr.mxu0 0.0
    %1724 = vmatpush2.msra.mxu0 0.0
    %1725 = vmatprep.subr.mxu0 0.0
    %1726 = vmatpush2.msra.mxu0 0.0
    %1727 = vmatprep.subr.mxu0 0.0
    %1728 = vmatpush2.msra.mxu0 0.0
    %1729 = vmatprep.mubr.f32.mxu0 0.0
    %1730 = vmatmul.mubr.f32.gmra.mxu0 %v1584
    %v1731 = vpop.f32.mrf.mxu0
    %v1732 = vadd.f32 0.0, %v1731
    %v1733 = vpop.f32.mrf.mxu0
    %v1734 = vadd.f32 0.0, %v1733
    %1735 = vdwg.mxu0
    %v1736 = vadd.f32 %v1590, %v1661
    %v1737 = vadd.f32 %v1591, %v1663
    %v1738 = vadd.f32 %v1592, %v1732
    %v1739 = vadd.f32 %v1593, %v1734
    %v1740 = vxor.u32 %v1736, 2147483648
    %v1741 = vmul.f32 %v1740, 1.442695
    %v1742 = vpow.pop %v1741
    %v1743 = vadd.f32 %v1742, 1.0
    %v1744 = vrcp.pop %v1743
    %v1745 = vmul.f32 1.0, %v1744
    %v1746 = vxor.u32 %v1737, 2147483648
    %v1747 = vmul.f32 %v1746, 1.442695
    %v1748 = vpow.pop %v1747
    %v1749 = vadd.f32 %v1748, 1.0
    %v1750 = vrcp.pop %v1749
    %v1751 = vmul.f32 1.0, %v1750
    %v1752 = vtanh.pop %v1738
    %v1753 = vxor.u32 %v1739, 2147483648
    %v1754 = vmul.f32 %v1753, 1.442695
    %v1755 = vpow.pop %v1754
    %v1756 = vadd.f32 %v1755, 1.0
    %v1757 = vrcp.pop %v1756
    %v1758 = vmul.f32 1.0, %v1757
    %v1759 = vmul.f32 %v1751, %v1582
    %v1760 = vmul.f32 %v1745, %v1752
    %v1761 = vadd.f32 %v1759, %v1760
    %v1762 = vtanh.pop %v1761
    %v1763 = vmul.f32 %v1758, %v1762
    %s1764 = scalar_lea.vmem [#allocation3], 48
    %1765 = vst [vmem:[%s1764] sm:$0xff] %v1763
    %s1766 = smul.u32 7, 4
    %s1767 = smul.addr %s1766, 8
    %s1768 = scalar_lea.vmem [#allocation2], %s1767
    %v1769 = vld [vmem:[%s1768] sm:$0xff]
    %v1770 = vld [vmem:[%s1768 + $0x8] sm:$0xff]
    %v1771 = vld [vmem:[%s1768 + $0x10] sm:$0xff]
    %v1772 = vld [vmem:[%s1768 + $0x18] sm:$0xff]
    %1773 = vmatprep.subr.mxu0 %v509
    %1774 = vmatpush1.msra.mxu0 %v508
    %1775 = vmatprep.subr.mxu0 %v505
    %1776 = vmatpush1.msra.mxu0 %v504
    %1777 = vmatprep.subr.mxu0 %v501
    %1778 = vmatpush1.msra.mxu0 %v500
    %1779 = vmatprep.subr.mxu0 %v497
    %1780 = vmatpush1.msra.mxu0 %v496
    %1781 = vmatprep.subr.mxu0 %v493
    %1782 = vmatpush1.msra.mxu0 %v492
    %1783 = vmatprep.subr.mxu0 %v489
    %1784 = vmatpush1.msra.mxu0 %v488
    %1785 = vmatprep.subr.mxu0 %v485
    %1786 = vmatpush1.msra.mxu0 %v484
    %1787 = vmatprep.subr.mxu0 %v481
    %1788 = vmatpush1.msra.mxu0 %v480
    %1789 = vmatprep.subr.mxu0 %v477
    %1790 = vmatpush1.msra.mxu0 %v476
    %1791 = vmatprep.subr.mxu0 %v473
    %1792 = vmatpush1.msra.mxu0 %v472
    %1793 = vmatprep.subr.mxu0 %v469
    %1794 = vmatpush1.msra.mxu0 %v468
    %1795 = vmatprep.subr.mxu0 %v465
    %1796 = vmatpush1.msra.mxu0 %v464
    %1797 = vmatprep.subr.mxu0 %v461
    %1798 = vmatpush1.msra.mxu0 %v460
    %1799 = vmatprep.subr.mxu0 %v457
    %1800 = vmatpush1.msra.mxu0 %v456
    %1801 = vmatprep.subr.mxu0 %v453
    %1802 = vmatpush1.msra.mxu0 %v452
    %1803 = vmatprep.subr.mxu0 %v449
    %1804 = vmatpush1.msra.mxu0 %v448
    %1805 = vmatprep.subr.mxu0 0.0
    %1806 = vmatpush2.msra.mxu0 0.0
    %1807 = vmatprep.subr.mxu0 0.0
    %1808 = vmatpush2.msra.mxu0 0.0
    %1809 = vmatprep.subr.mxu0 0.0
    %1810 = vmatpush2.msra.mxu0 0.0
    %1811 = vmatprep.subr.mxu0 0.0
    %1812 = vmatpush2.msra.mxu0 0.0
    %1813 = vmatprep.subr.mxu0 0.0
    %1814 = vmatpush2.msra.mxu0 0.0
    %1815 = vmatprep.subr.mxu0 0.0
    %1816 = vmatpush2.msra.mxu0 0.0
    %1817 = vmatprep.subr.mxu0 0.0
    %1818 = vmatpush2.msra.mxu0 0.0
    %1819 = vmatprep.subr.mxu0 0.0
    %1820 = vmatpush2.msra.mxu0 0.0
    %1821 = vmatprep.subr.mxu0 0.0
    %1822 = vmatpush2.msra.mxu0 0.0
    %1823 = vmatprep.subr.mxu0 0.0
    %1824 = vmatpush2.msra.mxu0 0.0
    %1825 = vmatprep.subr.mxu0 0.0
    %1826 = vmatpush2.msra.mxu0 0.0
    %1827 = vmatprep.subr.mxu0 0.0
    %1828 = vmatpush2.msra.mxu0 0.0
    %1829 = vmatprep.subr.mxu0 0.0
    %1830 = vmatpush2.msra.mxu0 0.0
    %1831 = vmatprep.subr.mxu0 0.0
    %1832 = vmatpush2.msra.mxu0 0.0
    %1833 = vmatprep.subr.mxu0 0.0
    %1834 = vmatpush2.msra.mxu0 0.0
    %1835 = vmatprep.subr.mxu0 0.0
    %1836 = vmatpush2.msra.mxu0 0.0
    %1837 = vmatprep.mubr.f32.mxu0 0.0
    %1838 = vmatmul.mubr.f32.gmra.mxu0 %v1763
    %v1839 = vpop.f32.mrf.mxu0
    %v1840 = vadd.f32 0.0, %v1839
    %v1841 = vpop.f32.mrf.mxu0
    %v1842 = vadd.f32 0.0, %v1841
    %1843 = vdwg.mxu0
    %1844 = vmatprep.subr.mxu0 %v511
    %1845 = vmatpush1.msra.mxu0 %v510
    %1846 = vmatprep.subr.mxu0 %v507
    %1847 = vmatpush1.msra.mxu0 %v506
    %1848 = vmatprep.subr.mxu0 %v503
    %1849 = vmatpush1.msra.mxu0 %v502
    %1850 = vmatprep.subr.mxu0 %v499
    %1851 = vmatpush1.msra.mxu0 %v498
    %1852 = vmatprep.subr.mxu0 %v495
    %1853 = vmatpush1.msra.mxu0 %v494
    %1854 = vmatprep.subr.mxu0 %v491
    %1855 = vmatpush1.msra.mxu0 %v490
    %1856 = vmatprep.subr.mxu0 %v487
    %1857 = vmatpush1.msra.mxu0 %v486
    %1858 = vmatprep.subr.mxu0 %v483
    %1859 = vmatpush1.msra.mxu0 %v482
    %1860 = vmatprep.subr.mxu0 %v479
    %1861 = vmatpush1.msra.mxu0 %v478
    %1862 = vmatprep.subr.mxu0 %v475
    %1863 = vmatpush1.msra.mxu0 %v474
    %1864 = vmatprep.subr.mxu0 %v471
    %1865 = vmatpush1.msra.mxu0 %v470
    %1866 = vmatprep.subr.mxu0 %v467
    %1867 = vmatpush1.msra.mxu0 %v466
    %1868 = vmatprep.subr.mxu0 %v463
    %1869 = vmatpush1.msra.mxu0 %v462
    %1870 = vmatprep.subr.mxu0 %v459
    %1871 = vmatpush1.msra.mxu0 %v458
    %1872 = vmatprep.subr.mxu0 %v455
    %1873 = vmatpush1.msra.mxu0 %v454
    %1874 = vmatprep.subr.mxu0 %v451
    %1875 = vmatpush1.msra.mxu0 %v450
    %1876 = vmatprep.subr.mxu0 0.0
    %1877 = vmatpush2.msra.mxu0 0.0
    %1878 = vmatprep.subr.mxu0 0.0
    %1879 = vmatpush2.msra.mxu0 0.0
    %1880 = vmatprep.subr.mxu0 0.0
    %1881 = vmatpush2.msra.mxu0 0.0
    %1882 = vmatprep.subr.mxu0 0.0
    %1883 = vmatpush2.msra.mxu0 0.0
    %1884 = vmatprep.subr.mxu0 0.0
    %1885 = vmatpush2.msra.mxu0 0.0
    %1886 = vmatprep.subr.mxu0 0.0
    %1887 = vmatpush2.msra.mxu0 0.0
    %1888 = vmatprep.subr.mxu0 0.0
    %1889 = vmatpush2.msra.mxu0 0.0
    %1890 = vmatprep.subr.mxu0 0.0
    %1891 = vmatpush2.msra.mxu0 0.0
    %1892 = vmatprep.subr.mxu0 0.0
    %1893 = vmatpush2.msra.mxu0 0.0
    %1894 = vmatprep.subr.mxu0 0.0
    %1895 = vmatpush2.msra.mxu0 0.0
    %1896 = vmatprep.subr.mxu0 0.0
    %1897 = vmatpush2.msra.mxu0 0.0
    %1898 = vmatprep.subr.mxu0 0.0
    %1899 = vmatpush2.msra.mxu0 0.0
    %1900 = vmatprep.subr.mxu0 0.0
    %1901 = vmatpush2.msra.mxu0 0.0
    %1902 = vmatprep.subr.mxu0 0.0
    %1903 = vmatpush2.msra.mxu0 0.0
    %1904 = vmatprep.subr.mxu0 0.0
    %1905 = vmatpush2.msra.mxu0 0.0
    %1906 = vmatprep.subr.mxu0 0.0
    %1907 = vmatpush2.msra.mxu0 0.0
    %1908 = vmatprep.mubr.f32.mxu0 0.0
    %1909 = vmatmul.mubr.f32.gmra.mxu0 %v1763
    %v1910 = vpop.f32.mrf.mxu0
    %v1911 = vadd.f32 0.0, %v1910
    %v1912 = vpop.f32.mrf.mxu0
    %v1913 = vadd.f32 0.0, %v1912
    %1914 = vdwg.mxu0
    %v1915 = vadd.f32 %v1769, %v1840
    %v1916 = vadd.f32 %v1770, %v1842
    %v1917 = vadd.f32 %v1771, %v1911
    %v1918 = vadd.f32 %v1772, %v1913
    %v1919 = vxor.u32 %v1915, 2147483648
    %v1920 = vmul.f32 %v1919, 1.442695
    %v1921 = vpow.pop %v1920
    %v1922 = vadd.f32 %v1921, 1.0
    %v1923 = vrcp.pop %v1922
    %v1924 = vmul.f32 1.0, %v1923
    %v1925 = vxor.u32 %v1916, 2147483648
    %v1926 = vmul.f32 %v1925, 1.442695
    %v1927 = vpow.pop %v1926
    %v1928 = vadd.f32 %v1927, 1.0
    %v1929 = vrcp.pop %v1928
    %v1930 = vmul.f32 1.0, %v1929
    %v1931 = vtanh.pop %v1917
    %v1932 = vxor.u32 %v1918, 2147483648
    %v1933 = vmul.f32 %v1932, 1.442695
    %v1934 = vpow.pop %v1933
    %v1935 = vadd.f32 %v1934, 1.0
    %v1936 = vrcp.pop %v1935
    %v1937 = vmul.f32 1.0, %v1936
    %v1938 = vmul.f32 %v1930, %v1761
    %v1939 = vmul.f32 %v1924, %v1931
    %v1940 = vadd.f32 %v1938, %v1939
    %v1941 = vtanh.pop %v1940
    %v1942 = vmul.f32 %v1937, %v1941
    %s1943 = scalar_lea.vmem [#allocation3], 56
    %1944 = vst [vmem:[%s1943] sm:$0xff] %v1942
    %1945 = vst [vmem:[%s12] sm:$0xff] %v1942
    %1946 = vst [vmem:[%s13] sm:$0xff] %v1940
    %v1947 = vld [vmem:[#allocation3] sm:$0xff]
    %v1948 = vld [vmem:[#allocation3 + $0x8] sm:$0xff]
    %v1949 = vld [vmem:[#allocation3 + $0x10] sm:$0xff]
    %v1950 = vld [vmem:[#allocation3 + $0x18] sm:$0xff]
    %v1951 = vld [vmem:[#allocation3 + $0x20] sm:$0xff]
    %v1952 = vld [vmem:[#allocation3 + $0x28] sm:$0xff]
    %v1953 = vld [vmem:[#allocation3 + $0x30] sm:$0xff]
    %v1954 = vld [vmem:[#allocation3 + $0x38] sm:$0xff]
    %v1955 = vld [vmem:[#allocation8] sm:$0xff]
    %v1956 = vld [vmem:[#allocation8 + $0x8] sm:$0xff]
    %v1957 = vld [vmem:[#allocation8 + $0x10] sm:$0xff]
    %v1958 = vld [vmem:[#allocation8 + $0x18] sm:$0xff]
    %v1959 = vld [vmem:[#allocation8 + $0x20] sm:$0xff]
    %v1960 = vld [vmem:[#allocation8 + $0x28] sm:$0xff]
    %v1961 = vld [vmem:[#allocation8 + $0x30] sm:$0xff]
    %v1962 = vld [vmem:[#allocation8 + $0x38] sm:$0xff]
    %v1963 = vld [vmem:[#allocation8 + $0x40] sm:$0xff]
    %v1964 = vld [vmem:[#allocation8 + $0x48] sm:$0xff]
    %v1965 = vld [vmem:[#allocation8 + $0x50] sm:$0xff]
    %v1966 = vld [vmem:[#allocation8 + $0x58] sm:$0xff]
    %v1967 = vld [vmem:[#allocation8 + $0x60] sm:$0xff]
    %v1968 = vld [vmem:[#allocation8 + $0x68] sm:$0xff]
    %v1969 = vld [vmem:[#allocation8 + $0x70] sm:$0xff]
    %v1970 = vld [vmem:[#allocation8 + $0x78] sm:$0xff]
    %v1971 = vld [vmem:[#allocation8 + $0x80] sm:$0xff]
    %v1972 = vld [vmem:[#allocation8 + $0x88] sm:$0xff]
    %v1973 = vld [vmem:[#allocation8 + $0x90] sm:$0xff]
    %v1974 = vld [vmem:[#allocation8 + $0x98] sm:$0xff]
    %v1975 = vld [vmem:[#allocation8 + $0xa0] sm:$0xff]
    %v1976 = vld [vmem:[#allocation8 + $0xa8] sm:$0xff]
    %v1977 = vld [vmem:[#allocation8 + $0xb0] sm:$0xff]
    %v1978 = vld [vmem:[#allocation8 + $0xb8] sm:$0xff]
    %v1979 = vld [vmem:[#allocation8 + $0xc0] sm:$0xff]
    %v1980 = vld [vmem:[#allocation8 + $0xc8] sm:$0xff]
    %v1981 = vld [vmem:[#allocation8 + $0xd0] sm:$0xff]
    %v1982 = vld [vmem:[#allocation8 + $0xd8] sm:$0xff]
    %v1983 = vld [vmem:[#allocation8 + $0xe0] sm:$0xff]
    %v1984 = vld [vmem:[#allocation8 + $0xe8] sm:$0xff]
    %v1985 = vld [vmem:[#allocation8 + $0xf0] sm:$0xff]
    %v1986 = vld [vmem:[#allocation8 + $0xf8] sm:$0xff]
    %v1987 = vld [vmem:[#allocation8 + $0x100] sm:$0xff]
    %v1988 = vld [vmem:[#allocation8 + $0x108] sm:$0xff]
    %v1989 = vld [vmem:[#allocation8 + $0x110] sm:$0xff]
    %v1990 = vld [vmem:[#allocation8 + $0x118] sm:$0xff]
    %v1991 = vld [vmem:[#allocation8 + $0x120] sm:$0xff]
    %v1992 = vld [vmem:[#allocation8 + $0x128] sm:$0xff]
    %v1993 = vld [vmem:[#allocation8 + $0x130] sm:$0xff]
    %v1994 = vld [vmem:[#allocation8 + $0x138] sm:$0xff]
    %v1995 = vld [vmem:[#allocation8 + $0x140] sm:$0xff]
    %v1996 = vld [vmem:[#allocation8 + $0x148] sm:$0xff]
    %v1997 = vld [vmem:[#allocation8 + $0x150] sm:$0xff]
    %v1998 = vld [vmem:[#allocation8 + $0x158] sm:$0xff]
    %v1999 = vld [vmem:[#allocation8 + $0x160] sm:$0xff]
    %v2000 = vld [vmem:[#allocation8 + $0x168] sm:$0xff]
    %v2001 = vld [vmem:[#allocation8 + $0x170] sm:$0xff]
    %v2002 = vld [vmem:[#allocation8 + $0x178] sm:$0xff]
    %v2003 = vld [vmem:[#allocation8 + $0x180] sm:$0xff]
    %v2004 = vld [vmem:[#allocation8 + $0x188] sm:$0xff]
    %v2005 = vld [vmem:[#allocation8 + $0x190] sm:$0xff]
    %v2006 = vld [vmem:[#allocation8 + $0x198] sm:$0xff]
    %v2007 = vld [vmem:[#allocation8 + $0x1a0] sm:$0xff]
    %v2008 = vld [vmem:[#allocation8 + $0x1a8] sm:$0xff]
    %v2009 = vld [vmem:[#allocation8 + $0x1b0] sm:$0xff]
    %v2010 = vld [vmem:[#allocation8 + $0x1b8] sm:$0xff]
    %v2011 = vld [vmem:[#allocation8 + $0x1c0] sm:$0xff]
    %v2012 = vld [vmem:[#allocation8 + $0x1c8] sm:$0xff]
    %v2013 = vld [vmem:[#allocation8 + $0x1d0] sm:$0xff]
    %v2014 = vld [vmem:[#allocation8 + $0x1d8] sm:$0xff]
    %v2015 = vld [vmem:[#allocation8 + $0x1e0] sm:$0xff]
    %v2016 = vld [vmem:[#allocation8 + $0x1e8] sm:$0xff]
    %v2017 = vld [vmem:[#allocation8 + $0x1f0] sm:$0xff]
    %v2018 = vld [vmem:[#allocation8 + $0x1f8] sm:$0xff]
    %v2019 = vld [vmem:[%s6] sm:$0xf]
    %v2021 = vlaneseq
    %v2022 = vshrl.u32 %v2021, 7
    %v2023 = vsub.s32 0, %v2022
    %v2024 = vrot.slane %v2019, %v2023
    %v2025 = vlaneseq
    %v2026 = vshrl.u32 %v2025, 7
    %v2027 = vsub.s32 1, %v2026
    %v2028 = vrot.slane %v2019, %v2027
    %v2029 = vlaneseq
    %v2030 = vshrl.u32 %v2029, 7
    %v2031 = vsub.s32 2, %v2030
    %v2032 = vrot.slane %v2019, %v2031
    %v2033 = vlaneseq
    %v2034 = vshrl.u32 %v2033, 7
    %v2035 = vsub.s32 3, %v2034
    %v2036 = vrot.slane %v2019, %v2035
    %2041 = vmatprep.subr.mxu0 %v2016
    %2042 = vmatpush1.msra.mxu0 %v2015
    %2043 = vmatprep.subr.mxu0 %v2012
    %2044 = vmatpush1.msra.mxu0 %v2011
    %2045 = vmatprep.subr.mxu0 %v2008
    %2046 = vmatpush1.msra.mxu0 %v2007
    %2047 = vmatprep.subr.mxu0 %v2004
    %2048 = vmatpush1.msra.mxu0 %v2003
    %2049 = vmatprep.subr.mxu0 %v2000
    %2050 = vmatpush1.msra.mxu0 %v1999
    %2051 = vmatprep.subr.mxu0 %v1996
    %2052 = vmatpush1.msra.mxu0 %v1995
    %2053 = vmatprep.subr.mxu0 %v1992
    %2054 = vmatpush1.msra.mxu0 %v1991
    %2055 = vmatprep.subr.mxu0 %v1988
    %2056 = vmatpush1.msra.mxu0 %v1987
    %2057 = vmatprep.subr.mxu0 %v1984
    %2058 = vmatpush1.msra.mxu0 %v1983
    %2059 = vmatprep.subr.mxu0 %v1980
    %2060 = vmatpush1.msra.mxu0 %v1979
    %2061 = vmatprep.subr.mxu0 %v1976
    %2062 = vmatpush1.msra.mxu0 %v1975
    %2063 = vmatprep.subr.mxu0 %v1972
    %2064 = vmatpush1.msra.mxu0 %v1971
    %2065 = vmatprep.subr.mxu0 %v1968
    %2066 = vmatpush1.msra.mxu0 %v1967
    %2067 = vmatprep.subr.mxu0 %v1964
    %2068 = vmatpush1.msra.mxu0 %v1963
    %2069 = vmatprep.subr.mxu0 %v1960
    %2070 = vmatpush1.msra.mxu0 %v1959
    %2071 = vmatprep.subr.mxu0 %v1956
    %2072 = vmatpush1.msra.mxu0 %v1955
    %2073 = vmatprep.subr.mxu0 0.0
    %2074 = vmatpush2.msra.mxu0 0.0
    %2075 = vmatprep.subr.mxu0 0.0
    %2076 = vmatpush2.msra.mxu0 0.0
    %2077 = vmatprep.subr.mxu0 0.0
    %2078 = vmatpush2.msra.mxu0 0.0
    %2079 = vmatprep.subr.mxu0 0.0
    %2080 = vmatpush2.msra.mxu0 0.0
    %2081 = vmatprep.subr.mxu0 0.0
    %2082 = vmatpush2.msra.mxu0 0.0
    %2083 = vmatprep.subr.mxu0 0.0
    %2084 = vmatpush2.msra.mxu0 0.0
    %2085 = vmatprep.subr.mxu0 0.0
    %2086 = vmatpush2.msra.mxu0 0.0
    %2087 = vmatprep.subr.mxu0 0.0
    %2088 = vmatpush2.msra.mxu0 0.0
    %2089 = vmatprep.subr.mxu0 0.0
    %2090 = vmatpush2.msra.mxu0 0.0
    %2091 = vmatprep.subr.mxu0 0.0
    %2092 = vmatpush2.msra.mxu0 0.0
    %2093 = vmatprep.subr.mxu0 0.0
    %2094 = vmatpush2.msra.mxu0 0.0
    %2095 = vmatprep.subr.mxu0 0.0
    %2096 = vmatpush2.msra.mxu0 0.0
    %2097 = vmatprep.subr.mxu0 0.0
    %2098 = vmatpush2.msra.mxu0 0.0
    %2099 = vmatprep.subr.mxu0 0.0
    %2100 = vmatpush2.msra.mxu0 0.0
    %2101 = vmatprep.subr.mxu0 0.0
    %2102 = vmatpush2.msra.mxu0 0.0
    %2103 = vmatprep.subr.mxu0 0.0
    %2104 = vmatpush2.msra.mxu0 0.0
    %2105 = vmatprep.mubr.f32.mxu0 0.0
    %2106 = vmatmul.mubr.f32.gmra.mxu0 %v1947
    %v2107 = vpop.f32.mrf.mxu0
    %v2108 = vadd.f32 %v2024, %v2107
    %v2109 = vpop.f32.mrf.mxu0
    %v2110 = vadd.f32 %v2028, %v2109
    %2111 = vmatprep.mubr.f32.mxu0 0.0
    %2112 = vmatmul.mubr.f32.gmra.mxu0 %v1948
    %v2113 = vpop.f32.mrf.mxu0
    %v2114 = vadd.f32 %v2024, %v2113
    %v2115 = vpop.f32.mrf.mxu0
    %v2116 = vadd.f32 %v2028, %v2115
    %2117 = vmatprep.mubr.f32.mxu0 0.0
    %2118 = vmatmul.mubr.f32.gmra.mxu0 %v1949
    %v2119 = vpop.f32.mrf.mxu0
    %v2120 = vadd.f32 %v2024, %v2119
    %v2121 = vpop.f32.mrf.mxu0
    %v2122 = vadd.f32 %v2028, %v2121
    %2123 = vmatprep.mubr.f32.mxu0 0.0
    %2124 = vmatmul.mubr.f32.gmra.mxu0 %v1950
    %v2125 = vpop.f32.mrf.mxu0
    %v2126 = vadd.f32 %v2024, %v2125
    %v2127 = vpop.f32.mrf.mxu0
    %v2128 = vadd.f32 %v2028, %v2127
    %2129 = vmatprep.mubr.f32.mxu0 0.0
    %2130 = vmatmul.mubr.f32.gmra.mxu0 %v1951
    %v2131 = vpop.f32.mrf.mxu0
    %v2132 = vadd.f32 %v2024, %v2131
    %v2133 = vpop.f32.mrf.mxu0
    %v2134 = vadd.f32 %v2028, %v2133
    %2135 = vmatprep.mubr.f32.mxu0 0.0
    %2136 = vmatmul.mubr.f32.gmra.mxu0 %v1952
    %v2137 = vpop.f32.mrf.mxu0
    %v2138 = vadd.f32 %v2024, %v2137
    %v2139 = vpop.f32.mrf.mxu0
    %v2140 = vadd.f32 %v2028, %v2139
    %2141 = vmatprep.mubr.f32.mxu0 0.0
    %2142 = vmatmul.mubr.f32.gmra.mxu0 %v1953
    %v2143 = vpop.f32.mrf.mxu0
    %v2144 = vadd.f32 %v2024, %v2143
    %v2145 = vpop.f32.mrf.mxu0
    %v2146 = vadd.f32 %v2028, %v2145
    %2147 = vmatprep.mubr.f32.mxu0 0.0
    %2148 = vmatmul.mubr.f32.gmra.mxu0 %v1954
    %v2149 = vpop.f32.mrf.mxu0
    %v2150 = vadd.f32 %v2024, %v2149
    %v2151 = vpop.f32.mrf.mxu0
    %v2152 = vadd.f32 %v2028, %v2151
    %2153 = vdwg.mxu0
    %2154 = vmatprep.subr.mxu0 %v2018
    %2155 = vmatpush1.msra.mxu0 %v2017
    %2156 = vmatprep.subr.mxu0 %v2014
    %2157 = vmatpush1.msra.mxu0 %v2013
    %2158 = vmatprep.subr.mxu0 %v2010
    %2159 = vmatpush1.msra.mxu0 %v2009
    %2160 = vmatprep.subr.mxu0 %v2006
    %2161 = vmatpush1.msra.mxu0 %v2005
    %2162 = vmatprep.subr.mxu0 %v2002
    %2163 = vmatpush1.msra.mxu0 %v2001
    %2164 = vmatprep.subr.mxu0 %v1998
    %2165 = vmatpush1.msra.mxu0 %v1997
    %2166 = vmatprep.subr.mxu0 %v1994
    %2167 = vmatpush1.msra.mxu0 %v1993
    %2168 = vmatprep.subr.mxu0 %v1990
    %2169 = vmatpush1.msra.mxu0 %v1989
    %2170 = vmatprep.subr.mxu0 %v1986
    %2171 = vmatpush1.msra.mxu0 %v1985
    %2172 = vmatprep.subr.mxu0 %v1982
    %2173 = vmatpush1.msra.mxu0 %v1981
    %2174 = vmatprep.subr.mxu0 %v1978
    %2175 = vmatpush1.msra.mxu0 %v1977
    %2176 = vmatprep.subr.mxu0 %v1974
    %2177 = vmatpush1.msra.mxu0 %v1973
    %2178 = vmatprep.subr.mxu0 %v1970
    %2179 = vmatpush1.msra.mxu0 %v1969
    %2180 = vmatprep.subr.mxu0 %v1966
    %2181 = vmatpush1.msra.mxu0 %v1965
    %2182 = vmatprep.subr.mxu0 %v1962
    %2183 = vmatpush1.msra.mxu0 %v1961
    %2184 = vmatprep.subr.mxu0 %v1958
    %2185 = vmatpush1.msra.mxu0 %v1957
    %2186 = vmatprep.subr.mxu0 0.0
    %2187 = vmatpush2.msra.mxu0 0.0
    %2188 = vmatprep.subr.mxu0 0.0
    %2189 = vmatpush2.msra.mxu0 0.0
    %2190 = vmatprep.subr.mxu0 0.0
    %2191 = vmatpush2.msra.mxu0 0.0
    %2192 = vmatprep.subr.mxu0 0.0
    %2193 = vmatpush2.msra.mxu0 0.0
    %2194 = vmatprep.subr.mxu0 0.0
    %2195 = vmatpush2.msra.mxu0 0.0
    %2196 = vmatprep.subr.mxu0 0.0
    %2197 = vmatpush2.msra.mxu0 0.0
    %2198 = vmatprep.subr.mxu0 0.0
    %2199 = vmatpush2.msra.mxu0 0.0
    %2200 = vmatprep.subr.mxu0 0.0
    %2201 = vmatpush2.msra.mxu0 0.0
    %2202 = vmatprep.subr.mxu0 0.0
    %2203 = vmatpush2.msra.mxu0 0.0
    %2204 = vmatprep.subr.mxu0 0.0
    %2205 = vmatpush2.msra.mxu0 0.0
    %2206 = vmatprep.subr.mxu0 0.0
    %2207 = vmatpush2.msra.mxu0 0.0
    %2208 = vmatprep.subr.mxu0 0.0
    %2209 = vmatpush2.msra.mxu0 0.0
    %2210 = vmatprep.subr.mxu0 0.0
    %2211 = vmatpush2.msra.mxu0 0.0
    %2212 = vmatprep.subr.mxu0 0.0
    %2213 = vmatpush2.msra.mxu0 0.0
    %2214 = vmatprep.subr.mxu0 0.0
    %2215 = vmatpush2.msra.mxu0 0.0
    %2216 = vmatprep.subr.mxu0 0.0
    %2217 = vmatpush2.msra.mxu0 0.0
    %2218 = vmatprep.mubr.f32.mxu0 0.0
    %2219 = vmatmul.mubr.f32.gmra.mxu0 %v1947
    %v2220 = vpop.f32.mrf.mxu0
    %v2221 = vadd.f32 %v2032, %v2220
    %v2222 = vpop.f32.mrf.mxu0
    %v2223 = vadd.f32 %v2036, %v2222
    %2224 = vmatprep.mubr.f32.mxu0 0.0
    %2225 = vmatmul.mubr.f32.gmra.mxu0 %v1948
    %v2226 = vpop.f32.mrf.mxu0
    %v2227 = vadd.f32 %v2032, %v2226
    %v2228 = vpop.f32.mrf.mxu0
    %v2229 = vadd.f32 %v2036, %v2228
    %2230 = vmatprep.mubr.f32.mxu0 0.0
    %2231 = vmatmul.mubr.f32.gmra.mxu0 %v1949
    %v2232 = vpop.f32.mrf.mxu0
    %v2233 = vadd.f32 %v2032, %v2232
    %v2234 = vpop.f32.mrf.mxu0
    %v2235 = vadd.f32 %v2036, %v2234
    %2236 = vmatprep.mubr.f32.mxu0 0.0
    %2237 = vmatmul.mubr.f32.gmra.mxu0 %v1950
    %v2238 = vpop.f32.mrf.mxu0
    %v2239 = vadd.f32 %v2032, %v2238
    %v2240 = vpop.f32.mrf.mxu0
    %v2241 = vadd.f32 %v2036, %v2240
    %2242 = vmatprep.mubr.f32.mxu0 0.0
    %2243 = vmatmul.mubr.f32.gmra.mxu0 %v1951
    %v2244 = vpop.f32.mrf.mxu0
    %v2245 = vadd.f32 %v2032, %v2244
    %v2246 = vpop.f32.mrf.mxu0
    %v2247 = vadd.f32 %v2036, %v2246
    %2248 = vmatprep.mubr.f32.mxu0 0.0
    %2249 = vmatmul.mubr.f32.gmra.mxu0 %v1952
    %v2250 = vpop.f32.mrf.mxu0
    %v2251 = vadd.f32 %v2032, %v2250
    %v2252 = vpop.f32.mrf.mxu0
    %v2253 = vadd.f32 %v2036, %v2252
    %2254 = vmatprep.mubr.f32.mxu0 0.0
    %2255 = vmatmul.mubr.f32.gmra.mxu0 %v1953
    %v2256 = vpop.f32.mrf.mxu0
    %v2257 = vadd.f32 %v2032, %v2256
    %v2258 = vpop.f32.mrf.mxu0
    %v2259 = vadd.f32 %v2036, %v2258
    %2260 = vmatprep.mubr.f32.mxu0 0.0
    %2261 = vmatmul.mubr.f32.gmra.mxu0 %v1954
    %v2262 = vpop.f32.mrf.mxu0
    %v2263 = vadd.f32 %v2032, %v2262
    %v2264 = vpop.f32.mrf.mxu0
    %v2265 = vadd.f32 %v2036, %v2264
    %2266 = vdwg.mxu0
    %2267 = vst [vmem:[#allocation2] sm:$0xff] %v2108
    %2268 = vst [vmem:[#allocation2 + $0x8] sm:$0xff] %v2110
    %2269 = vst [vmem:[#allocation2 + $0x10] sm:$0xff] %v2221
    %2270 = vst [vmem:[#allocation2 + $0x18] sm:$0xff] %v2223
    %2271 = vst [vmem:[#allocation2 + $0x20] sm:$0xff] %v2114
    %2272 = vst [vmem:[#allocation2 + $0x28] sm:$0xff] %v2116
    %2273 = vst [vmem:[#allocation2 + $0x30] sm:$0xff] %v2227
    %2274 = vst [vmem:[#allocation2 + $0x38] sm:$0xff] %v2229
    %2275 = vst [vmem:[#allocation2 + $0x40] sm:$0xff] %v2120
    %2276 = vst [vmem:[#allocation2 + $0x48] sm:$0xff] %v2122
    %2277 = vst [vmem:[#allocation2 + $0x50] sm:$0xff] %v2233
    %2278 = vst [vmem:[#allocation2 + $0x58] sm:$0xff] %v2235
    %2279 = vst [vmem:[#allocation2 + $0x60] sm:$0xff] %v2126
    %2280 = vst [vmem:[#allocation2 + $0x68] sm:$0xff] %v2128
    %2281 = vst [vmem:[#allocation2 + $0x70] sm:$0xff] %v2239
    %2282 = vst [vmem:[#allocation2 + $0x78] sm:$0xff] %v2241
    %2283 = vst [vmem:[#allocation2 + $0x80] sm:$0xff] %v2132
    %2284 = vst [vmem:[#allocation2 + $0x88] sm:$0xff] %v2134
    %2285 = vst [vmem:[#allocation2 + $0x90] sm:$0xff] %v2245
    %2286 = vst [vmem:[#allocation2 + $0x98] sm:$0xff] %v2247
    %2287 = vst [vmem:[#allocation2 + $0xa0] sm:$0xff] %v2138
    %2288 = vst [vmem:[#allocation2 + $0xa8] sm:$0xff] %v2140
    %2289 = vst [vmem:[#allocation2 + $0xb0] sm:$0xff] %v2251
    %2290 = vst [vmem:[#allocation2 + $0xb8] sm:$0xff] %v2253
    %2291 = vst [vmem:[#allocation2 + $0xc0] sm:$0xff] %v2144
    %2292 = vst [vmem:[#allocation2 + $0xc8] sm:$0xff] %v2146
    %2293 = vst [vmem:[#allocation2 + $0xd0] sm:$0xff] %v2257
    %2294 = vst [vmem:[#allocation2 + $0xd8] sm:$0xff] %v2259
    %2295 = vst [vmem:[#allocation2 + $0xe0] sm:$0xff] %v2150
    %2296 = vst [vmem:[#allocation2 + $0xe8] sm:$0xff] %v2152
    %2297 = vst [vmem:[#allocation2 + $0xf0] sm:$0xff] %v2263
    %2298 = vst [vmem:[#allocation2 + $0xf8] sm:$0xff] %v2265
    %v2299 = vld [vmem:[#allocation9] sm:$0xff]
    %v2300 = vld [vmem:[#allocation9 + $0x8] sm:$0xff]
    %v2301 = vld [vmem:[#allocation9 + $0x10] sm:$0xff]
    %v2302 = vld [vmem:[#allocation9 + $0x18] sm:$0xff]
    %v2303 = vld [vmem:[#allocation9 + $0x20] sm:$0xff]
    %v2304 = vld [vmem:[#allocation9 + $0x28] sm:$0xff]
    %v2305 = vld [vmem:[#allocation9 + $0x30] sm:$0xff]
    %v2306 = vld [vmem:[#allocation9 + $0x38] sm:$0xff]
    %v2307 = vld [vmem:[#allocation9 + $0x40] sm:$0xff]
    %v2308 = vld [vmem:[#allocation9 + $0x48] sm:$0xff]
    %v2309 = vld [vmem:[#allocation9 + $0x50] sm:$0xff]
    %v2310 = vld [vmem:[#allocation9 + $0x58] sm:$0xff]
    %v2311 = vld [vmem:[#allocation9 + $0x60] sm:$0xff]
    %v2312 = vld [vmem:[#allocation9 + $0x68] sm:$0xff]
    %v2313 = vld [vmem:[#allocation9 + $0x70] sm:$0xff]
    %v2314 = vld [vmem:[#allocation9 + $0x78] sm:$0xff]
    %v2315 = vld [vmem:[#allocation9 + $0x80] sm:$0xff]
    %v2316 = vld [vmem:[#allocation9 + $0x88] sm:$0xff]
    %v2317 = vld [vmem:[#allocation9 + $0x90] sm:$0xff]
    %v2318 = vld [vmem:[#allocation9 + $0x98] sm:$0xff]
    %v2319 = vld [vmem:[#allocation9 + $0xa0] sm:$0xff]
    %v2320 = vld [vmem:[#allocation9 + $0xa8] sm:$0xff]
    %v2321 = vld [vmem:[#allocation9 + $0xb0] sm:$0xff]
    %v2322 = vld [vmem:[#allocation9 + $0xb8] sm:$0xff]
    %v2323 = vld [vmem:[#allocation9 + $0xc0] sm:$0xff]
    %v2324 = vld [vmem:[#allocation9 + $0xc8] sm:$0xff]
    %v2325 = vld [vmem:[#allocation9 + $0xd0] sm:$0xff]
    %v2326 = vld [vmem:[#allocation9 + $0xd8] sm:$0xff]
    %v2327 = vld [vmem:[#allocation9 + $0xe0] sm:$0xff]
    %v2328 = vld [vmem:[#allocation9 + $0xe8] sm:$0xff]
    %v2329 = vld [vmem:[#allocation9 + $0xf0] sm:$0xff]
    %v2330 = vld [vmem:[#allocation9 + $0xf8] sm:$0xff]
    %v2331 = vld [vmem:[#allocation9 + $0x100] sm:$0xff]
    %v2332 = vld [vmem:[#allocation9 + $0x108] sm:$0xff]
    %v2333 = vld [vmem:[#allocation9 + $0x110] sm:$0xff]
    %v2334 = vld [vmem:[#allocation9 + $0x118] sm:$0xff]
    %v2335 = vld [vmem:[#allocation9 + $0x120] sm:$0xff]
    %v2336 = vld [vmem:[#allocation9 + $0x128] sm:$0xff]
    %v2337 = vld [vmem:[#allocation9 + $0x130] sm:$0xff]
    %v2338 = vld [vmem:[#allocation9 + $0x138] sm:$0xff]
    %v2339 = vld [vmem:[#allocation9 + $0x140] sm:$0xff]
    %v2340 = vld [vmem:[#allocation9 + $0x148] sm:$0xff]
    %v2341 = vld [vmem:[#allocation9 + $0x150] sm:$0xff]
    %v2342 = vld [vmem:[#allocation9 + $0x158] sm:$0xff]
    %v2343 = vld [vmem:[#allocation9 + $0x160] sm:$0xff]
    %v2344 = vld [vmem:[#allocation9 + $0x168] sm:$0xff]
    %v2345 = vld [vmem:[#allocation9 + $0x170] sm:$0xff]
    %v2346 = vld [vmem:[#allocation9 + $0x178] sm:$0xff]
    %v2347 = vld [vmem:[#allocation9 + $0x180] sm:$0xff]
    %v2348 = vld [vmem:[#allocation9 + $0x188] sm:$0xff]
    %v2349 = vld [vmem:[#allocation9 + $0x190] sm:$0xff]
    %v2350 = vld [vmem:[#allocation9 + $0x198] sm:$0xff]
    %v2351 = vld [vmem:[#allocation9 + $0x1a0] sm:$0xff]
    %v2352 = vld [vmem:[#allocation9 + $0x1a8] sm:$0xff]
    %v2353 = vld [vmem:[#allocation9 + $0x1b0] sm:$0xff]
    %v2354 = vld [vmem:[#allocation9 + $0x1b8] sm:$0xff]
    %v2355 = vld [vmem:[#allocation9 + $0x1c0] sm:$0xff]
    %v2356 = vld [vmem:[#allocation9 + $0x1c8] sm:$0xff]
    %v2357 = vld [vmem:[#allocation9 + $0x1d0] sm:$0xff]
    %v2358 = vld [vmem:[#allocation9 + $0x1d8] sm:$0xff]
    %v2359 = vld [vmem:[#allocation9 + $0x1e0] sm:$0xff]
    %v2360 = vld [vmem:[#allocation9 + $0x1e8] sm:$0xff]
    %v2361 = vld [vmem:[#allocation9 + $0x1f0] sm:$0xff]
    %v2362 = vld [vmem:[#allocation9 + $0x1f8] sm:$0xff]
    %s2363 = scalar_lea.vmem %s7, 8
    %v2364 = vld [vmem:[%s2363] sm:$0xff]
    %s2365 = scalar_lea.vmem %s8, 8
    %v2366 = vld [vmem:[%s2365] sm:$0xff]
    %v2367 = vld [vmem:[%s516] sm:$0xff]
    %v2368 = vld [vmem:[%s516 + $0x8] sm:$0xff]
    %v2369 = vld [vmem:[%s516 + $0x10] sm:$0xff]
    %v2370 = vld [vmem:[%s516 + $0x18] sm:$0xff]
    %2371 = vmatprep.subr.mxu0 %v2360
    %2372 = vmatpush1.msra.mxu0 %v2359
    %2373 = vmatprep.subr.mxu0 %v2356
    %2374 = vmatpush1.msra.mxu0 %v2355
    %2375 = vmatprep.subr.mxu0 %v2352
    %2376 = vmatpush1.msra.mxu0 %v2351
    %2377 = vmatprep.subr.mxu0 %v2348
    %2378 = vmatpush1.msra.mxu0 %v2347
    %2379 = vmatprep.subr.mxu0 %v2344
    %2380 = vmatpush1.msra.mxu0 %v2343
    %2381 = vmatprep.subr.mxu0 %v2340
    %2382 = vmatpush1.msra.mxu0 %v2339
    %2383 = vmatprep.subr.mxu0 %v2336
    %2384 = vmatpush1.msra.mxu0 %v2335
    %2385 = vmatprep.subr.mxu0 %v2332
    %2386 = vmatpush1.msra.mxu0 %v2331
    %2387 = vmatprep.subr.mxu0 %v2328
    %2388 = vmatpush1.msra.mxu0 %v2327
    %2389 = vmatprep.subr.mxu0 %v2324
    %2390 = vmatpush1.msra.mxu0 %v2323
    %2391 = vmatprep.subr.mxu0 %v2320
    %2392 = vmatpush1.msra.mxu0 %v2319
    %2393 = vmatprep.subr.mxu0 %v2316
    %2394 = vmatpush1.msra.mxu0 %v2315
    %2395 = vmatprep.subr.mxu0 %v2312
    %2396 = vmatpush1.msra.mxu0 %v2311
    %2397 = vmatprep.subr.mxu0 %v2308
    %2398 = vmatpush1.msra.mxu0 %v2307
    %2399 = vmatprep.subr.mxu0 %v2304
    %2400 = vmatpush1.msra.mxu0 %v2303
    %2401 = vmatprep.subr.mxu0 %v2300
    %2402 = vmatpush1.msra.mxu0 %v2299
    %2403 = vmatprep.subr.mxu0 0.0
    %2404 = vmatpush2.msra.mxu0 0.0
    %2405 = vmatprep.subr.mxu0 0.0
    %2406 = vmatpush2.msra.mxu0 0.0
    %2407 = vmatprep.subr.mxu0 0.0
    %2408 = vmatpush2.msra.mxu0 0.0
    %2409 = vmatprep.subr.mxu0 0.0
    %2410 = vmatpush2.msra.mxu0 0.0
    %2411 = vmatprep.subr.mxu0 0.0
    %2412 = vmatpush2.msra.mxu0 0.0
    %2413 = vmatprep.subr.mxu0 0.0
    %2414 = vmatpush2.msra.mxu0 0.0
    %2415 = vmatprep.subr.mxu0 0.0
    %2416 = vmatpush2.msra.mxu0 0.0
    %2417 = vmatprep.subr.mxu0 0.0
    %2418 = vmatpush2.msra.mxu0 0.0
    %2419 = vmatprep.subr.mxu0 0.0
    %2420 = vmatpush2.msra.mxu0 0.0
    %2421 = vmatprep.subr.mxu0 0.0
    %2422 = vmatpush2.msra.mxu0 0.0
    %2423 = vmatprep.subr.mxu0 0.0
    %2424 = vmatpush2.msra.mxu0 0.0
    %2425 = vmatprep.subr.mxu0 0.0
    %2426 = vmatpush2.msra.mxu0 0.0
    %2427 = vmatprep.subr.mxu0 0.0
    %2428 = vmatpush2.msra.mxu0 0.0
    %2429 = vmatprep.subr.mxu0 0.0
    %2430 = vmatpush2.msra.mxu0 0.0
    %2431 = vmatprep.subr.mxu0 0.0
    %2432 = vmatpush2.msra.mxu0 0.0
    %2433 = vmatprep.subr.mxu0 0.0
    %2434 = vmatpush2.msra.mxu0 0.0
    %2435 = vmatprep.mubr.f32.mxu0 0.0
    %2436 = vmatmul.mubr.f32.gmra.mxu0 %v2364
    %v2437 = vpop.f32.mrf.mxu0
    %v2438 = vadd.f32 0.0, %v2437
    %v2439 = vpop.f32.mrf.mxu0
    %v2440 = vadd.f32 0.0, %v2439
    %2441 = vdwg.mxu0
    %2442 = vmatprep.subr.mxu0 %v2362
    %2443 = vmatpush1.msra.mxu0 %v2361
    %2444 = vmatprep.subr.mxu0 %v2358
    %2445 = vmatpush1.msra.mxu0 %v2357
    %2446 = vmatprep.subr.mxu0 %v2354
    %2447 = vmatpush1.msra.mxu0 %v2353
    %2448 = vmatprep.subr.mxu0 %v2350
    %2449 = vmatpush1.msra.mxu0 %v2349
    %2450 = vmatprep.subr.mxu0 %v2346
    %2451 = vmatpush1.msra.mxu0 %v2345
    %2452 = vmatprep.subr.mxu0 %v2342
    %2453 = vmatpush1.msra.mxu0 %v2341
    %2454 = vmatprep.subr.mxu0 %v2338
    %2455 = vmatpush1.msra.mxu0 %v2337
    %2456 = vmatprep.subr.mxu0 %v2334
    %2457 = vmatpush1.msra.mxu0 %v2333
    %2458 = vmatprep.subr.mxu0 %v2330
    %2459 = vmatpush1.msra.mxu0 %v2329
    %2460 = vmatprep.subr.mxu0 %v2326
    %2461 = vmatpush1.msra.mxu0 %v2325
    %2462 = vmatprep.subr.mxu0 %v2322
    %2463 = vmatpush1.msra.mxu0 %v2321
    %2464 = vmatprep.subr.mxu0 %v2318
    %2465 = vmatpush1.msra.mxu0 %v2317
    %2466 = vmatprep.subr.mxu0 %v2314
    %2467 = vmatpush1.msra.mxu0 %v2313
    %2468 = vmatprep.subr.mxu0 %v2310
    %2469 = vmatpush1.msra.mxu0 %v2309
    %2470 = vmatprep.subr.mxu0 %v2306
    %2471 = vmatpush1.msra.mxu0 %v2305
    %2472 = vmatprep.subr.mxu0 %v2302
    %2473 = vmatpush1.msra.mxu0 %v2301
    %2474 = vmatprep.subr.mxu0 0.0
    %2475 = vmatpush2.msra.mxu0 0.0
    %2476 = vmatprep.subr.mxu0 0.0
    %2477 = vmatpush2.msra.mxu0 0.0
    %2478 = vmatprep.subr.mxu0 0.0
    %2479 = vmatpush2.msra.mxu0 0.0
    %2480 = vmatprep.subr.mxu0 0.0
    %2481 = vmatpush2.msra.mxu0 0.0
    %2482 = vmatprep.subr.mxu0 0.0
    %2483 = vmatpush2.msra.mxu0 0.0
    %2484 = vmatprep.subr.mxu0 0.0
    %2485 = vmatpush2.msra.mxu0 0.0
    %2486 = vmatprep.subr.mxu0 0.0
    %2487 = vmatpush2.msra.mxu0 0.0
    %2488 = vmatprep.subr.mxu0 0.0
    %2489 = vmatpush2.msra.mxu0 0.0
    %2490 = vmatprep.subr.mxu0 0.0
    %2491 = vmatpush2.msra.mxu0 0.0
    %2492 = vmatprep.subr.mxu0 0.0
    %2493 = vmatpush2.msra.mxu0 0.0
    %2494 = vmatprep.subr.mxu0 0.0
    %2495 = vmatpush2.msra.mxu0 0.0
    %2496 = vmatprep.subr.mxu0 0.0
    %2497 = vmatpush2.msra.mxu0 0.0
    %2498 = vmatprep.subr.mxu0 0.0
    %2499 = vmatpush2.msra.mxu0 0.0
    %2500 = vmatprep.subr.mxu0 0.0
    %2501 = vmatpush2.msra.mxu0 0.0
    %2502 = vmatprep.subr.mxu0 0.0
    %2503 = vmatpush2.msra.mxu0 0.0
    %2504 = vmatprep.subr.mxu0 0.0
    %2505 = vmatpush2.msra.mxu0 0.0
    %2506 = vmatprep.mubr.f32.mxu0 0.0
    %2507 = vmatmul.mubr.f32.gmra.mxu0 %v2364
    %v2508 = vpop.f32.mrf.mxu0
    %v2509 = vadd.f32 0.0, %v2508
    %v2510 = vpop.f32.mrf.mxu0
    %v2511 = vadd.f32 0.0, %v2510
    %2512 = vdwg.mxu0
    %v2513 = vadd.f32 %v2367, %v2438
    %v2514 = vadd.f32 %v2368, %v2440
    %v2515 = vadd.f32 %v2369, %v2509
    %v2516 = vadd.f32 %v2370, %v2511
    %v2517 = vxor.u32 %v2513, 2147483648
    %v2518 = vmul.f32 %v2517, 1.442695
    %v2519 = vpow.pop %v2518
    %v2520 = vadd.f32 %v2519, 1.0
    %v2521 = vrcp.pop %v2520
    %v2522 = vmul.f32 1.0, %v2521
    %v2523 = vxor.u32 %v2514, 2147483648
    %v2524 = vmul.f32 %v2523, 1.442695
    %v2525 = vpow.pop %v2524
    %v2526 = vadd.f32 %v2525, 1.0
    %v2527 = vrcp.pop %v2526
    %v2528 = vmul.f32 1.0, %v2527
    %v2529 = vtanh.pop %v2515
    %v2530 = vxor.u32 %v2516, 2147483648
    %v2531 = vmul.f32 %v2530, 1.442695
    %v2532 = vpow.pop %v2531
    %v2533 = vadd.f32 %v2532, 1.0
    %v2534 = vrcp.pop %v2533
    %v2535 = vmul.f32 1.0, %v2534
    %v2536 = vmul.f32 %v2528, %v2366
    %v2537 = vmul.f32 %v2522, %v2529
    %v2538 = vadd.f32 %v2536, %v2537
    %v2539 = vtanh.pop %v2538
    %v2540 = vmul.f32 %v2535, %v2539
    %2541 = vst [vmem:[#allocation3] sm:$0xff] %v2540
    %v2542 = vld [vmem:[%s694] sm:$0xff]
    %v2543 = vld [vmem:[%s694 + $0x8] sm:$0xff]
    %v2544 = vld [vmem:[%s694 + $0x10] sm:$0xff]
    %v2545 = vld [vmem:[%s694 + $0x18] sm:$0xff]
    %2546 = vmatprep.subr.mxu0 %v2360
    %2547 = vmatpush1.msra.mxu0 %v2359
    %2548 = vmatprep.subr.mxu0 %v2356
    %2549 = vmatpush1.msra.mxu0 %v2355
    %2550 = vmatprep.subr.mxu0 %v2352
    %2551 = vmatpush1.msra.mxu0 %v2351
    %2552 = vmatprep.subr.mxu0 %v2348
    %2553 = vmatpush1.msra.mxu0 %v2347
    %2554 = vmatprep.subr.mxu0 %v2344
    %2555 = vmatpush1.msra.mxu0 %v2343
    %2556 = vmatprep.subr.mxu0 %v2340
    %2557 = vmatpush1.msra.mxu0 %v2339
    %2558 = vmatprep.subr.mxu0 %v2336
    %2559 = vmatpush1.msra.mxu0 %v2335
    %2560 = vmatprep.subr.mxu0 %v2332
    %2561 = vmatpush1.msra.mxu0 %v2331
    %2562 = vmatprep.subr.mxu0 %v2328
    %2563 = vmatpush1.msra.mxu0 %v2327
    %2564 = vmatprep.subr.mxu0 %v2324
    %2565 = vmatpush1.msra.mxu0 %v2323
    %2566 = vmatprep.subr.mxu0 %v2320
    %2567 = vmatpush1.msra.mxu0 %v2319
    %2568 = vmatprep.subr.mxu0 %v2316
    %2569 = vmatpush1.msra.mxu0 %v2315
    %2570 = vmatprep.subr.mxu0 %v2312
    %2571 = vmatpush1.msra.mxu0 %v2311
    %2572 = vmatprep.subr.mxu0 %v2308
    %2573 = vmatpush1.msra.mxu0 %v2307
    %2574 = vmatprep.subr.mxu0 %v2304
    %2575 = vmatpush1.msra.mxu0 %v2303
    %2576 = vmatprep.subr.mxu0 %v2300
    %2577 = vmatpush1.msra.mxu0 %v2299
    %2578 = vmatprep.subr.mxu0 0.0
    %2579 = vmatpush2.msra.mxu0 0.0
    %2580 = vmatprep.subr.mxu0 0.0
    %2581 = vmatpush2.msra.mxu0 0.0
    %2582 = vmatprep.subr.mxu0 0.0
    %2583 = vmatpush2.msra.mxu0 0.0
    %2584 = vmatprep.subr.mxu0 0.0
    %2585 = vmatpush2.msra.mxu0 0.0
    %2586 = vmatprep.subr.mxu0 0.0
    %2587 = vmatpush2.msra.mxu0 0.0
    %2588 = vmatprep.subr.mxu0 0.0
    %2589 = vmatpush2.msra.mxu0 0.0
    %2590 = vmatprep.subr.mxu0 0.0
    %2591 = vmatpush2.msra.mxu0 0.0
    %2592 = vmatprep.subr.mxu0 0.0
    %2593 = vmatpush2.msra.mxu0 0.0
    %2594 = vmatprep.subr.mxu0 0.0
    %2595 = vmatpush2.msra.mxu0 0.0
    %2596 = vmatprep.subr.mxu0 0.0
    %2597 = vmatpush2.msra.mxu0 0.0
    %2598 = vmatprep.subr.mxu0 0.0
    %2599 = vmatpush2.msra.mxu0 0.0
    %2600 = vmatprep.subr.mxu0 0.0
    %2601 = vmatpush2.msra.mxu0 0.0
    %2602 = vmatprep.subr.mxu0 0.0
    %2603 = vmatpush2.msra.mxu0 0.0
    %2604 = vmatprep.subr.mxu0 0.0
    %2605 = vmatpush2.msra.mxu0 0.0
    %2606 = vmatprep.subr.mxu0 0.0
    %2607 = vmatpush2.msra.mxu0 0.0
    %2608 = vmatprep.subr.mxu0 0.0
    %2609 = vmatpush2.msra.mxu0 0.0
    %2610 = vmatprep.mubr.f32.mxu0 0.0
    %2611 = vmatmul.mubr.f32.gmra.mxu0 %v2540
    %v2612 = vpop.f32.mrf.mxu0
    %v2613 = vadd.f32 0.0, %v2612
    %v2614 = vpop.f32.mrf.mxu0
    %v2615 = vadd.f32 0.0, %v2614
    %2616 = vdwg.mxu0
    %2617 = vmatprep.subr.mxu0 %v2362
    %2618 = vmatpush1.msra.mxu0 %v2361
    %2619 = vmatprep.subr.mxu0 %v2358
    %2620 = vmatpush1.msra.mxu0 %v2357
    %2621 = vmatprep.subr.mxu0 %v2354
    %2622 = vmatpush1.msra.mxu0 %v2353
    %2623 = vmatprep.subr.mxu0 %v2350
    %2624 = vmatpush1.msra.mxu0 %v2349
    %2625 = vmatprep.subr.mxu0 %v2346
    %2626 = vmatpush1.msra.mxu0 %v2345
    %2627 = vmatprep.subr.mxu0 %v2342
    %2628 = vmatpush1.msra.mxu0 %v2341
    %2629 = vmatprep.subr.mxu0 %v2338
    %2630 = vmatpush1.msra.mxu0 %v2337
    %2631 = vmatprep.subr.mxu0 %v2334
    %2632 = vmatpush1.msra.mxu0 %v2333
    %2633 = vmatprep.subr.mxu0 %v2330
    %2634 = vmatpush1.msra.mxu0 %v2329
    %2635 = vmatprep.subr.mxu0 %v2326
    %2636 = vmatpush1.msra.mxu0 %v2325
    %2637 = vmatprep.subr.mxu0 %v2322
    %2638 = vmatpush1.msra.mxu0 %v2321
    %2639 = vmatprep.subr.mxu0 %v2318
    %2640 = vmatpush1.msra.mxu0 %v2317
    %2641 = vmatprep.subr.mxu0 %v2314
    %2642 = vmatpush1.msra.mxu0 %v2313
    %2643 = vmatprep.subr.mxu0 %v2310
    %2644 = vmatpush1.msra.mxu0 %v2309
    %2645 = vmatprep.subr.mxu0 %v2306
    %2646 = vmatpush1.msra.mxu0 %v2305
    %2647 = vmatprep.subr.mxu0 %v2302
    %2648 = vmatpush1.msra.mxu0 %v2301
    %2649 = vmatprep.subr.mxu0 0.0
    %2650 = vmatpush2.msra.mxu0 0.0
    %2651 = vmatprep.subr.mxu0 0.0
    %2652 = vmatpush2.msra.mxu0 0.0
    %2653 = vmatprep.subr.mxu0 0.0
    %2654 = vmatpush2.msra.mxu0 0.0
    %2655 = vmatprep.subr.mxu0 0.0
    %2656 = vmatpush2.msra.mxu0 0.0
    %2657 = vmatprep.subr.mxu0 0.0
    %2658 = vmatpush2.msra.mxu0 0.0
    %2659 = vmatprep.subr.mxu0 0.0
    %2660 = vmatpush2.msra.mxu0 0.0
    %2661 = vmatprep.subr.mxu0 0.0
    %2662 = vmatpush2.msra.mxu0 0.0
    %2663 = vmatprep.subr.mxu0 0.0
    %2664 = vmatpush2.msra.mxu0 0.0
    %2665 = vmatprep.subr.mxu0 0.0
    %2666 = vmatpush2.msra.mxu0 0.0
    %2667 = vmatprep.subr.mxu0 0.0
    %2668 = vmatpush2.msra.mxu0 0.0
    %2669 = vmatprep.subr.mxu0 0.0
    %2670 = vmatpush2.msra.mxu0 0.0
    %2671 = vmatprep.subr.mxu0 0.0
    %2672 = vmatpush2.msra.mxu0 0.0
    %2673 = vmatprep.subr.mxu0 0.0
    %2674 = vmatpush2.msra.mxu0 0.0
    %2675 = vmatprep.subr.mxu0 0.0
    %2676 = vmatpush2.msra.mxu0 0.0
    %2677 = vmatprep.subr.mxu0 0.0
    %2678 = vmatpush2.msra.mxu0 0.0
    %2679 = vmatprep.subr.mxu0 0.0
    %2680 = vmatpush2.msra.mxu0 0.0
    %2681 = vmatprep.mubr.f32.mxu0 0.0
    %2682 = vmatmul.mubr.f32.gmra.mxu0 %v2540
    %v2683 = vpop.f32.mrf.mxu0
    %v2684 = vadd.f32 0.0, %v2683
    %v2685 = vpop.f32.mrf.mxu0
    %v2686 = vadd.f32 0.0, %v2685
    %2687 = vdwg.mxu0
    %v2688 = vadd.f32 %v2542, %v2613
    %v2689 = vadd.f32 %v2543, %v2615
    %v2690 = vadd.f32 %v2544, %v2684
    %v2691 = vadd.f32 %v2545, %v2686
    %v2692 = vxor.u32 %v2688, 2147483648
    %v2693 = vmul.f32 %v2692, 1.442695
    %v2694 = vpow.pop %v2693
    %v2695 = vadd.f32 %v2694, 1.0
    %v2696 = vrcp.pop %v2695
    %v2697 = vmul.f32 1.0, %v2696
    %v2698 = vxor.u32 %v2689, 2147483648
    %v2699 = vmul.f32 %v2698, 1.442695
    %v2700 = vpow.pop %v2699
    %v2701 = vadd.f32 %v2700, 1.0
    %v2702 = vrcp.pop %v2701
    %v2703 = vmul.f32 1.0, %v2702
    %v2704 = vtanh.pop %v2690
    %v2705 = vxor.u32 %v2691, 2147483648
    %v2706 = vmul.f32 %v2705, 1.442695
    %v2707 = vpow.pop %v2706
    %v2708 = vadd.f32 %v2707, 1.0
    %v2709 = vrcp.pop %v2708
    %v2710 = vmul.f32 1.0, %v2709
    %v2711 = vmul.f32 %v2703, %v2538
    %v2712 = vmul.f32 %v2697, %v2704
    %v2713 = vadd.f32 %v2711, %v2712
    %v2714 = vtanh.pop %v2713
    %v2715 = vmul.f32 %v2710, %v2714
    %2716 = vst [vmem:[%s869] sm:$0xff] %v2715
    %v2717 = vld [vmem:[%s873] sm:$0xff]
    %v2718 = vld [vmem:[%s873 + $0x8] sm:$0xff]
    %v2719 = vld [vmem:[%s873 + $0x10] sm:$0xff]
    %v2720 = vld [vmem:[%s873 + $0x18] sm:$0xff]
    %2721 = vmatprep.subr.mxu0 %v2360
    %2722 = vmatpush1.msra.mxu0 %v2359
    %2723 = vmatprep.subr.mxu0 %v2356
    %2724 = vmatpush1.msra.mxu0 %v2355
    %2725 = vmatprep.subr.mxu0 %v2352
    %2726 = vmatpush1.msra.mxu0 %v2351
    %2727 = vmatprep.subr.mxu0 %v2348
    %2728 = vmatpush1.msra.mxu0 %v2347
    %2729 = vmatprep.subr.mxu0 %v2344
    %2730 = vmatpush1.msra.mxu0 %v2343
    %2731 = vmatprep.subr.mxu0 %v2340
    %2732 = vmatpush1.msra.mxu0 %v2339
    %2733 = vmatprep.subr.mxu0 %v2336
    %2734 = vmatpush1.msra.mxu0 %v2335
    %2735 = vmatprep.subr.mxu0 %v2332
    %2736 = vmatpush1.msra.mxu0 %v2331
    %2737 = vmatprep.subr.mxu0 %v2328
    %2738 = vmatpush1.msra.mxu0 %v2327
    %2739 = vmatprep.subr.mxu0 %v2324
    %2740 = vmatpush1.msra.mxu0 %v2323
    %2741 = vmatprep.subr.mxu0 %v2320
    %2742 = vmatpush1.msra.mxu0 %v2319
    %2743 = vmatprep.subr.mxu0 %v2316
    %2744 = vmatpush1.msra.mxu0 %v2315
    %2745 = vmatprep.subr.mxu0 %v2312
    %2746 = vmatpush1.msra.mxu0 %v2311
    %2747 = vmatprep.subr.mxu0 %v2308
    %2748 = vmatpush1.msra.mxu0 %v2307
    %2749 = vmatprep.subr.mxu0 %v2304
    %2750 = vmatpush1.msra.mxu0 %v2303
    %2751 = vmatprep.subr.mxu0 %v2300
    %2752 = vmatpush1.msra.mxu0 %v2299
    %2753 = vmatprep.subr.mxu0 0.0
    %2754 = vmatpush2.msra.mxu0 0.0
    %2755 = vmatprep.subr.mxu0 0.0
    %2756 = vmatpush2.msra.mxu0 0.0
    %2757 = vmatprep.subr.mxu0 0.0
    %2758 = vmatpush2.msra.mxu0 0.0
    %2759 = vmatprep.subr.mxu0 0.0
    %2760 = vmatpush2.msra.mxu0 0.0
    %2761 = vmatprep.subr.mxu0 0.0
    %2762 = vmatpush2.msra.mxu0 0.0
    %2763 = vmatprep.subr.mxu0 0.0
    %2764 = vmatpush2.msra.mxu0 0.0
    %2765 = vmatprep.subr.mxu0 0.0
    %2766 = vmatpush2.msra.mxu0 0.0
    %2767 = vmatprep.subr.mxu0 0.0
    %2768 = vmatpush2.msra.mxu0 0.0
    %2769 = vmatprep.subr.mxu0 0.0
    %2770 = vmatpush2.msra.mxu0 0.0
    %2771 = vmatprep.subr.mxu0 0.0
    %2772 = vmatpush2.msra.mxu0 0.0
    %2773 = vmatprep.subr.mxu0 0.0
    %2774 = vmatpush2.msra.mxu0 0.0
    %2775 = vmatprep.subr.mxu0 0.0
    %2776 = vmatpush2.msra.mxu0 0.0
    %2777 = vmatprep.subr.mxu0 0.0
    %2778 = vmatpush2.msra.mxu0 0.0
    %2779 = vmatprep.subr.mxu0 0.0
    %2780 = vmatpush2.msra.mxu0 0.0
    %2781 = vmatprep.subr.mxu0 0.0
    %2782 = vmatpush2.msra.mxu0 0.0
    %2783 = vmatprep.subr.mxu0 0.0
    %2784 = vmatpush2.msra.mxu0 0.0
    %2785 = vmatprep.mubr.f32.mxu0 0.0
    %2786 = vmatmul.mubr.f32.gmra.mxu0 %v2715
    %v2787 = vpop.f32.mrf.mxu0
    %v2788 = vadd.f32 0.0, %v2787
    %v2789 = vpop.f32.mrf.mxu0
    %v2790 = vadd.f32 0.0, %v2789
    %2791 = vdwg.mxu0
    %2792 = vmatprep.subr.mxu0 %v2362
    %2793 = vmatpush1.msra.mxu0 %v2361
    %2794 = vmatprep.subr.mxu0 %v2358
    %2795 = vmatpush1.msra.mxu0 %v2357
    %2796 = vmatprep.subr.mxu0 %v2354
    %2797 = vmatpush1.msra.mxu0 %v2353
    %2798 = vmatprep.subr.mxu0 %v2350
    %2799 = vmatpush1.msra.mxu0 %v2349
    %2800 = vmatprep.subr.mxu0 %v2346
    %2801 = vmatpush1.msra.mxu0 %v2345
    %2802 = vmatprep.subr.mxu0 %v2342
    %2803 = vmatpush1.msra.mxu0 %v2341
    %2804 = vmatprep.subr.mxu0 %v2338
    %2805 = vmatpush1.msra.mxu0 %v2337
    %2806 = vmatprep.subr.mxu0 %v2334
    %2807 = vmatpush1.msra.mxu0 %v2333
    %2808 = vmatprep.subr.mxu0 %v2330
    %2809 = vmatpush1.msra.mxu0 %v2329
    %2810 = vmatprep.subr.mxu0 %v2326
    %2811 = vmatpush1.msra.mxu0 %v2325
    %2812 = vmatprep.subr.mxu0 %v2322
    %2813 = vmatpush1.msra.mxu0 %v2321
    %2814 = vmatprep.subr.mxu0 %v2318
    %2815 = vmatpush1.msra.mxu0 %v2317
    %2816 = vmatprep.subr.mxu0 %v2314
    %2817 = vmatpush1.msra.mxu0 %v2313
    %2818 = vmatprep.subr.mxu0 %v2310
    %2819 = vmatpush1.msra.mxu0 %v2309
    %2820 = vmatprep.subr.mxu0 %v2306
    %2821 = vmatpush1.msra.mxu0 %v2305
    %2822 = vmatprep.subr.mxu0 %v2302
    %2823 = vmatpush1.msra.mxu0 %v2301
    %2824 = vmatprep.subr.mxu0 0.0
    %2825 = vmatpush2.msra.mxu0 0.0
    %2826 = vmatprep.subr.mxu0 0.0
    %2827 = vmatpush2.msra.mxu0 0.0
    %2828 = vmatprep.subr.mxu0 0.0
    %2829 = vmatpush2.msra.mxu0 0.0
    %2830 = vmatprep.subr.mxu0 0.0
    %2831 = vmatpush2.msra.mxu0 0.0
    %2832 = vmatprep.subr.mxu0 0.0
    %2833 = vmatpush2.msra.mxu0 0.0
    %2834 = vmatprep.subr.mxu0 0.0
    %2835 = vmatpush2.msra.mxu0 0.0
    %2836 = vmatprep.subr.mxu0 0.0
    %2837 = vmatpush2.msra.mxu0 0.0
    %2838 = vmatprep.subr.mxu0 0.0
    %2839 = vmatpush2.msra.mxu0 0.0
    %2840 = vmatprep.subr.mxu0 0.0
    %2841 = vmatpush2.msra.mxu0 0.0
    %2842 = vmatprep.subr.mxu0 0.0
    %2843 = vmatpush2.msra.mxu0 0.0
    %2844 = vmatprep.subr.mxu0 0.0
    %2845 = vmatpush2.msra.mxu0 0.0
    %2846 = vmatprep.subr.mxu0 0.0
    %2847 = vmatpush2.msra.mxu0 0.0
    %2848 = vmatprep.subr.mxu0 0.0
    %2849 = vmatpush2.msra.mxu0 0.0
    %2850 = vmatprep.subr.mxu0 0.0
    %2851 = vmatpush2.msra.mxu0 0.0
    %2852 = vmatprep.subr.mxu0 0.0
    %2853 = vmatpush2.msra.mxu0 0.0
    %2854 = vmatprep.subr.mxu0 0.0
    %2855 = vmatpush2.msra.mxu0 0.0
    %2856 = vmatprep.mubr.f32.mxu0 0.0
    %2857 = vmatmul.mubr.f32.gmra.mxu0 %v2715
    %v2858 = vpop.f32.mrf.mxu0
    %v2859 = vadd.f32 0.0, %v2858
    %v2860 = vpop.f32.mrf.mxu0
    %v2861 = vadd.f32 0.0, %v2860
    %2862 = vdwg.mxu0
    %v2863 = vadd.f32 %v2717, %v2788
    %v2864 = vadd.f32 %v2718, %v2790
    %v2865 = vadd.f32 %v2719, %v2859
    %v2866 = vadd.f32 %v2720, %v2861
    %v2867 = vxor.u32 %v2863, 2147483648
    %v2868 = vmul.f32 %v2867, 1.442695
    %v2869 = vpow.pop %v2868
    %v2870 = vadd.f32 %v2869, 1.0
    %v2871 = vrcp.pop %v2870
    %v2872 = vmul.f32 1.0, %v2871
    %v2873 = vxor.u32 %v2864, 2147483648
    %v2874 = vmul.f32 %v2873, 1.442695
    %v2875 = vpow.pop %v2874
    %v2876 = vadd.f32 %v2875, 1.0
    %v2877 = vrcp.pop %v2876
    %v2878 = vmul.f32 1.0, %v2877
    %v2879 = vtanh.pop %v2865
    %v2880 = vxor.u32 %v2866, 2147483648
    %v2881 = vmul.f32 %v2880, 1.442695
    %v2882 = vpow.pop %v2881
    %v2883 = vadd.f32 %v2882, 1.0
    %v2884 = vrcp.pop %v2883
    %v2885 = vmul.f32 1.0, %v2884
    %v2886 = vmul.f32 %v2878, %v2713
    %v2887 = vmul.f32 %v2872, %v2879
    %v2888 = vadd.f32 %v2886, %v2887
    %v2889 = vtanh.pop %v2888
    %v2890 = vmul.f32 %v2885, %v2889
    %2891 = vst [vmem:[%s1048] sm:$0xff] %v2890
    %v2892 = vld [vmem:[%s1052] sm:$0xff]
    %v2893 = vld [vmem:[%s1052 + $0x8] sm:$0xff]
    %v2894 = vld [vmem:[%s1052 + $0x10] sm:$0xff]
    %v2895 = vld [vmem:[%s1052 + $0x18] sm:$0xff]
    %2896 = vmatprep.subr.mxu0 %v2360
    %2897 = vmatpush1.msra.mxu0 %v2359
    %2898 = vmatprep.subr.mxu0 %v2356
    %2899 = vmatpush1.msra.mxu0 %v2355
    %2900 = vmatprep.subr.mxu0 %v2352
    %2901 = vmatpush1.msra.mxu0 %v2351
    %2902 = vmatprep.subr.mxu0 %v2348
    %2903 = vmatpush1.msra.mxu0 %v2347
    %2904 = vmatprep.subr.mxu0 %v2344
    %2905 = vmatpush1.msra.mxu0 %v2343
    %2906 = vmatprep.subr.mxu0 %v2340
    %2907 = vmatpush1.msra.mxu0 %v2339
    %2908 = vmatprep.subr.mxu0 %v2336
    %2909 = vmatpush1.msra.mxu0 %v2335
    %2910 = vmatprep.subr.mxu0 %v2332
    %2911 = vmatpush1.msra.mxu0 %v2331
    %2912 = vmatprep.subr.mxu0 %v2328
    %2913 = vmatpush1.msra.mxu0 %v2327
    %2914 = vmatprep.subr.mxu0 %v2324
    %2915 = vmatpush1.msra.mxu0 %v2323
    %2916 = vmatprep.subr.mxu0 %v2320
    %2917 = vmatpush1.msra.mxu0 %v2319
    %2918 = vmatprep.subr.mxu0 %v2316
    %2919 = vmatpush1.msra.mxu0 %v2315
    %2920 = vmatprep.subr.mxu0 %v2312
    %2921 = vmatpush1.msra.mxu0 %v2311
    %2922 = vmatprep.subr.mxu0 %v2308
    %2923 = vmatpush1.msra.mxu0 %v2307
    %2924 = vmatprep.subr.mxu0 %v2304
    %2925 = vmatpush1.msra.mxu0 %v2303
    %2926 = vmatprep.subr.mxu0 %v2300
    %2927 = vmatpush1.msra.mxu0 %v2299
    %2928 = vmatprep.subr.mxu0 0.0
    %2929 = vmatpush2.msra.mxu0 0.0
    %2930 = vmatprep.subr.mxu0 0.0
    %2931 = vmatpush2.msra.mxu0 0.0
    %2932 = vmatprep.subr.mxu0 0.0
    %2933 = vmatpush2.msra.mxu0 0.0
    %2934 = vmatprep.subr.mxu0 0.0
    %2935 = vmatpush2.msra.mxu0 0.0
    %2936 = vmatprep.subr.mxu0 0.0
    %2937 = vmatpush2.msra.mxu0 0.0
    %2938 = vmatprep.subr.mxu0 0.0
    %2939 = vmatpush2.msra.mxu0 0.0
    %2940 = vmatprep.subr.mxu0 0.0
    %2941 = vmatpush2.msra.mxu0 0.0
    %2942 = vmatprep.subr.mxu0 0.0
    %2943 = vmatpush2.msra.mxu0 0.0
    %2944 = vmatprep.subr.mxu0 0.0
    %2945 = vmatpush2.msra.mxu0 0.0
    %2946 = vmatprep.subr.mxu0 0.0
    %2947 = vmatpush2.msra.mxu0 0.0
    %2948 = vmatprep.subr.mxu0 0.0
    %2949 = vmatpush2.msra.mxu0 0.0
    %2950 = vmatprep.subr.mxu0 0.0
    %2951 = vmatpush2.msra.mxu0 0.0
    %2952 = vmatprep.subr.mxu0 0.0
    %2953 = vmatpush2.msra.mxu0 0.0
    %2954 = vmatprep.subr.mxu0 0.0
    %2955 = vmatpush2.msra.mxu0 0.0
    %2956 = vmatprep.subr.mxu0 0.0
    %2957 = vmatpush2.msra.mxu0 0.0
    %2958 = vmatprep.subr.mxu0 0.0
    %2959 = vmatpush2.msra.mxu0 0.0
    %2960 = vmatprep.mubr.f32.mxu0 0.0
    %2961 = vmatmul.mubr.f32.gmra.mxu0 %v2890
    %v2962 = vpop.f32.mrf.mxu0
    %v2963 = vadd.f32 0.0, %v2962
    %v2964 = vpop.f32.mrf.mxu0
    %v2965 = vadd.f32 0.0, %v2964
    %2966 = vdwg.mxu0
    %2967 = vmatprep.subr.mxu0 %v2362
    %2968 = vmatpush1.msra.mxu0 %v2361
    %2969 = vmatprep.subr.mxu0 %v2358
    %2970 = vmatpush1.msra.mxu0 %v2357
    %2971 = vmatprep.subr.mxu0 %v2354
    %2972 = vmatpush1.msra.mxu0 %v2353
    %2973 = vmatprep.subr.mxu0 %v2350
    %2974 = vmatpush1.msra.mxu0 %v2349
    %2975 = vmatprep.subr.mxu0 %v2346
    %2976 = vmatpush1.msra.mxu0 %v2345
    %2977 = vmatprep.subr.mxu0 %v2342
    %2978 = vmatpush1.msra.mxu0 %v2341
    %2979 = vmatprep.subr.mxu0 %v2338
    %2980 = vmatpush1.msra.mxu0 %v2337
    %2981 = vmatprep.subr.mxu0 %v2334
    %2982 = vmatpush1.msra.mxu0 %v2333
    %2983 = vmatprep.subr.mxu0 %v2330
    %2984 = vmatpush1.msra.mxu0 %v2329
    %2985 = vmatprep.subr.mxu0 %v2326
    %2986 = vmatpush1.msra.mxu0 %v2325
    %2987 = vmatprep.subr.mxu0 %v2322
    %2988 = vmatpush1.msra.mxu0 %v2321
    %2989 = vmatprep.subr.mxu0 %v2318
    %2990 = vmatpush1.msra.mxu0 %v2317
    %2991 = vmatprep.subr.mxu0 %v2314
    %2992 = vmatpush1.msra.mxu0 %v2313
    %2993 = vmatprep.subr.mxu0 %v2310
    %2994 = vmatpush1.msra.mxu0 %v2309
    %2995 = vmatprep.subr.mxu0 %v2306
    %2996 = vmatpush1.msra.mxu0 %v2305
    %2997 = vmatprep.subr.mxu0 %v2302
    %2998 = vmatpush1.msra.mxu0 %v2301
    %2999 = vmatprep.subr.mxu0 0.0
    %3000 = vmatpush2.msra.mxu0 0.0
    %3001 = vmatprep.subr.mxu0 0.0
    %3002 = vmatpush2.msra.mxu0 0.0
    %3003 = vmatprep.subr.mxu0 0.0
    %3004 = vmatpush2.msra.mxu0 0.0
    %3005 = vmatprep.subr.mxu0 0.0
    %3006 = vmatpush2.msra.mxu0 0.0
    %3007 = vmatprep.subr.mxu0 0.0
    %3008 = vmatpush2.msra.mxu0 0.0
    %3009 = vmatprep.subr.mxu0 0.0
    %3010 = vmatpush2.msra.mxu0 0.0
    %3011 = vmatprep.subr.mxu0 0.0
    %3012 = vmatpush2.msra.mxu0 0.0
    %3013 = vmatprep.subr.mxu0 0.0
    %3014 = vmatpush2.msra.mxu0 0.0
    %3015 = vmatprep.subr.mxu0 0.0
    %3016 = vmatpush2.msra.mxu0 0.0
    %3017 = vmatprep.subr.mxu0 0.0
    %3018 = vmatpush2.msra.mxu0 0.0
    %3019 = vmatprep.subr.mxu0 0.0
    %3020 = vmatpush2.msra.mxu0 0.0
    %3021 = vmatprep.subr.mxu0 0.0
    %3022 = vmatpush2.msra.mxu0 0.0
    %3023 = vmatprep.subr.mxu0 0.0
    %3024 = vmatpush2.msra.mxu0 0.0
    %3025 = vmatprep.subr.mxu0 0.0
    %3026 = vmatpush2.msra.mxu0 0.0
    %3027 = vmatprep.subr.mxu0 0.0
    %3028 = vmatpush2.msra.mxu0 0.0
    %3029 = vmatprep.subr.mxu0 0.0
    %3030 = vmatpush2.msra.mxu0 0.0
    %3031 = vmatprep.mubr.f32.mxu0 0.0
    %3032 = vmatmul.mubr.f32.gmra.mxu0 %v2890
    %v3033 = vpop.f32.mrf.mxu0
    %v3034 = vadd.f32 0.0, %v3033
    %v3035 = vpop.f32.mrf.mxu0
    %v3036 = vadd.f32 0.0, %v3035
    %3037 = vdwg.mxu0
    %v3038 = vadd.f32 %v2892, %v2963
    %v3039 = vadd.f32 %v2893, %v2965
    %v3040 = vadd.f32 %v2894, %v3034
    %v3041 = vadd.f32 %v2895, %v3036
    %v3042 = vxor.u32 %v3038, 2147483648
    %v3043 = vmul.f32 %v3042, 1.442695
    %v3044 = vpow.pop %v3043
    %v3045 = vadd.f32 %v3044, 1.0
    %v3046 = vrcp.pop %v3045
    %v3047 = vmul.f32 1.0, %v3046
    %v3048 = vxor.u32 %v3039, 2147483648
    %v3049 = vmul.f32 %v3048, 1.442695
    %v3050 = vpow.pop %v3049
    %v3051 = vadd.f32 %v3050, 1.0
    %v3052 = vrcp.pop %v3051
    %v3053 = vmul.f32 1.0, %v3052
    %v3054 = vtanh.pop %v3040
    %v3055 = vxor.u32 %v3041, 2147483648
    %v3056 = vmul.f32 %v3055, 1.442695
    %v3057 = vpow.pop %v3056
    %v3058 = vadd.f32 %v3057, 1.0
    %v3059 = vrcp.pop %v3058
    %v3060 = vmul.f32 1.0, %v3059
    %v3061 = vmul.f32 %v3053, %v2888
    %v3062 = vmul.f32 %v3047, %v3054
    %v3063 = vadd.f32 %v3061, %v3062
    %v3064 = vtanh.pop %v3063
    %v3065 = vmul.f32 %v3060, %v3064
    %3066 = vst [vmem:[%s1227] sm:$0xff] %v3065
    %v3067 = vld [vmem:[%s1231] sm:$0xff]
    %v3068 = vld [vmem:[%s1231 + $0x8] sm:$0xff]
    %v3069 = vld [vmem:[%s1231 + $0x10] sm:$0xff]
    %v3070 = vld [vmem:[%s1231 + $0x18] sm:$0xff]
    %3071 = vmatprep.subr.mxu0 %v2360
    %3072 = vmatpush1.msra.mxu0 %v2359
    %3073 = vmatprep.subr.mxu0 %v2356
    %3074 = vmatpush1.msra.mxu0 %v2355
    %3075 = vmatprep.subr.mxu0 %v2352
    %3076 = vmatpush1.msra.mxu0 %v2351
    %3077 = vmatprep.subr.mxu0 %v2348
    %3078 = vmatpush1.msra.mxu0 %v2347
    %3079 = vmatprep.subr.mxu0 %v2344
    %3080 = vmatpush1.msra.mxu0 %v2343
    %3081 = vmatprep.subr.mxu0 %v2340
    %3082 = vmatpush1.msra.mxu0 %v2339
    %3083 = vmatprep.subr.mxu0 %v2336
    %3084 = vmatpush1.msra.mxu0 %v2335
    %3085 = vmatprep.subr.mxu0 %v2332
    %3086 = vmatpush1.msra.mxu0 %v2331
    %3087 = vmatprep.subr.mxu0 %v2328
    %3088 = vmatpush1.msra.mxu0 %v2327
    %3089 = vmatprep.subr.mxu0 %v2324
    %3090 = vmatpush1.msra.mxu0 %v2323
    %3091 = vmatprep.subr.mxu0 %v2320
    %3092 = vmatpush1.msra.mxu0 %v2319
    %3093 = vmatprep.subr.mxu0 %v2316
    %3094 = vmatpush1.msra.mxu0 %v2315
    %3095 = vmatprep.subr.mxu0 %v2312
    %3096 = vmatpush1.msra.mxu0 %v2311
    %3097 = vmatprep.subr.mxu0 %v2308
    %3098 = vmatpush1.msra.mxu0 %v2307
    %3099 = vmatprep.subr.mxu0 %v2304
    %3100 = vmatpush1.msra.mxu0 %v2303
    %3101 = vmatprep.subr.mxu0 %v2300
    %3102 = vmatpush1.msra.mxu0 %v2299
    %3103 = vmatprep.subr.mxu0 0.0
    %3104 = vmatpush2.msra.mxu0 0.0
    %3105 = vmatprep.subr.mxu0 0.0
    %3106 = vmatpush2.msra.mxu0 0.0
    %3107 = vmatprep.subr.mxu0 0.0
    %3108 = vmatpush2.msra.mxu0 0.0
    %3109 = vmatprep.subr.mxu0 0.0
    %3110 = vmatpush2.msra.mxu0 0.0
    %3111 = vmatprep.subr.mxu0 0.0
    %3112 = vmatpush2.msra.mxu0 0.0
    %3113 = vmatprep.subr.mxu0 0.0
    %3114 = vmatpush2.msra.mxu0 0.0
    %3115 = vmatprep.subr.mxu0 0.0
    %3116 = vmatpush2.msra.mxu0 0.0
    %3117 = vmatprep.subr.mxu0 0.0
    %3118 = vmatpush2.msra.mxu0 0.0
    %3119 = vmatprep.subr.mxu0 0.0
    %3120 = vmatpush2.msra.mxu0 0.0
    %3121 = vmatprep.subr.mxu0 0.0
    %3122 = vmatpush2.msra.mxu0 0.0
    %3123 = vmatprep.subr.mxu0 0.0
    %3124 = vmatpush2.msra.mxu0 0.0
    %3125 = vmatprep.subr.mxu0 0.0
    %3126 = vmatpush2.msra.mxu0 0.0
    %3127 = vmatprep.subr.mxu0 0.0
    %3128 = vmatpush2.msra.mxu0 0.0
    %3129 = vmatprep.subr.mxu0 0.0
    %3130 = vmatpush2.msra.mxu0 0.0
    %3131 = vmatprep.subr.mxu0 0.0
    %3132 = vmatpush2.msra.mxu0 0.0
    %3133 = vmatprep.subr.mxu0 0.0
    %3134 = vmatpush2.msra.mxu0 0.0
    %3135 = vmatprep.mubr.f32.mxu0 0.0
    %3136 = vmatmul.mubr.f32.gmra.mxu0 %v3065
    %v3137 = vpop.f32.mrf.mxu0
    %v3138 = vadd.f32 0.0, %v3137
    %v3139 = vpop.f32.mrf.mxu0
    %v3140 = vadd.f32 0.0, %v3139
    %3141 = vdwg.mxu0
    %3142 = vmatprep.subr.mxu0 %v2362
    %3143 = vmatpush1.msra.mxu0 %v2361
    %3144 = vmatprep.subr.mxu0 %v2358
    %3145 = vmatpush1.msra.mxu0 %v2357
    %3146 = vmatprep.subr.mxu0 %v2354
    %3147 = vmatpush1.msra.mxu0 %v2353
    %3148 = vmatprep.subr.mxu0 %v2350
    %3149 = vmatpush1.msra.mxu0 %v2349
    %3150 = vmatprep.subr.mxu0 %v2346
    %3151 = vmatpush1.msra.mxu0 %v2345
    %3152 = vmatprep.subr.mxu0 %v2342
    %3153 = vmatpush1.msra.mxu0 %v2341
    %3154 = vmatprep.subr.mxu0 %v2338
    %3155 = vmatpush1.msra.mxu0 %v2337
    %3156 = vmatprep.subr.mxu0 %v2334
    %3157 = vmatpush1.msra.mxu0 %v2333
    %3158 = vmatprep.subr.mxu0 %v2330
    %3159 = vmatpush1.msra.mxu0 %v2329
    %3160 = vmatprep.subr.mxu0 %v2326
    %3161 = vmatpush1.msra.mxu0 %v2325
    %3162 = vmatprep.subr.mxu0 %v2322
    %3163 = vmatpush1.msra.mxu0 %v2321
    %3164 = vmatprep.subr.mxu0 %v2318
    %3165 = vmatpush1.msra.mxu0 %v2317
    %3166 = vmatprep.subr.mxu0 %v2314
    %3167 = vmatpush1.msra.mxu0 %v2313
    %3168 = vmatprep.subr.mxu0 %v2310
    %3169 = vmatpush1.msra.mxu0 %v2309
    %3170 = vmatprep.subr.mxu0 %v2306
    %3171 = vmatpush1.msra.mxu0 %v2305
    %3172 = vmatprep.subr.mxu0 %v2302
    %3173 = vmatpush1.msra.mxu0 %v2301
    %3174 = vmatprep.subr.mxu0 0.0
    %3175 = vmatpush2.msra.mxu0 0.0
    %3176 = vmatprep.subr.mxu0 0.0
    %3177 = vmatpush2.msra.mxu0 0.0
    %3178 = vmatprep.subr.mxu0 0.0
    %3179 = vmatpush2.msra.mxu0 0.0
    %3180 = vmatprep.subr.mxu0 0.0
    %3181 = vmatpush2.msra.mxu0 0.0
    %3182 = vmatprep.subr.mxu0 0.0
    %3183 = vmatpush2.msra.mxu0 0.0
    %3184 = vmatprep.subr.mxu0 0.0
    %3185 = vmatpush2.msra.mxu0 0.0
    %3186 = vmatprep.subr.mxu0 0.0
    %3187 = vmatpush2.msra.mxu0 0.0
    %3188 = vmatprep.subr.mxu0 0.0
    %3189 = vmatpush2.msra.mxu0 0.0
    %3190 = vmatprep.subr.mxu0 0.0
    %3191 = vmatpush2.msra.mxu0 0.0
    %3192 = vmatprep.subr.mxu0 0.0
    %3193 = vmatpush2.msra.mxu0 0.0
    %3194 = vmatprep.subr.mxu0 0.0
    %3195 = vmatpush2.msra.mxu0 0.0
    %3196 = vmatprep.subr.mxu0 0.0
    %3197 = vmatpush2.msra.mxu0 0.0
    %3198 = vmatprep.subr.mxu0 0.0
    %3199 = vmatpush2.msra.mxu0 0.0
    %3200 = vmatprep.subr.mxu0 0.0
    %3201 = vmatpush2.msra.mxu0 0.0
    %3202 = vmatprep.subr.mxu0 0.0
    %3203 = vmatpush2.msra.mxu0 0.0
    %3204 = vmatprep.subr.mxu0 0.0
    %3205 = vmatpush2.msra.mxu0 0.0
    %3206 = vmatprep.mubr.f32.mxu0 0.0
    %3207 = vmatmul.mubr.f32.gmra.mxu0 %v3065
    %v3208 = vpop.f32.mrf.mxu0
    %v3209 = vadd.f32 0.0, %v3208
    %v3210 = vpop.f32.mrf.mxu0
    %v3211 = vadd.f32 0.0, %v3210
    %3212 = vdwg.mxu0
    %v3213 = vadd.f32 %v3067, %v3138
    %v3214 = vadd.f32 %v3068, %v3140
    %v3215 = vadd.f32 %v3069, %v3209
    %v3216 = vadd.f32 %v3070, %v3211
    %v3217 = vxor.u32 %v3213, 2147483648
    %v3218 = vmul.f32 %v3217, 1.442695
    %v3219 = vpow.pop %v3218
    %v3220 = vadd.f32 %v3219, 1.0
    %v3221 = vrcp.pop %v3220
    %v3222 = vmul.f32 1.0, %v3221
    %v3223 = vxor.u32 %v3214, 2147483648
    %v3224 = vmul.f32 %v3223, 1.442695
    %v3225 = vpow.pop %v3224
    %v3226 = vadd.f32 %v3225, 1.0
    %v3227 = vrcp.pop %v3226
    %v3228 = vmul.f32 1.0, %v3227
    %v3229 = vtanh.pop %v3215
    %v3230 = vxor.u32 %v3216, 2147483648
    %v3231 = vmul.f32 %v3230, 1.442695
    %v3232 = vpow.pop %v3231
    %v3233 = vadd.f32 %v3232, 1.0
    %v3234 = vrcp.pop %v3233
    %v3235 = vmul.f32 1.0, %v3234
    %v3236 = vmul.f32 %v3228, %v3063
    %v3237 = vmul.f32 %v3222, %v3229
    %v3238 = vadd.f32 %v3236, %v3237
    %v3239 = vtanh.pop %v3238
    %v3240 = vmul.f32 %v3235, %v3239
    %3241 = vst [vmem:[%s1406] sm:$0xff] %v3240
    %v3242 = vld [vmem:[%s1410] sm:$0xff]
    %v3243 = vld [vmem:[%s1410 + $0x8] sm:$0xff]
    %v3244 = vld [vmem:[%s1410 + $0x10] sm:$0xff]
    %v3245 = vld [vmem:[%s1410 + $0x18] sm:$0xff]
    %3246 = vmatprep.subr.mxu0 %v2360
    %3247 = vmatpush1.msra.mxu0 %v2359
    %3248 = vmatprep.subr.mxu0 %v2356
    %3249 = vmatpush1.msra.mxu0 %v2355
    %3250 = vmatprep.subr.mxu0 %v2352
    %3251 = vmatpush1.msra.mxu0 %v2351
    %3252 = vmatprep.subr.mxu0 %v2348
    %3253 = vmatpush1.msra.mxu0 %v2347
    %3254 = vmatprep.subr.mxu0 %v2344
    %3255 = vmatpush1.msra.mxu0 %v2343
    %3256 = vmatprep.subr.mxu0 %v2340
    %3257 = vmatpush1.msra.mxu0 %v2339
    %3258 = vmatprep.subr.mxu0 %v2336
    %3259 = vmatpush1.msra.mxu0 %v2335
    %3260 = vmatprep.subr.mxu0 %v2332
    %3261 = vmatpush1.msra.mxu0 %v2331
    %3262 = vmatprep.subr.mxu0 %v2328
    %3263 = vmatpush1.msra.mxu0 %v2327
    %3264 = vmatprep.subr.mxu0 %v2324
    %3265 = vmatpush1.msra.mxu0 %v2323
    %3266 = vmatprep.subr.mxu0 %v2320
    %3267 = vmatpush1.msra.mxu0 %v2319
    %3268 = vmatprep.subr.mxu0 %v2316
    %3269 = vmatpush1.msra.mxu0 %v2315
    %3270 = vmatprep.subr.mxu0 %v2312
    %3271 = vmatpush1.msra.mxu0 %v2311
    %3272 = vmatprep.subr.mxu0 %v2308
    %3273 = vmatpush1.msra.mxu0 %v2307
    %3274 = vmatprep.subr.mxu0 %v2304
    %3275 = vmatpush1.msra.mxu0 %v2303
    %3276 = vmatprep.subr.mxu0 %v2300
    %3277 = vmatpush1.msra.mxu0 %v2299
    %3278 = vmatprep.subr.mxu0 0.0
    %3279 = vmatpush2.msra.mxu0 0.0
    %3280 = vmatprep.subr.mxu0 0.0
    %3281 = vmatpush2.msra.mxu0 0.0
    %3282 = vmatprep.subr.mxu0 0.0
    %3283 = vmatpush2.msra.mxu0 0.0
    %3284 = vmatprep.subr.mxu0 0.0
    %3285 = vmatpush2.msra.mxu0 0.0
    %3286 = vmatprep.subr.mxu0 0.0
    %3287 = vmatpush2.msra.mxu0 0.0
    %3288 = vmatprep.subr.mxu0 0.0
    %3289 = vmatpush2.msra.mxu0 0.0
    %3290 = vmatprep.subr.mxu0 0.0
    %3291 = vmatpush2.msra.mxu0 0.0
    %3292 = vmatprep.subr.mxu0 0.0
    %3293 = vmatpush2.msra.mxu0 0.0
    %3294 = vmatprep.subr.mxu0 0.0
    %3295 = vmatpush2.msra.mxu0 0.0
    %3296 = vmatprep.subr.mxu0 0.0
    %3297 = vmatpush2.msra.mxu0 0.0
    %3298 = vmatprep.subr.mxu0 0.0
    %3299 = vmatpush2.msra.mxu0 0.0
    %3300 = vmatprep.subr.mxu0 0.0
    %3301 = vmatpush2.msra.mxu0 0.0
    %3302 = vmatprep.subr.mxu0 0.0
    %3303 = vmatpush2.msra.mxu0 0.0
    %3304 = vmatprep.subr.mxu0 0.0
    %3305 = vmatpush2.msra.mxu0 0.0
    %3306 = vmatprep.subr.mxu0 0.0
    %3307 = vmatpush2.msra.mxu0 0.0
    %3308 = vmatprep.subr.mxu0 0.0
    %3309 = vmatpush2.msra.mxu0 0.0
    %3310 = vmatprep.mubr.f32.mxu0 0.0
    %3311 = vmatmul.mubr.f32.gmra.mxu0 %v3240
    %v3312 = vpop.f32.mrf.mxu0
    %v3313 = vadd.f32 0.0, %v3312
    %v3314 = vpop.f32.mrf.mxu0
    %v3315 = vadd.f32 0.0, %v3314
    %3316 = vdwg.mxu0
    %3317 = vmatprep.subr.mxu0 %v2362
    %3318 = vmatpush1.msra.mxu0 %v2361
    %3319 = vmatprep.subr.mxu0 %v2358
    %3320 = vmatpush1.msra.mxu0 %v2357
    %3321 = vmatprep.subr.mxu0 %v2354
    %3322 = vmatpush1.msra.mxu0 %v2353
    %3323 = vmatprep.subr.mxu0 %v2350
    %3324 = vmatpush1.msra.mxu0 %v2349
    %3325 = vmatprep.subr.mxu0 %v2346
    %3326 = vmatpush1.msra.mxu0 %v2345
    %3327 = vmatprep.subr.mxu0 %v2342
    %3328 = vmatpush1.msra.mxu0 %v2341
    %3329 = vmatprep.subr.mxu0 %v2338
    %3330 = vmatpush1.msra.mxu0 %v2337
    %3331 = vmatprep.subr.mxu0 %v2334
    %3332 = vmatpush1.msra.mxu0 %v2333
    %3333 = vmatprep.subr.mxu0 %v2330
    %3334 = vmatpush1.msra.mxu0 %v2329
    %3335 = vmatprep.subr.mxu0 %v2326
    %3336 = vmatpush1.msra.mxu0 %v2325
    %3337 = vmatprep.subr.mxu0 %v2322
    %3338 = vmatpush1.msra.mxu0 %v2321
    %3339 = vmatprep.subr.mxu0 %v2318
    %3340 = vmatpush1.msra.mxu0 %v2317
    %3341 = vmatprep.subr.mxu0 %v2314
    %3342 = vmatpush1.msra.mxu0 %v2313
    %3343 = vmatprep.subr.mxu0 %v2310
    %3344 = vmatpush1.msra.mxu0 %v2309
    %3345 = vmatprep.subr.mxu0 %v2306
    %3346 = vmatpush1.msra.mxu0 %v2305
    %3347 = vmatprep.subr.mxu0 %v2302
    %3348 = vmatpush1.msra.mxu0 %v2301
    %3349 = vmatprep.subr.mxu0 0.0
    %3350 = vmatpush2.msra.mxu0 0.0
    %3351 = vmatprep.subr.mxu0 0.0
    %3352 = vmatpush2.msra.mxu0 0.0
    %3353 = vmatprep.subr.mxu0 0.0
    %3354 = vmatpush2.msra.mxu0 0.0
    %3355 = vmatprep.subr.mxu0 0.0
    %3356 = vmatpush2.msra.mxu0 0.0
    %3357 = vmatprep.subr.mxu0 0.0
    %3358 = vmatpush2.msra.mxu0 0.0
    %3359 = vmatprep.subr.mxu0 0.0
    %3360 = vmatpush2.msra.mxu0 0.0
    %3361 = vmatprep.subr.mxu0 0.0
    %3362 = vmatpush2.msra.mxu0 0.0
    %3363 = vmatprep.subr.mxu0 0.0
    %3364 = vmatpush2.msra.mxu0 0.0
    %3365 = vmatprep.subr.mxu0 0.0
    %3366 = vmatpush2.msra.mxu0 0.0
    %3367 = vmatprep.subr.mxu0 0.0
    %3368 = vmatpush2.msra.mxu0 0.0
    %3369 = vmatprep.subr.mxu0 0.0
    %3370 = vmatpush2.msra.mxu0 0.0
    %3371 = vmatprep.subr.mxu0 0.0
    %3372 = vmatpush2.msra.mxu0 0.0
    %3373 = vmatprep.subr.mxu0 0.0
    %3374 = vmatpush2.msra.mxu0 0.0
    %3375 = vmatprep.subr.mxu0 0.0
    %3376 = vmatpush2.msra.mxu0 0.0
    %3377 = vmatprep.subr.mxu0 0.0
    %3378 = vmatpush2.msra.mxu0 0.0
    %3379 = vmatprep.subr.mxu0 0.0
    %3380 = vmatpush2.msra.mxu0 0.0
    %3381 = vmatprep.mubr.f32.mxu0 0.0
    %3382 = vmatmul.mubr.f32.gmra.mxu0 %v3240
    %v3383 = vpop.f32.mrf.mxu0
    %v3384 = vadd.f32 0.0, %v3383
    %v3385 = vpop.f32.mrf.mxu0
    %v3386 = vadd.f32 0.0, %v3385
    %3387 = vdwg.mxu0
    %v3388 = vadd.f32 %v3242, %v3313
    %v3389 = vadd.f32 %v3243, %v3315
    %v3390 = vadd.f32 %v3244, %v3384
    %v3391 = vadd.f32 %v3245, %v3386
    %v3392 = vxor.u32 %v3388, 2147483648
    %v3393 = vmul.f32 %v3392, 1.442695
    %v3394 = vpow.pop %v3393
    %v3395 = vadd.f32 %v3394, 1.0
    %v3396 = vrcp.pop %v3395
    %v3397 = vmul.f32 1.0, %v3396
    %v3398 = vxor.u32 %v3389, 2147483648
    %v3399 = vmul.f32 %v3398, 1.442695
    %v3400 = vpow.pop %v3399
    %v3401 = vadd.f32 %v3400, 1.0
    %v3402 = vrcp.pop %v3401
    %v3403 = vmul.f32 1.0, %v3402
    %v3404 = vtanh.pop %v3390
    %v3405 = vxor.u32 %v3391, 2147483648
    %v3406 = vmul.f32 %v3405, 1.442695
    %v3407 = vpow.pop %v3406
    %v3408 = vadd.f32 %v3407, 1.0
    %v3409 = vrcp.pop %v3408
    %v3410 = vmul.f32 1.0, %v3409
    %v3411 = vmul.f32 %v3403, %v3238
    %v3412 = vmul.f32 %v3397, %v3404
    %v3413 = vadd.f32 %v3411, %v3412
    %v3414 = vtanh.pop %v3413
    %v3415 = vmul.f32 %v3410, %v3414
    %3416 = vst [vmem:[%s1585] sm:$0xff] %v3415
    %v3417 = vld [vmem:[%s1589] sm:$0xff]
    %v3418 = vld [vmem:[%s1589 + $0x8] sm:$0xff]
    %v3419 = vld [vmem:[%s1589 + $0x10] sm:$0xff]
    %v3420 = vld [vmem:[%s1589 + $0x18] sm:$0xff]
    %3421 = vmatprep.subr.mxu0 %v2360
    %3422 = vmatpush1.msra.mxu0 %v2359
    %3423 = vmatprep.subr.mxu0 %v2356
    %3424 = vmatpush1.msra.mxu0 %v2355
    %3425 = vmatprep.subr.mxu0 %v2352
    %3426 = vmatpush1.msra.mxu0 %v2351
    %3427 = vmatprep.subr.mxu0 %v2348
    %3428 = vmatpush1.msra.mxu0 %v2347
    %3429 = vmatprep.subr.mxu0 %v2344
    %3430 = vmatpush1.msra.mxu0 %v2343
    %3431 = vmatprep.subr.mxu0 %v2340
    %3432 = vmatpush1.msra.mxu0 %v2339
    %3433 = vmatprep.subr.mxu0 %v2336
    %3434 = vmatpush1.msra.mxu0 %v2335
    %3435 = vmatprep.subr.mxu0 %v2332
    %3436 = vmatpush1.msra.mxu0 %v2331
    %3437 = vmatprep.subr.mxu0 %v2328
    %3438 = vmatpush1.msra.mxu0 %v2327
    %3439 = vmatprep.subr.mxu0 %v2324
    %3440 = vmatpush1.msra.mxu0 %v2323
    %3441 = vmatprep.subr.mxu0 %v2320
    %3442 = vmatpush1.msra.mxu0 %v2319
    %3443 = vmatprep.subr.mxu0 %v2316
    %3444 = vmatpush1.msra.mxu0 %v2315
    %3445 = vmatprep.subr.mxu0 %v2312
    %3446 = vmatpush1.msra.mxu0 %v2311
    %3447 = vmatprep.subr.mxu0 %v2308
    %3448 = vmatpush1.msra.mxu0 %v2307
    %3449 = vmatprep.subr.mxu0 %v2304
    %3450 = vmatpush1.msra.mxu0 %v2303
    %3451 = vmatprep.subr.mxu0 %v2300
    %3452 = vmatpush1.msra.mxu0 %v2299
    %3453 = vmatprep.subr.mxu0 0.0
    %3454 = vmatpush2.msra.mxu0 0.0
    %3455 = vmatprep.subr.mxu0 0.0
    %3456 = vmatpush2.msra.mxu0 0.0
    %3457 = vmatprep.subr.mxu0 0.0
    %3458 = vmatpush2.msra.mxu0 0.0
    %3459 = vmatprep.subr.mxu0 0.0
    %3460 = vmatpush2.msra.mxu0 0.0
    %3461 = vmatprep.subr.mxu0 0.0
    %3462 = vmatpush2.msra.mxu0 0.0
    %3463 = vmatprep.subr.mxu0 0.0
    %3464 = vmatpush2.msra.mxu0 0.0
    %3465 = vmatprep.subr.mxu0 0.0
    %3466 = vmatpush2.msra.mxu0 0.0
    %3467 = vmatprep.subr.mxu0 0.0
    %3468 = vmatpush2.msra.mxu0 0.0
    %3469 = vmatprep.subr.mxu0 0.0
    %3470 = vmatpush2.msra.mxu0 0.0
    %3471 = vmatprep.subr.mxu0 0.0
    %3472 = vmatpush2.msra.mxu0 0.0
    %3473 = vmatprep.subr.mxu0 0.0
    %3474 = vmatpush2.msra.mxu0 0.0
    %3475 = vmatprep.subr.mxu0 0.0
    %3476 = vmatpush2.msra.mxu0 0.0
    %3477 = vmatprep.subr.mxu0 0.0
    %3478 = vmatpush2.msra.mxu0 0.0
    %3479 = vmatprep.subr.mxu0 0.0
    %3480 = vmatpush2.msra.mxu0 0.0
    %3481 = vmatprep.subr.mxu0 0.0
    %3482 = vmatpush2.msra.mxu0 0.0
    %3483 = vmatprep.subr.mxu0 0.0
    %3484 = vmatpush2.msra.mxu0 0.0
    %3485 = vmatprep.mubr.f32.mxu0 0.0
    %3486 = vmatmul.mubr.f32.gmra.mxu0 %v3415
    %v3487 = vpop.f32.mrf.mxu0
    %v3488 = vadd.f32 0.0, %v3487
    %v3489 = vpop.f32.mrf.mxu0
    %v3490 = vadd.f32 0.0, %v3489
    %3491 = vdwg.mxu0
    %3492 = vmatprep.subr.mxu0 %v2362
    %3493 = vmatpush1.msra.mxu0 %v2361
    %3494 = vmatprep.subr.mxu0 %v2358
    %3495 = vmatpush1.msra.mxu0 %v2357
    %3496 = vmatprep.subr.mxu0 %v2354
    %3497 = vmatpush1.msra.mxu0 %v2353
    %3498 = vmatprep.subr.mxu0 %v2350
    %3499 = vmatpush1.msra.mxu0 %v2349
    %3500 = vmatprep.subr.mxu0 %v2346
    %3501 = vmatpush1.msra.mxu0 %v2345
    %3502 = vmatprep.subr.mxu0 %v2342
    %3503 = vmatpush1.msra.mxu0 %v2341
    %3504 = vmatprep.subr.mxu0 %v2338
    %3505 = vmatpush1.msra.mxu0 %v2337
    %3506 = vmatprep.subr.mxu0 %v2334
    %3507 = vmatpush1.msra.mxu0 %v2333
    %3508 = vmatprep.subr.mxu0 %v2330
    %3509 = vmatpush1.msra.mxu0 %v2329
    %3510 = vmatprep.subr.mxu0 %v2326
    %3511 = vmatpush1.msra.mxu0 %v2325
    %3512 = vmatprep.subr.mxu0 %v2322
    %3513 = vmatpush1.msra.mxu0 %v2321
    %3514 = vmatprep.subr.mxu0 %v2318
    %3515 = vmatpush1.msra.mxu0 %v2317
    %3516 = vmatprep.subr.mxu0 %v2314
    %3517 = vmatpush1.msra.mxu0 %v2313
    %3518 = vmatprep.subr.mxu0 %v2310
    %3519 = vmatpush1.msra.mxu0 %v2309
    %3520 = vmatprep.subr.mxu0 %v2306
    %3521 = vmatpush1.msra.mxu0 %v2305
    %3522 = vmatprep.subr.mxu0 %v2302
    %3523 = vmatpush1.msra.mxu0 %v2301
    %3524 = vmatprep.subr.mxu0 0.0
    %3525 = vmatpush2.msra.mxu0 0.0
    %3526 = vmatprep.subr.mxu0 0.0
    %3527 = vmatpush2.msra.mxu0 0.0
    %3528 = vmatprep.subr.mxu0 0.0
    %3529 = vmatpush2.msra.mxu0 0.0
    %3530 = vmatprep.subr.mxu0 0.0
    %3531 = vmatpush2.msra.mxu0 0.0
    %3532 = vmatprep.subr.mxu0 0.0
    %3533 = vmatpush2.msra.mxu0 0.0
    %3534 = vmatprep.subr.mxu0 0.0
    %3535 = vmatpush2.msra.mxu0 0.0
    %3536 = vmatprep.subr.mxu0 0.0
    %3537 = vmatpush2.msra.mxu0 0.0
    %3538 = vmatprep.subr.mxu0 0.0
    %3539 = vmatpush2.msra.mxu0 0.0
    %3540 = vmatprep.subr.mxu0 0.0
    %3541 = vmatpush2.msra.mxu0 0.0
    %3542 = vmatprep.subr.mxu0 0.0
    %3543 = vmatpush2.msra.mxu0 0.0
    %3544 = vmatprep.subr.mxu0 0.0
    %3545 = vmatpush2.msra.mxu0 0.0
    %3546 = vmatprep.subr.mxu0 0.0
    %3547 = vmatpush2.msra.mxu0 0.0
    %3548 = vmatprep.subr.mxu0 0.0
    %3549 = vmatpush2.msra.mxu0 0.0
    %3550 = vmatprep.subr.mxu0 0.0
    %3551 = vmatpush2.msra.mxu0 0.0
    %3552 = vmatprep.subr.mxu0 0.0
    %3553 = vmatpush2.msra.mxu0 0.0
    %3554 = vmatprep.subr.mxu0 0.0
    %3555 = vmatpush2.msra.mxu0 0.0
    %3556 = vmatprep.mubr.f32.mxu0 0.0
    %3557 = vmatmul.mubr.f32.gmra.mxu0 %v3415
    %v3558 = vpop.f32.mrf.mxu0
    %v3559 = vadd.f32 0.0, %v3558
    %v3560 = vpop.f32.mrf.mxu0
    %v3561 = vadd.f32 0.0, %v3560
    %3562 = vdwg.mxu0
    %v3563 = vadd.f32 %v3417, %v3488
    %v3564 = vadd.f32 %v3418, %v3490
    %v3565 = vadd.f32 %v3419, %v3559
    %v3566 = vadd.f32 %v3420, %v3561
    %v3567 = vxor.u32 %v3563, 2147483648
    %v3568 = vmul.f32 %v3567, 1.442695
    %v3569 = vpow.pop %v3568
    %v3570 = vadd.f32 %v3569, 1.0
    %v3571 = vrcp.pop %v3570
    %v3572 = vmul.f32 1.0, %v3571
    %v3573 = vxor.u32 %v3564, 2147483648
    %v3574 = vmul.f32 %v3573, 1.442695
    %v3575 = vpow.pop %v3574
    %v3576 = vadd.f32 %v3575, 1.0
    %v3577 = vrcp.pop %v3576
    %v3578 = vmul.f32 1.0, %v3577
    %v3579 = vtanh.pop %v3565
    %v3580 = vxor.u32 %v3566, 2147483648
    %v3581 = vmul.f32 %v3580, 1.442695
    %v3582 = vpow.pop %v3581
    %v3583 = vadd.f32 %v3582, 1.0
    %v3584 = vrcp.pop %v3583
    %v3585 = vmul.f32 1.0, %v3584
    %v3586 = vmul.f32 %v3578, %v3413
    %v3587 = vmul.f32 %v3572, %v3579
    %v3588 = vadd.f32 %v3586, %v3587
    %v3589 = vtanh.pop %v3588
    %v3590 = vmul.f32 %v3585, %v3589
    %3591 = vst [vmem:[%s1764] sm:$0xff] %v3590
    %v3592 = vld [vmem:[%s1768] sm:$0xff]
    %v3593 = vld [vmem:[%s1768 + $0x8] sm:$0xff]
    %v3594 = vld [vmem:[%s1768 + $0x10] sm:$0xff]
    %v3595 = vld [vmem:[%s1768 + $0x18] sm:$0xff]
    %3596 = vmatprep.subr.mxu0 %v2360
    %3597 = vmatpush1.msra.mxu0 %v2359
    %3598 = vmatprep.subr.mxu0 %v2356
    %3599 = vmatpush1.msra.mxu0 %v2355
    %3600 = vmatprep.subr.mxu0 %v2352
    %3601 = vmatpush1.msra.mxu0 %v2351
    %3602 = vmatprep.subr.mxu0 %v2348
    %3603 = vmatpush1.msra.mxu0 %v2347
    %3604 = vmatprep.subr.mxu0 %v2344
    %3605 = vmatpush1.msra.mxu0 %v2343
    %3606 = vmatprep.subr.mxu0 %v2340
    %3607 = vmatpush1.msra.mxu0 %v2339
    %3608 = vmatprep.subr.mxu0 %v2336
    %3609 = vmatpush1.msra.mxu0 %v2335
    %3610 = vmatprep.subr.mxu0 %v2332
    %3611 = vmatpush1.msra.mxu0 %v2331
    %3612 = vmatprep.subr.mxu0 %v2328
    %3613 = vmatpush1.msra.mxu0 %v2327
    %3614 = vmatprep.subr.mxu0 %v2324
    %3615 = vmatpush1.msra.mxu0 %v2323
    %3616 = vmatprep.subr.mxu0 %v2320
    %3617 = vmatpush1.msra.mxu0 %v2319
    %3618 = vmatprep.subr.mxu0 %v2316
    %3619 = vmatpush1.msra.mxu0 %v2315
    %3620 = vmatprep.subr.mxu0 %v2312
    %3621 = vmatpush1.msra.mxu0 %v2311
    %3622 = vmatprep.subr.mxu0 %v2308
    %3623 = vmatpush1.msra.mxu0 %v2307
    %3624 = vmatprep.subr.mxu0 %v2304
    %3625 = vmatpush1.msra.mxu0 %v2303
    %3626 = vmatprep.subr.mxu0 %v2300
    %3627 = vmatpush1.msra.mxu0 %v2299
    %3628 = vmatprep.subr.mxu0 0.0
    %3629 = vmatpush2.msra.mxu0 0.0
    %3630 = vmatprep.subr.mxu0 0.0
    %3631 = vmatpush2.msra.mxu0 0.0
    %3632 = vmatprep.subr.mxu0 0.0
    %3633 = vmatpush2.msra.mxu0 0.0
    %3634 = vmatprep.subr.mxu0 0.0
    %3635 = vmatpush2.msra.mxu0 0.0
    %3636 = vmatprep.subr.mxu0 0.0
    %3637 = vmatpush2.msra.mxu0 0.0
    %3638 = vmatprep.subr.mxu0 0.0
    %3639 = vmatpush2.msra.mxu0 0.0
    %3640 = vmatprep.subr.mxu0 0.0
    %3641 = vmatpush2.msra.mxu0 0.0
    %3642 = vmatprep.subr.mxu0 0.0
    %3643 = vmatpush2.msra.mxu0 0.0
    %3644 = vmatprep.subr.mxu0 0.0
    %3645 = vmatpush2.msra.mxu0 0.0
    %3646 = vmatprep.subr.mxu0 0.0
    %3647 = vmatpush2.msra.mxu0 0.0
    %3648 = vmatprep.subr.mxu0 0.0
    %3649 = vmatpush2.msra.mxu0 0.0
    %3650 = vmatprep.subr.mxu0 0.0
    %3651 = vmatpush2.msra.mxu0 0.0
    %3652 = vmatprep.subr.mxu0 0.0
    %3653 = vmatpush2.msra.mxu0 0.0
    %3654 = vmatprep.subr.mxu0 0.0
    %3655 = vmatpush2.msra.mxu0 0.0
    %3656 = vmatprep.subr.mxu0 0.0
    %3657 = vmatpush2.msra.mxu0 0.0
    %3658 = vmatprep.subr.mxu0 0.0
    %3659 = vmatpush2.msra.mxu0 0.0
    %3660 = vmatprep.mubr.f32.mxu0 0.0
    %3661 = vmatmul.mubr.f32.gmra.mxu0 %v3590
    %v3662 = vpop.f32.mrf.mxu0
    %v3663 = vadd.f32 0.0, %v3662
    %v3664 = vpop.f32.mrf.mxu0
    %v3665 = vadd.f32 0.0, %v3664
    %3666 = vdwg.mxu0
    %3667 = vmatprep.subr.mxu0 %v2362
    %3668 = vmatpush1.msra.mxu0 %v2361
    %3669 = vmatprep.subr.mxu0 %v2358
    %3670 = vmatpush1.msra.mxu0 %v2357
    %3671 = vmatprep.subr.mxu0 %v2354
    %3672 = vmatpush1.msra.mxu0 %v2353
    %3673 = vmatprep.subr.mxu0 %v2350
    %3674 = vmatpush1.msra.mxu0 %v2349
    %3675 = vmatprep.subr.mxu0 %v2346
    %3676 = vmatpush1.msra.mxu0 %v2345
    %3677 = vmatprep.subr.mxu0 %v2342
    %3678 = vmatpush1.msra.mxu0 %v2341
    %3679 = vmatprep.subr.mxu0 %v2338
    %3680 = vmatpush1.msra.mxu0 %v2337
    %3681 = vmatprep.subr.mxu0 %v2334
    %3682 = vmatpush1.msra.mxu0 %v2333
    %3683 = vmatprep.subr.mxu0 %v2330
    %3684 = vmatpush1.msra.mxu0 %v2329
    %3685 = vmatprep.subr.mxu0 %v2326
    %3686 = vmatpush1.msra.mxu0 %v2325
    %3687 = vmatprep.subr.mxu0 %v2322
    %3688 = vmatpush1.msra.mxu0 %v2321
    %3689 = vmatprep.subr.mxu0 %v2318
    %3690 = vmatpush1.msra.mxu0 %v2317
    %3691 = vmatprep.subr.mxu0 %v2314
    %3692 = vmatpush1.msra.mxu0 %v2313
    %3693 = vmatprep.subr.mxu0 %v2310
    %3694 = vmatpush1.msra.mxu0 %v2309
    %3695 = vmatprep.subr.mxu0 %v2306
    %3696 = vmatpush1.msra.mxu0 %v2305
    %3697 = vmatprep.subr.mxu0 %v2302
    %3698 = vmatpush1.msra.mxu0 %v2301
    %3699 = vmatprep.subr.mxu0 0.0
    %3700 = vmatpush2.msra.mxu0 0.0
    %3701 = vmatprep.subr.mxu0 0.0
    %3702 = vmatpush2.msra.mxu0 0.0
    %3703 = vmatprep.subr.mxu0 0.0
    %3704 = vmatpush2.msra.mxu0 0.0
    %3705 = vmatprep.subr.mxu0 0.0
    %3706 = vmatpush2.msra.mxu0 0.0
    %3707 = vmatprep.subr.mxu0 0.0
    %3708 = vmatpush2.msra.mxu0 0.0
    %3709 = vmatprep.subr.mxu0 0.0
    %3710 = vmatpush2.msra.mxu0 0.0
    %3711 = vmatprep.subr.mxu0 0.0
    %3712 = vmatpush2.msra.mxu0 0.0
    %3713 = vmatprep.subr.mxu0 0.0
    %3714 = vmatpush2.msra.mxu0 0.0
    %3715 = vmatprep.subr.mxu0 0.0
    %3716 = vmatpush2.msra.mxu0 0.0
    %3717 = vmatprep.subr.mxu0 0.0
    %3718 = vmatpush2.msra.mxu0 0.0
    %3719 = vmatprep.subr.mxu0 0.0
    %3720 = vmatpush2.msra.mxu0 0.0
    %3721 = vmatprep.subr.mxu0 0.0
    %3722 = vmatpush2.msra.mxu0 0.0
    %3723 = vmatprep.subr.mxu0 0.0
    %3724 = vmatpush2.msra.mxu0 0.0
    %3725 = vmatprep.subr.mxu0 0.0
    %3726 = vmatpush2.msra.mxu0 0.0
    %3727 = vmatprep.subr.mxu0 0.0
    %3728 = vmatpush2.msra.mxu0 0.0
    %3729 = vmatprep.subr.mxu0 0.0
    %3730 = vmatpush2.msra.mxu0 0.0
    %3731 = vmatprep.mubr.f32.mxu0 0.0
    %3732 = vmatmul.mubr.f32.gmra.mxu0 %v3590
    %v3733 = vpop.f32.mrf.mxu0
    %v3734 = vadd.f32 0.0, %v3733
    %v3735 = vpop.f32.mrf.mxu0
    %v3736 = vadd.f32 0.0, %v3735
    %3737 = vdwg.mxu0
    %v3738 = vadd.f32 %v3592, %v3663
    %v3739 = vadd.f32 %v3593, %v3665
    %v3740 = vadd.f32 %v3594, %v3734
    %v3741 = vadd.f32 %v3595, %v3736
    %v3742 = vxor.u32 %v3738, 2147483648
    %v3743 = vmul.f32 %v3742, 1.442695
    %v3744 = vpow.pop %v3743
    %v3745 = vadd.f32 %v3744, 1.0
    %v3746 = vrcp.pop %v3745
    %v3747 = vmul.f32 1.0, %v3746
    %v3748 = vxor.u32 %v3739, 2147483648
    %v3749 = vmul.f32 %v3748, 1.442695
    %v3750 = vpow.pop %v3749
    %v3751 = vadd.f32 %v3750, 1.0
    %v3752 = vrcp.pop %v3751
    %v3753 = vmul.f32 1.0, %v3752
    %v3754 = vtanh.pop %v3740
    %v3755 = vxor.u32 %v3741, 2147483648
    %v3756 = vmul.f32 %v3755, 1.442695
    %v3757 = vpow.pop %v3756
    %v3758 = vadd.f32 %v3757, 1.0
    %v3759 = vrcp.pop %v3758
    %v3760 = vmul.f32 1.0, %v3759
    %v3761 = vmul.f32 %v3753, %v3588
    %v3762 = vmul.f32 %v3747, %v3754
    %v3763 = vadd.f32 %v3761, %v3762
    %v3764 = vtanh.pop %v3763
    %v3765 = vmul.f32 %v3760, %v3764
    %3766 = vst [vmem:[%s1943] sm:$0xff] %v3765
    %s3767 = scalar_lea.vmem %s12, 8
    %3768 = vst [vmem:[%s3767] sm:$0xff] %v3765
    %s3769 = scalar_lea.vmem %s13, 8
    %3770 = vst [vmem:[%s3769] sm:$0xff] %v3763
    %v3771 = vld [vmem:[#allocation3] sm:$0xff]
    %v3772 = vld [vmem:[#allocation3 + $0x8] sm:$0xff]
    %v3773 = vld [vmem:[#allocation3 + $0x10] sm:$0xff]
    %v3774 = vld [vmem:[#allocation3 + $0x18] sm:$0xff]
    %v3775 = vld [vmem:[#allocation3 + $0x20] sm:$0xff]
    %v3776 = vld [vmem:[#allocation3 + $0x28] sm:$0xff]
    %v3777 = vld [vmem:[#allocation3 + $0x30] sm:$0xff]
    %v3778 = vld [vmem:[#allocation3 + $0x38] sm:$0xff]
    %v3779 = vld [vmem:[%s9] sm:$0xff]
    %v3780 = vld [vmem:[%s9 + $0x8] sm:$0xff]
    %v3781 = vld [vmem:[%s9 + $0x10] sm:$0xff]
    %v3782 = vld [vmem:[%s9 + $0x18] sm:$0xff]
    %v3783 = vld [vmem:[%s9 + $0x20] sm:$0xff]
    %v3784 = vld [vmem:[%s9 + $0x28] sm:$0xff]
    %v3785 = vld [vmem:[%s9 + $0x30] sm:$0xff]
    %v3786 = vld [vmem:[%s9 + $0x38] sm:$0xff]
    %v3787 = vld [vmem:[%s9 + $0x40] sm:$0xff]
    %v3788 = vld [vmem:[%s9 + $0x48] sm:$0xff]
    %v3789 = vld [vmem:[%s9 + $0x50] sm:$0xff]
    %v3790 = vld [vmem:[%s9 + $0x58] sm:$0xff]
    %v3791 = vld [vmem:[%s9 + $0x60] sm:$0xff]
    %v3792 = vld [vmem:[%s9 + $0x68] sm:$0xff]
    %v3793 = vld [vmem:[%s9 + $0x70] sm:$0xff]
    %v3794 = vld [vmem:[%s9 + $0x78] sm:$0xff]
    %v3795 = vld [vmem:[%s10] sm:$0x1]
    %v3797 = vlaneseq
    %v3798 = vshrl.u32 %v3797, 7
    %v3799 = vsub.s32 0, %v3798
    %v3800 = vrot.slane %v3795, %v3799
    %3802 = vmatprep.subr.mxu0 0.0
    %3803 = vmatpush1.msra.mxu0 %v3794
    %3804 = vmatprep.subr.mxu0 0.0
    %3805 = vmatpush1.msra.mxu0 %v3793
    %3806 = vmatprep.subr.mxu0 0.0
    %3807 = vmatpush1.msra.mxu0 %v3792
    %3808 = vmatprep.subr.mxu0 0.0
    %3809 = vmatpush1.msra.mxu0 %v3791
    %3810 = vmatprep.subr.mxu0 0.0
    %3811 = vmatpush1.msra.mxu0 %v3790
    %3812 = vmatprep.subr.mxu0 0.0
    %3813 = vmatpush1.msra.mxu0 %v3789
    %3814 = vmatprep.subr.mxu0 0.0
    %3815 = vmatpush1.msra.mxu0 %v3788
    %3816 = vmatprep.subr.mxu0 0.0
    %3817 = vmatpush1.msra.mxu0 %v3787
    %3818 = vmatprep.subr.mxu0 0.0
    %3819 = vmatpush1.msra.mxu0 %v3786
    %3820 = vmatprep.subr.mxu0 0.0
    %3821 = vmatpush1.msra.mxu0 %v3785
    %3822 = vmatprep.subr.mxu0 0.0
    %3823 = vmatpush1.msra.mxu0 %v3784
    %3824 = vmatprep.subr.mxu0 0.0
    %3825 = vmatpush1.msra.mxu0 %v3783
    %3826 = vmatprep.subr.mxu0 0.0
    %3827 = vmatpush1.msra.mxu0 %v3782
    %3828 = vmatprep.subr.mxu0 0.0
    %3829 = vmatpush1.msra.mxu0 %v3781
    %3830 = vmatprep.subr.mxu0 0.0
    %3831 = vmatpush1.msra.mxu0 %v3780
    %3832 = vmatprep.subr.mxu0 0.0
    %3833 = vmatpush1.msra.mxu0 %v3779
    %3834 = vmatprep.subr.mxu0 0.0
    %3835 = vmatpush2.msra.mxu0 0.0
    %3836 = vmatprep.subr.mxu0 0.0
    %3837 = vmatpush2.msra.mxu0 0.0
    %3838 = vmatprep.subr.mxu0 0.0
    %3839 = vmatpush2.msra.mxu0 0.0
    %3840 = vmatprep.subr.mxu0 0.0
    %3841 = vmatpush2.msra.mxu0 0.0
    %3842 = vmatprep.subr.mxu0 0.0
    %3843 = vmatpush2.msra.mxu0 0.0
    %3844 = vmatprep.subr.mxu0 0.0
    %3845 = vmatpush2.msra.mxu0 0.0
    %3846 = vmatprep.subr.mxu0 0.0
    %3847 = vmatpush2.msra.mxu0 0.0
    %3848 = vmatprep.subr.mxu0 0.0
    %3849 = vmatpush2.msra.mxu0 0.0
    %3850 = vmatprep.subr.mxu0 0.0
    %3851 = vmatpush2.msra.mxu0 0.0
    %3852 = vmatprep.subr.mxu0 0.0
    %3853 = vmatpush2.msra.mxu0 0.0
    %3854 = vmatprep.subr.mxu0 0.0
    %3855 = vmatpush2.msra.mxu0 0.0
    %3856 = vmatprep.subr.mxu0 0.0
    %3857 = vmatpush2.msra.mxu0 0.0
    %3858 = vmatprep.subr.mxu0 0.0
    %3859 = vmatpush2.msra.mxu0 0.0
    %3860 = vmatprep.subr.mxu0 0.0
    %3861 = vmatpush2.msra.mxu0 0.0
    %3862 = vmatprep.subr.mxu0 0.0
    %3863 = vmatpush2.msra.mxu0 0.0
    %3864 = vmatprep.subr.mxu0 0.0
    %3865 = vmatpush2.msra.mxu0 0.0
    %3866 = vmatprep.mubr.f32.mxu0 0.0
    %3867 = vmatmul.mubr.f32.gmra.mxu0 %v3771
    %v3868 = vpop.f32.mrf.mxu0
    %v3869 = vadd.f32 %v3800, %v3868
    %v3870 = vpop.f32.mrf.mxu0
    %3871 = vmatprep.mubr.f32.mxu0 0.0
    %3872 = vmatmul.mubr.f32.gmra.mxu0 %v3772
    %v3873 = vpop.f32.mrf.mxu0
    %v3874 = vadd.f32 %v3800, %v3873
    %v3875 = vpop.f32.mrf.mxu0
    %3876 = vmatprep.mubr.f32.mxu0 0.0
    %3877 = vmatmul.mubr.f32.gmra.mxu0 %v3773
    %v3878 = vpop.f32.mrf.mxu0
    %v3879 = vadd.f32 %v3800, %v3878
    %v3880 = vpop.f32.mrf.mxu0
    %3881 = vmatprep.mubr.f32.mxu0 0.0
    %3882 = vmatmul.mubr.f32.gmra.mxu0 %v3774
    %v3883 = vpop.f32.mrf.mxu0
    %v3884 = vadd.f32 %v3800, %v3883
    %v3885 = vpop.f32.mrf.mxu0
    %3886 = vmatprep.mubr.f32.mxu0 0.0
    %3887 = vmatmul.mubr.f32.gmra.mxu0 %v3775
    %v3888 = vpop.f32.mrf.mxu0
    %v3889 = vadd.f32 %v3800, %v3888
    %v3890 = vpop.f32.mrf.mxu0
    %3891 = vmatprep.mubr.f32.mxu0 0.0
    %3892 = vmatmul.mubr.f32.gmra.mxu0 %v3776
    %v3893 = vpop.f32.mrf.mxu0
    %v3894 = vadd.f32 %v3800, %v3893
    %v3895 = vpop.f32.mrf.mxu0
    %3896 = vmatprep.mubr.f32.mxu0 0.0
    %3897 = vmatmul.mubr.f32.gmra.mxu0 %v3777
    %v3898 = vpop.f32.mrf.mxu0
    %v3899 = vadd.f32 %v3800, %v3898
    %v3900 = vpop.f32.mrf.mxu0
    %3901 = vmatprep.mubr.f32.mxu0 0.0
    %3902 = vmatmul.mubr.f32.gmra.mxu0 %v3778
    %v3903 = vpop.f32.mrf.mxu0
    %v3904 = vadd.f32 %v3800, %v3903
    %v3905 = vpop.f32.mrf.mxu0
    %3906 = vdwg.mxu0
    %3907 = vmax.xlane.f32.xlu0 %v3869
    %v3908 = vpop.xlane.xlu0 %3907
    %3909 = vmax.xlane.f32.xlu0 %v3874
    %v3910 = vpop.xlane.xlu0 %3909
    %3911 = vmax.xlane.f32.xlu0 %v3879
    %v3912 = vpop.xlane.xlu0 %3911
    %3913 = vmax.xlane.f32.xlu0 %v3884
    %v3914 = vpop.xlane.xlu0 %3913
    %3915 = vmax.xlane.f32.xlu0 %v3889
    %v3916 = vpop.xlane.xlu0 %3915
    %3917 = vmax.xlane.f32.xlu0 %v3894
    %v3918 = vpop.xlane.xlu0 %3917
    %3919 = vmax.xlane.f32.xlu0 %v3899
    %v3920 = vpop.xlane.xlu0 %3919
    %3921 = vmax.xlane.f32.xlu0 %v3904
    %v3922 = vpop.xlane.xlu0 %3921
    %v3923 = vsub.f32 %v3869, %v3908
    %v3924 = vsub.f32 %v3874, %v3910
    %v3925 = vsub.f32 %v3879, %v3912
    %v3926 = vsub.f32 %v3884, %v3914
    %v3927 = vsub.f32 %v3889, %v3916
    %v3928 = vsub.f32 %v3894, %v3918
    %v3929 = vsub.f32 %v3899, %v3920
    %v3930 = vsub.f32 %v3904, %v3922
    %v3931 = vmul.f32 %v3923, 1.442695
    %v3932 = vpow.pop %v3931
    %v3933 = vmul.f32 %v3924, 1.442695
    %v3934 = vpow.pop %v3933
    %v3935 = vmul.f32 %v3925, 1.442695
    %v3936 = vpow.pop %v3935
    %v3937 = vmul.f32 %v3926, 1.442695
    %v3938 = vpow.pop %v3937
    %v3939 = vmul.f32 %v3927, 1.442695
    %v3940 = vpow.pop %v3939
    %v3941 = vmul.f32 %v3928, 1.442695
    %v3942 = vpow.pop %v3941
    %v3943 = vmul.f32 %v3929, 1.442695
    %v3944 = vpow.pop %v3943
    %v3945 = vmul.f32 %v3930, 1.442695
    %v3946 = vpow.pop %v3945
    %3947 = vadd.xlane.f32.xlu0 %v3932
    %v3948 = vpop.xlane.xlu0 %3947
    %3949 = vadd.xlane.f32.xlu0 %v3934
    %v3950 = vpop.xlane.xlu0 %3949
    %3951 = vadd.xlane.f32.xlu0 %v3936
    %v3952 = vpop.xlane.xlu0 %3951
    %3953 = vadd.xlane.f32.xlu0 %v3938
    %v3954 = vpop.xlane.xlu0 %3953
    %3955 = vadd.xlane.f32.xlu0 %v3940
    %v3956 = vpop.xlane.xlu0 %3955
    %3957 = vadd.xlane.f32.xlu0 %v3942
    %v3958 = vpop.xlane.xlu0 %3957
    %3959 = vadd.xlane.f32.xlu0 %v3944
    %v3960 = vpop.xlane.xlu0 %3959
    %3961 = vadd.xlane.f32.xlu0 %v3946
    %v3962 = vpop.xlane.xlu0 %3961
    %v3963 = vlog2.pop %v3948
    %v3964 = vmul.f32 %v3963, 0.6931472
    %v3965 = vlog2.pop %v3950
    %v3966 = vmul.f32 %v3965, 0.6931472
    %v3967 = vlog2.pop %v3952
    %v3968 = vmul.f32 %v3967, 0.6931472
    %v3969 = vlog2.pop %v3954
    %v3970 = vmul.f32 %v3969, 0.6931472
    %v3971 = vlog2.pop %v3956
    %v3972 = vmul.f32 %v3971, 0.6931472
    %v3973 = vlog2.pop %v3958
    %v3974 = vmul.f32 %v3973, 0.6931472
    %v3975 = vlog2.pop %v3960
    %v3976 = vmul.f32 %v3975, 0.6931472
    %v3977 = vlog2.pop %v3962
    %v3978 = vmul.f32 %v3977, 0.6931472
    %v3979 = vadd.f32 %v3908, %v3964
    %v3980 = vadd.f32 %v3910, %v3966
    %v3981 = vadd.f32 %v3912, %v3968
    %v3982 = vadd.f32 %v3914, %v3970
    %v3983 = vadd.f32 %v3916, %v3972
    %v3984 = vadd.f32 %v3918, %v3974
    %v3985 = vadd.f32 %v3920, %v3976
    %v3986 = vadd.f32 %v3922, %v3978
    %v3987 = vsub.f32 %v3869, %v3979
    %v3988 = vsub.f32 %v3874, %v3980
    %v3989 = vsub.f32 %v3879, %v3981
    %v3990 = vsub.f32 %v3884, %v3982
    %v3991 = vsub.f32 %v3889, %v3983
    %v3992 = vsub.f32 %v3894, %v3984
    %v3993 = vsub.f32 %v3899, %v3985
    %v3994 = vsub.f32 %v3904, %v3986
    %3995 = vst [vmem:[%s11] sm:$0xff] %v3987
    %3996 = vst [vmem:[%s11 + $0x8] sm:$0xff] %v3988
    %3997 = vst [vmem:[%s11 + $0x10] sm:$0xff] %v3989
    %3998 = vst [vmem:[%s11 + $0x18] sm:$0xff] %v3990
    %3999 = vst [vmem:[%s11 + $0x20] sm:$0xff] %v3991
    %4000 = vst [vmem:[%s11 + $0x28] sm:$0xff] %v3992
    %4001 = vst [vmem:[%s11 + $0x30] sm:$0xff] %v3993
    %4002 = vst [vmem:[%s11 + $0x38] sm:$0xff] %v3994
    // Predicated region
    $region62: #{ipa_predictor_forward.1} parent=1 // pred_check
      _
    $region63: #{ipa_predictor_forward.1} parent=1 // pred_check_branch
      %4004 = sbr.rel (0) target = $region65
    $region64: #{ipa_predictor_forward.1} parent=1 // pred_region
      _
    $region65: #{ipa_predictor_forward.1} parent=1 // pred_fallthru
      _
    // Predicated region
    $region66: #{ipa_predictor_forward.1} parent=1 // pred_check
      _
    $region67: #{ipa_predictor_forward.1} parent=1 // pred_check_branch
      %4006 = sbr.rel (0) target = $region69
    $region68: #{ipa_predictor_forward.1} parent=1 // pred_region
      _
    $region69: #{ipa_predictor_forward.1} parent=1 // pred_fallthru
      _
    // Predicated region
    $region70: #{ipa_predictor_forward.1} parent=1 // pred_check
      _
    $region71: #{ipa_predictor_forward.1} parent=1 // pred_check_branch
      %4008 = sbr.rel (0) target = $region73
    $region72: #{ipa_predictor_forward.1} parent=1 // pred_region
      _
    $region73: #{ipa_predictor_forward.1} parent=1 // pred_fallthru
      _
    // Predicated region
    $region74: #{ipa_predictor_forward.1} parent=1 // pred_check
      _
    $region75: #{ipa_predictor_forward.1} parent=1 // pred_check_branch
      %4010 = sbr.rel (0) target = $region77
    $region76: #{ipa_predictor_forward.1} parent=1 // pred_region
      _
    $region77: #{ipa_predictor_forward.1} parent=1 // pred_fallthru
      _
    // Predicated region
    $region78: #{ipa_predictor_forward.1} parent=1 // pred_check
      _
    $region79: #{ipa_predictor_forward.1} parent=1 // pred_check_branch
      %4012 = sbr.rel (0) target = $region81
    $region80: #{ipa_predictor_forward.1} parent=1 // pred_region
      _
    $region81: #{ipa_predictor_forward.1} parent=1 // pred_fallthru
      _
    // Predicated region
    $region82: #{ipa_predictor_forward.1} parent=1 // pred_check
      _
    $region83: #{ipa_predictor_forward.1} parent=1 // pred_check_branch
      %4014 = sbr.rel (0) target = $region85
    $region84: #{ipa_predictor_forward.1} parent=1 // pred_region
      _
    $region85: #{ipa_predictor_forward.1} parent=1 // pred_fallthru
      _
    %4015 = vsyncpa [#allocation5], 1
    %4016 = vsyncpa [#allocation7], 1
    %4017 = vsyncpa [#allocation10], 1

</llo_original>
